<compile_context>
chip_gen: v7x
topology: tpu7x:2x2x1
jax: 0.10.0
libtpu: 0.0.40
codegen_flags: <defaults>
</compile_context>

<pallas_src>
import functools

import jax
import jax.numpy as jnp
from jax.experimental import pallas as pl
from jax.experimental.pallas import tpu as pltpu


def _conv3d_bn_relu_kernel(x_ref, w_ref, shift_ref, o_ref, slab_ref, *,
                           wpa, cin, tile_r, tile_bases, stride, relu):
    """Computes one output d-plane of one cube per grid step.

    x_ref:     (Dp, SLAB_R, Cin)  bf16  overlapping per-d-plane slabs of the padded cube
    w_ref:     (27*Cin, Coutp)    bf16  (kd,kh,kw,ci) x co, BN scale folded in
    shift_ref: (1, Coutp)         f32   BN shift = beta - mean*scale
    o_ref:     (R_plane, Coutp)   bf16  one output d-plane (incl. throwaway H/W ring rows)
    slab_ref:  (tile_r, 27*Cin)   bf16  VMEM im2col slab (scratch)
    """
    do = pl.program_id(1)
    shift = shift_ref[...]                       # hoisted out of the tile loop
    for row0 in tile_bases:                      # static row-tile bases inside the plane
        # implicit-GEMM im2col: 27 shifted (tile_r, Cin) views -> (tile_r, 27*Cin) slab.
        # The dynamic part of the index is only the major-dim plane index; the
        # intra-plane row offsets are static.
        t = 0
        for kd in range(3):
            for kh in range(3):
                for kw in range(3):
                    off = row0 + kh * wpa + kw
                    slab_ref[:, t * cin:(t + 1) * cin] = (
                        x_ref[stride * do + kd, off:off + tile_r, :])
                    t += 1
        # One MXU matmul per row tile: dense contraction K = 27*Cin.
        acc = jnp.dot(slab_ref[...], w_ref[...],
                      preferred_element_type=jnp.float32)
        acc = acc + shift
        if relu:
            acc = jnp.maximum(acc, 0.0)
        o_ref[row0:row0 + tile_r, :] = acc.astype(o_ref.dtype)


def conv3d_bn_relu(x_ncdhw, weight, scale, shift, *, stride=1, relu=True):
    """x_ncdhw: (K, Cin, D, H, W); weight: (Cout, Cin, 3, 3, 3) (PyTorch layout).

    scale = gamma / sqrt(running_var + eps); shift = beta - running_mean * scale
    (inference-mode BatchNorm affine; for bn=False use scale=1, shift=bias).
    """
    assert stride in (1, 2)
    K, Cin, D, H, W = x_ncdhw.shape
    Cout, Cin_w, ks, _, _ = weight.shape
    assert ks == 3 and Cin_w == Cin

    # ---- glue (plain JAX): cast to bf16 first, then channels-last + zero pad ----
    x = jnp.transpose(x_ncdhw.astype(jnp.bfloat16), (0, 2, 3, 4, 1))   # (K,D,H,W,Cin)
    Dp, Hp = D + 2, H + 2
    wpa = ((W + 2 + 7) // 8) * 8            # sublane-aligned padded W
    if (Hp * wpa) % 16 != 0:                # keep bf16 plane row-count 16-aligned
        wpa += 8
    plane = Hp * wpa                        # rows per padded d-plane / per output plane
    xp = jnp.pad(x, ((0, 0), (1, 1), (1, 1), (1, wpa - W - 1), (0, 0)))

    # output dims for kernel=3, padding=1
    Do = (D - 1) // stride + 1
    Ho = (H - 1) // stride + 1
    Wo = (W - 1) // stride + 1

    # Overlapping per-d-plane slabs: slab p holds flat padded rows
    # [p*plane, p*plane + SLAB_R), covering the intra-plane (kh, kw) halo, so all
    # in-kernel row slices use static starts (only ~(2*Wpa+2)/plane duplication).
    slab_r = ((plane + 2 * wpa + 2 + 15) // 16) * 16
    xf = xp.reshape(K, Dp * plane, Cin)
    xf = jnp.pad(xf, ((0, 0), (0, slab_r - plane), (0, 0)))
    x_slabs = jnp.stack(
        [xf[:, p * plane:p * plane + slab_r, :] for p in range(Dp)], axis=1
    )                                                                   # (K,Dp,SLAB_R,Cin)

    # Fold BN scale into the conv weight; flatten the 27 taps into the
    # contraction dim; lane-pad Cout so output stores are unmasked.
    coutp = ((Cout + 127) // 128) * 128
    w = jnp.transpose(weight, (2, 3, 4, 1, 0)).reshape(27 * Cin, Cout)  # (kd,kh,kw,ci) x co
    w = w * scale.reshape(1, Cout)
    w = jnp.pad(w, ((0, 0), (0, coutp - Cout))).astype(jnp.bfloat16)
    sh = jnp.pad(shift.reshape(1, Cout).astype(jnp.float32),
                 ((0, 0), (0, coutp - Cout)))

    # Row tiles within one output plane (<=256 rows -> f32 acc stays in vregs);
    # the last tile overlaps (recomputes) instead of needing a ragged size.
    tile_r = min(plane, 256)
    bases = [i * tile_r for i in range(plane // tile_r)]
    if plane % tile_r:
        bases.append(plane - tile_r)
    tile_bases = tuple(bases)

    kernel = functools.partial(
        _conv3d_bn_relu_kernel, wpa=wpa, cin=Cin, tile_r=tile_r,
        tile_bases=tile_bases, stride=stride, relu=relu)

    out = pl.pallas_call(
        kernel,
        out_shape=jax.ShapeDtypeStruct((K, Do, plane, coutp), jnp.bfloat16),
        grid=(K, Do),
        in_specs=[
            # whole padded cube (as d-plane slabs) resident per k
            # TODO(synk): for very large cubes, block this over d (halo-aware) to
            # shrink the per-step VMEM footprint further on v7x.
            pl.BlockSpec((None, Dp, slab_r, Cin), lambda k, d: (k, 0, 0, 0)),
            # weight / shift: constant index map -> fetched once, stays resident.
            # TODO(synk): for large Cin*Cout layers, single-buffer the weight
            # (pipeline_mode=pl.Buffered(1)) to halve its VMEM footprint.
            pl.BlockSpec((27 * Cin, coutp), lambda k, d: (0, 0)),
            pl.BlockSpec((1, coutp), lambda k, d: (0, 0)),
        ],
        out_specs=pl.BlockSpec((None, None, plane, coutp), lambda k, d: (k, d, 0, 0)),
        scratch_shapes=[pltpu.VMEM((tile_r, 27 * Cin), jnp.bfloat16)],
        compiler_params=pltpu.CompilerParams(
            dimension_semantics=("parallel", "parallel"),
            vmem_limit_bytes=48 * 1024 * 1024,
        ),
    )(x_slabs, w, sh)

    # Drop the H/W ring rows (and stride-2 skipped rows) and padded out channels.
    # TODO(synk): in a multi-layer net, keep activations channels-last bf16 and
    # slice via the next layer's BlockSpec instead of this XLA glue.
    out = out.reshape(K, Do, Hp, wpa, coutp)
    out = out[:, :, 0:stride * (Ho - 1) + 1:stride,
              0:stride * (Wo - 1) + 1:stride, :Cout]
    return jnp.transpose(out, (0, 4, 1, 2, 3)).astype(jnp.float32)     # (K,Cout,Do,Ho,Wo)


if __name__ == "__main__":
    key = jax.random.PRNGKey(0)
    K, Cin, D, W = 2, 4, 8, 8          # k cubes, channels, depth, spatial W x W
    Cout = 8
    k1, k2, k3, k4, k5, k6 = jax.random.split(key, 6)

    x = jax.random.normal(k1, (K, Cin, D, W, W), jnp.float32)
    weight = jax.random.normal(k2, (Cout, Cin, 3, 3, 3), jnp.float32) * 0.1
    gamma = 1.0 + 0.1 * jax.random.normal(k3, (Cout,), jnp.float32)
    beta = 0.1 * jax.random.normal(k4, (Cout,), jnp.float32)
    running_mean = 0.1 * jax.random.normal(k5, (Cout,), jnp.float32)
    running_var = jax.nn.softplus(jax.random.normal(k6, (Cout,), jnp.float32)) + 0.5
    eps = 1e-5
    scale = gamma / jnp.sqrt(running_var + eps)
    shift = beta - running_mean * scale

    def ref_conv(stride):
        # same numerical recipe: bf16 operands, f32 accumulation, BN scale folded
        # into the weight, zero padding on D/H/W, final bf16 rounding.
        w_folded = (weight * scale.reshape(Cout, 1, 1, 1, 1)).astype(jnp.bfloat16)
        r = jax.lax.conv_general_dilated(
            x.astype(jnp.bfloat16), w_folded,
            window_strides=(stride, stride, stride),
            padding=((1, 1), (1, 1), (1, 1)),
            dimension_numbers=("NCDHW", "OIDHW", "NCDHW"),
            preferred_element_type=jnp.float32)
        r = jnp.maximum(r + shift.reshape(1, Cout, 1, 1, 1), 0.0)
        return r.astype(jnp.bfloat16).astype(jnp.float32)

    for s in (1, 2):
        out = conv3d_bn_relu(x, weight, scale, shift, stride=s, relu=True)
        out = jax.block_until_ready(out)
        ref = ref_conv(s)
        assert out.shape == ref.shape, (s, out.shape, ref.shape)
        err = float(jnp.max(jnp.abs(out - ref)))
        assert jnp.allclose(out, ref, atol=5e-2, rtol=5e-2), (s, err)

    print("KERNEL_OK")
</pallas_src>

<mosaic_0001>
module attributes {stable_mosaic.version = 11 : i64} {
  func.func @_conv3d_bn_relu_kernel(%arg0: i32, %arg1: i32, %arg2: memref<1x10x208x4xbf16, #tpu.memory_space<vmem>>, %arg3: memref<108x128xbf16, #tpu.memory_space<vmem>>, %arg4: memref<1x128xf32, #tpu.memory_space<vmem>>, %arg5: memref<1x1x160x128xbf16, #tpu.memory_space<vmem>>, %arg6: memref<160x108xbf16, #tpu.memory_space<vmem>>) attributes {dimension_semantics = [#tpu.dimension_semantics<parallel>, #tpu.dimension_semantics<parallel>], iteration_bounds = array<i64: 2, 8>, scalar_prefetch = 0 : i64, scratch_operands = 1 : i64, tpu.core_type = #tpu.core_type<tc>, window_params = [{transform_indices = @transform_0, window_bounds = array<i64: 1, 10, 208, 4>}, {pipeline_mode = #tpu.pipeline_mode<synchronous>, transform_indices = @transform_1, window_bounds = array<i64: 108, 128>}, {pipeline_mode = #tpu.pipeline_mode<synchronous>, transform_indices = @transform_2, window_bounds = array<i64: 1, 128>}, {transform_indices = @transform_3, window_bounds = array<i64: 1, 1, 160, 128>}]} {
    %c0 = arith.constant 0 : index
    %c0_0 = arith.constant 0 : index
    %0 = vector.load %arg4[%c0, %c0_0] : memref<1x128xf32, #tpu.memory_space<vmem>>, vector<1x128xf32>
    %c1_i32 = arith.constant 1 : i32
    %1 = arith.muli %c1_i32, %arg1 : i32
    %c0_i32 = arith.constant 0 : i32
    %2 = arith.addi %1, %c0_i32 : i32
    %c0_1 = arith.constant 0 : index
    %3 = arith.index_cast %2 : i32 to index
    %c0_2 = arith.constant 0 : index
    %c0_3 = arith.constant 0 : index
    %4 = vector.load %arg2[%c0_1, %3, %c0_2, %c0_3] : memref<1x10x208x4xbf16, #tpu.memory_space<vmem>>, vector<1x1x160x4xbf16>
    %5 = vector.shape_cast %4 : vector<1x1x160x4xbf16> to vector<160x4xbf16>
    %c0_4 = arith.constant 0 : index
    %c0_5 = arith.constant 0 : index
    %6 = vector.load %arg6[%c0_4, %c0_5] : memref<160x108xbf16, #tpu.memory_space<vmem>>, vector<160x4xbf16>
    tpu.vector_store %arg6[%c0_4, %c0_5], %5 {strides = array<i32>} : memref<160x108xbf16, #tpu.memory_space<vmem>>, vector<160x4xbf16>,
    %c1_i32_6 = arith.constant 1 : i32
    %7 = arith.muli %c1_i32_6, %arg1 : i32
    %c0_i32_7 = arith.constant 0 : i32
    %8 = arith.addi %7, %c0_i32_7 : i32
    %c0_8 = arith.constant 0 : index
    %9 = arith.index_cast %8 : i32 to index
    %c1 = arith.constant 1 : index
    %c0_9 = arith.constant 0 : index
    %10 = vector.load %arg2[%c0_8, %9, %c1, %c0_9] : memref<1x10x208x4xbf16, #tpu.memory_space<vmem>>, vector<1x1x160x4xbf16>
    %11 = vector.shape_cast %10 : vector<1x1x160x4xbf16> to vector<160x4xbf16>
    %c0_10 = arith.constant 0 : index
    %c4 = arith.constant 4 : index
    %12 = vector.load %arg6[%c0_10, %c4] : memref<160x108xbf16, #tpu.memory_space<vmem>>, vector<160x4xbf16>
    tpu.vector_store %arg6[%c0_10, %c4], %11 {strides = array<i32>} : memref<160x108xbf16, #tpu.memory_space<vmem>>, vector<160x4xbf16>,
    %c1_i32_11 = arith.constant 1 : i32
    %13 = arith.muli %c1_i32_11, %arg1 : i32
    %c0_i32_12 = arith.constant 0 : i32
    %14 = arith.addi %13, %c0_i32_12 : i32
    %c0_13 = arith.constant 0 : index
    %15 = arith.index_cast %14 : i32 to index
    %c2 = arith.constant 2 : index
    %c0_14 = arith.constant 0 : index
    %16 = vector.load %arg2[%c0_13, %15, %c2, %c0_14] : memref<1x10x208x4xbf16, #tpu.memory_space<vmem>>, vector<1x1x160x4xbf16>
    %17 = vector.shape_cast %16 : vector<1x1x160x4xbf16> to vector<160x4xbf16>
    %c0_15 = arith.constant 0 : index
    %c8 = arith.constant 8 : index
    %18 = vector.load %arg6[%c0_15, %c8] : memref<160x108xbf16, #tpu.memory_space<vmem>>, vector<160x4xbf16>
    tpu.vector_store %arg6[%c0_15, %c8], %17 {strides = array<i32>} : memref<160x108xbf16, #tpu.memory_space<vmem>>, vector<160x4xbf16>,
    %c1_i32_16 = arith.constant 1 : i32
    %19 = arith.muli %c1_i32_16, %arg1 : i32
    %c0_i32_17 = arith.constant 0 : i32
    %20 = arith.addi %19, %c0_i32_17 : i32
    %c0_18 = arith.constant 0 : index
    %21 = arith.index_cast %20 : i32 to index
    %c16 = arith.constant 16 : index
    %c0_19 = arith.constant 0 : index
    %22 = vector.load %arg2[%c0_18, %21, %c16, %c0_19] : memref<1x10x208x4xbf16, #tpu.memory_space<vmem>>, vector<1x1x160x4xbf16>
    %23 = vector.shape_cast %22 : vector<1x1x160x4xbf16> to vector<160x4xbf16>
    %c0_20 = arith.constant 0 : index
    %c12 = arith.constant 12 : index
    %24 = vector.load %arg6[%c0_20, %c12] : memref<160x108xbf16, #tpu.memory_space<vmem>>, vector<160x4xbf16>
    tpu.vector_store %arg6[%c0_20, %c12], %23 {strides = array<i32>} : memref<160x108xbf16, #tpu.memory_space<vmem>>, vector<160x4xbf16>,
    %c1_i32_21 = arith.constant 1 : i32
    %25 = arith.muli %c1_i32_21, %arg1 : i32
    %c0_i32_22 = arith.constant 0 : i32
    %26 = arith.addi %25, %c0_i32_22 : i32
    %c0_23 = arith.constant 0 : index
    %27 = arith.index_cast %26 : i32 to index
    %c17 = arith.constant 17 : index
    %c0_24 = arith.constant 0 : index
    %28 = vector.load %arg2[%c0_23, %27, %c17, %c0_24] : memref<1x10x208x4xbf16, #tpu.memory_space<vmem>>, vector<1x1x160x4xbf16>
    %29 = vector.shape_cast %28 : vector<1x1x160x4xbf16> to vector<160x4xbf16>
    %c0_25 = arith.constant 0 : index
    %c16_26 = arith.constant 16 : index
    %30 = vector.load %arg6[%c0_25, %c16_26] : memref<160x108xbf16, #tpu.memory_space<vmem>>, vector<160x4xbf16>
    tpu.vector_store %arg6[%c0_25, %c16_26], %29 {strides = array<i32>} : memref<160x108xbf16, #tpu.memory_space<vmem>>, vector<160x4xbf16>,
    %c1_i32_27 = arith.constant 1 : i32
    %31 = arith.muli %c1_i32_27, %arg1 : i32
    %c0_i32_28 = arith.constant 0 : i32
    %32 = arith.addi %31, %c0_i32_28 : i32
    %c0_29 = arith.constant 0 : index
    %33 = arith.index_cast %32 : i32 to index
    %c18 = arith.constant 18 : index
    %c0_30 = arith.constant 0 : index
    %34 = vector.load %arg2[%c0_29, %33, %c18, %c0_30] : memref<1x10x208x4xbf16, #tpu.memory_space<vmem>>, vector<1x1x160x4xbf16>
    %35 = vector.shape_cast %34 : vector<1x1x160x4xbf16> to vector<160x4xbf16>
    %c0_31 = arith.constant 0 : index
    %c20 = arith.constant 20 : index
    %36 = vector.load %arg6[%c0_31, %c20] : memref<160x108xbf16, #tpu.memory_space<vmem>>, vector<160x4xbf16>
    tpu.vector_store %arg6[%c0_31, %c20], %35 {strides = array<i32>} : memref<160x108xbf16, #tpu.memory_space<vmem>>, vector<160x4xbf16>,
    %c1_i32_32 = arith.constant 1 : i32
    %37 = arith.muli %c1_i32_32, %arg1 : i32
    %c0_i32_33 = arith.constant 0 : i32
    %38 = arith.addi %37, %c0_i32_33 : i32
    %c0_34 = arith.constant 0 : index
    %39 = arith.index_cast %38 : i32 to index
    %c32 = arith.constant 32 : index
    %c0_35 = arith.constant 0 : index
    %40 = vector.load %arg2[%c0_34, %39, %c32, %c0_35] : memref<1x10x208x4xbf16, #tpu.memory_space<vmem>>, vector<1x1x160x4xbf16>
    %41 = vector.shape_cast %40 : vector<1x1x160x4xbf16> to vector<160x4xbf16>
    %c0_36 = arith.constant 0 : index
    %c24 = arith.constant 24 : index
    %42 = vector.load %arg6[%c0_36, %c24] : memref<160x108xbf16, #tpu.memory_space<vmem>>, vector<160x4xbf16>
    tpu.vector_store %arg6[%c0_36, %c24], %41 {strides = array<i32>} : memref<160x108xbf16, #tpu.memory_space<vmem>>, vector<160x4xbf16>,
    %c1_i32_37 = arith.constant 1 : i32
    %43 = arith.muli %c1_i32_37, %arg1 : i32
    %c0_i32_38 = arith.constant 0 : i32
    %44 = arith.addi %43, %c0_i32_38 : i32
    %c0_39 = arith.constant 0 : index
    %45 = arith.index_cast %44 : i32 to index
    %c33 = arith.constant 33 : index
    %c0_40 = arith.constant 0 : index
    %46 = vector.load %arg2[%c0_39, %45, %c33, %c0_40] : memref<1x10x208x4xbf16, #tpu.memory_space<vmem>>, vector<1x1x160x4xbf16>
    %47 = vector.shape_cast %46 : vector<1x1x160x4xbf16> to vector<160x4xbf16>
    %c0_41 = arith.constant 0 : index
    %c28 = arith.constant 28 : index
    %48 = vector.load %arg6[%c0_41, %c28] : memref<160x108xbf16, #tpu.memory_space<vmem>>, vector<160x4xbf16>
    tpu.vector_store %arg6[%c0_41, %c28], %47 {strides = array<i32>} : memref<160x108xbf16, #tpu.memory_space<vmem>>, vector<160x4xbf16>,
    %c1_i32_42 = arith.constant 1 : i32
    %49 = arith.muli %c1_i32_42, %arg1 : i32
    %c0_i32_43 = arith.constant 0 : i32
    %50 = arith.addi %49, %c0_i32_43 : i32
    %c0_44 = arith.constant 0 : index
    %51 = arith.index_cast %50 : i32 to index
    %c34 = arith.constant 34 : index
    %c0_45 = arith.constant 0 : index
    %52 = vector.load %arg2[%c0_44, %51, %c34, %c0_45] : memref<1x10x208x4xbf16, #tpu.memory_space<vmem>>, vector<1x1x160x4xbf16>
    %53 = vector.shape_cast %52 : vector<1x1x160x4xbf16> to vector<160x4xbf16>
    %c0_46 = arith.constant 0 : index
    %c32_47 = arith.constant 32 : index
    %54 = vector.load %arg6[%c0_46, %c32_47] : memref<160x108xbf16, #tpu.memory_space<vmem>>, vector<160x4xbf16>
    tpu.vector_store %arg6[%c0_46, %c32_47], %53 {strides = array<i32>} : memref<160x108xbf16, #tpu.memory_space<vmem>>, vector<160x4xbf16>,
    %c1_i32_48 = arith.constant 1 : i32
    %55 = arith.muli %c1_i32_48, %arg1 : i32
    %c1_i32_49 = arith.constant 1 : i32
    %56 = arith.addi %55, %c1_i32_49 : i32
    %c0_50 = arith.constant 0 : index
    %57 = arith.index_cast %56 : i32 to index
    %c0_51 = arith.constant 0 : index
    %c0_52 = arith.constant 0 : index
    %58 = vector.load %arg2[%c0_50, %57, %c0_51, %c0_52] : memref<1x10x208x4xbf16, #tpu.memory_space<vmem>>, vector<1x1x160x4xbf16>
    %59 = vector.shape_cast %58 : vector<1x1x160x4xbf16> to vector<160x4xbf16>
    %c0_53 = arith.constant 0 : index
    %c36 = arith.constant 36 : index
    %60 = vector.load %arg6[%c0_53, %c36] : memref<160x108xbf16, #tpu.memory_space<vmem>>, vector<160x4xbf16>
    tpu.vector_store %arg6[%c0_53, %c36], %59 {strides = array<i32>} : memref<160x108xbf16, #tpu.memory_space<vmem>>, vector<160x4xbf16>,
    %c1_i32_54 = arith.constant 1 : i32
    %61 = arith.muli %c1_i32_54, %arg1 : i32
    %c1_i32_55 = arith.constant 1 : i32
    %62 = arith.addi %61, %c1_i32_55 : i32
    %c0_56 = arith.constant 0 : index
    %63 = arith.index_cast %62 : i32 to index
    %c1_57 = arith.constant 1 : index
    %c0_58 = arith.constant 0 : index
    %64 = vector.load %arg2[%c0_56, %63, %c1_57, %c0_58] : memref<1x10x208x4xbf16, #tpu.memory_space<vmem>>, vector<1x1x160x4xbf16>
    %65 = vector.shape_cast %64 : vector<1x1x160x4xbf16> to vector<160x4xbf16>
    %c0_59 = arith.constant 0 : index
    %c40 = arith.constant 40 : index
    %66 = vector.load %arg6[%c0_59, %c40] : memref<160x108xbf16, #tpu.memory_space<vmem>>, vector<160x4xbf16>
    tpu.vector_store %arg6[%c0_59, %c40], %65 {strides = array<i32>} : memref<160x108xbf16, #tpu.memory_space<vmem>>, vector<160x4xbf16>,
    %c1_i32_60 = arith.constant 1 : i32
    %67 = arith.muli %c1_i32_60, %arg1 : i32
    %c1_i32_61 = arith.constant 1 : i32
    %68 = arith.addi %67, %c1_i32_61 : i32
    %c0_62 = arith.constant 0 : index
    %69 = arith.index_cast %68 : i32 to index
    %c2_63 = arith.constant 2 : index
    %c0_64 = arith.constant 0 : index
    %70 = vector.load %arg2[%c0_62, %69, %c2_63, %c0_64] : memref<1x10x208x4xbf16, #tpu.memory_space<vmem>>, vector<1x1x160x4xbf16>
    %71 = vector.shape_cast %70 : vector<1x1x160x4xbf16> to vector<160x4xbf16>
    %c0_65 = arith.constant 0 : index
    %c44 = arith.constant 44 : index
    %72 = vector.load %arg6[%c0_65, %c44] : memref<160x108xbf16, #tpu.memory_space<vmem>>, vector<160x4xbf16>
    tpu.vector_store %arg6[%c0_65, %c44], %71 {strides = array<i32>} : memref<160x108xbf16, #tpu.memory_space<vmem>>, vector<160x4xbf16>,
    %c1_i32_66 = arith.constant 1 : i32
    %73 = arith.muli %c1_i32_66, %arg1 : i32
    %c1_i32_67 = arith.constant 1 : i32
    %74 = arith.addi %73, %c1_i32_67 : i32
    %c0_68 = arith.constant 0 : index
    %75 = arith.index_cast %74 : i32 to index
    %c16_69 = arith.constant 16 : index
    %c0_70 = arith.constant 0 : index
    %76 = vector.load %arg2[%c0_68, %75, %c16_69, %c0_70] : memref<1x10x208x4xbf16, #tpu.memory_space<vmem>>, vector<1x1x160x4xbf16>
    %77 = vector.shape_cast %76 : vector<1x1x160x4xbf16> to vector<160x4xbf16>
    %c0_71 = arith.constant 0 : index
    %c48 = arith.constant 48 : index
    %78 = vector.load %arg6[%c0_71, %c48] : memref<160x108xbf16, #tpu.memory_space<vmem>>, vector<160x4xbf16>
    tpu.vector_store %arg6[%c0_71, %c48], %77 {strides = array<i32>} : memref<160x108xbf16, #tpu.memory_space<vmem>>, vector<160x4xbf16>,
    %c1_i32_72 = arith.constant 1 : i32
    %79 = arith.muli %c1_i32_72, %arg1 : i32
    %c1_i32_73 = arith.constant 1 : i32
    %80 = arith.addi %79, %c1_i32_73 : i32
    %c0_74 = arith.constant 0 : index
    %81 = arith.index_cast %80 : i32 to index
    %c17_75 = arith.constant 17 : index
    %c0_76 = arith.constant 0 : index
    %82 = vector.load %arg2[%c0_74, %81, %c17_75, %c0_76] : memref<1x10x208x4xbf16, #tpu.memory_space<vmem>>, vector<1x1x160x4xbf16>
    %83 = vector.shape_cast %82 : vector<1x1x160x4xbf16> to vector<160x4xbf16>
    %c0_77 = arith.constant 0 : index
    %c52 = arith.constant 52 : index
    %84 = vector.load %arg6[%c0_77, %c52] : memref<160x108xbf16, #tpu.memory_space<vmem>>, vector<160x4xbf16>
    tpu.vector_store %arg6[%c0_77, %c52], %83 {strides = array<i32>} : memref<160x108xbf16, #tpu.memory_space<vmem>>, vector<160x4xbf16>,
    %c1_i32_78 = arith.constant 1 : i32
    %85 = arith.muli %c1_i32_78, %arg1 : i32
    %c1_i32_79 = arith.constant 1 : i32
    %86 = arith.addi %85, %c1_i32_79 : i32
    %c0_80 = arith.constant 0 : index
    %87 = arith.index_cast %86 : i32 to index
    %c18_81 = arith.constant 18 : index
    %c0_82 = arith.constant 0 : index
    %88 = vector.load %arg2[%c0_80, %87, %c18_81, %c0_82] : memref<1x10x208x4xbf16, #tpu.memory_space<vmem>>, vector<1x1x160x4xbf16>
    %89 = vector.shape_cast %88 : vector<1x1x160x4xbf16> to vector<160x4xbf16>
    %c0_83 = arith.constant 0 : index
    %c56 = arith.constant 56 : index
    %90 = vector.load %arg6[%c0_83, %c56] : memref<160x108xbf16, #tpu.memory_space<vmem>>, vector<160x4xbf16>
    tpu.vector_store %arg6[%c0_83, %c56], %89 {strides = array<i32>} : memref<160x108xbf16, #tpu.memory_space<vmem>>, vector<160x4xbf16>,
    %c1_i32_84 = arith.constant 1 : i32
    %91 = arith.muli %c1_i32_84, %arg1 : i32
    %c1_i32_85 = arith.constant 1 : i32
    %92 = arith.addi %91, %c1_i32_85 : i32
    %c0_86 = arith.constant 0 : index
    %93 = arith.index_cast %92 : i32 to index
    %c32_87 = arith.constant 32 : index
    %c0_88 = arith.constant 0 : index
    %94 = vector.load %arg2[%c0_86, %93, %c32_87, %c0_88] : memref<1x10x208x4xbf16, #tpu.memory_space<vmem>>, vector<1x1x160x4xbf16>
    %95 = vector.shape_cast %94 : vector<1x1x160x4xbf16> to vector<160x4xbf16>
    %c0_89 = arith.constant 0 : index
    %c60 = arith.constant 60 : index
    %96 = vector.load %arg6[%c0_89, %c60] : memref<160x108xbf16, #tpu.memory_space<vmem>>, vector<160x4xbf16>
    tpu.vector_store %arg6[%c0_89, %c60], %95 {strides = array<i32>} : memref<160x108xbf16, #tpu.memory_space<vmem>>, vector<160x4xbf16>,
    %c1_i32_90 = arith.constant 1 : i32
    %97 = arith.muli %c1_i32_90, %arg1 : i32
    %c1_i32_91 = arith.constant 1 : i32
    %98 = arith.addi %97, %c1_i32_91 : i32
    %c0_92 = arith.constant 0 : index
    %99 = arith.index_cast %98 : i32 to index
    %c33_93 = arith.constant 33 : index
    %c0_94 = arith.constant 0 : index
    %100 = vector.load %arg2[%c0_92, %99, %c33_93, %c0_94] : memref<1x10x208x4xbf16, #tpu.memory_space<vmem>>, vector<1x1x160x4xbf16>
    %101 = vector.shape_cast %100 : vector<1x1x160x4xbf16> to vector<160x4xbf16>
    %c0_95 = arith.constant 0 : index
    %c64 = arith.constant 64 : index
    %102 = vector.load %arg6[%c0_95, %c64] : memref<160x108xbf16, #tpu.memory_space<vmem>>, vector<160x4xbf16>
    tpu.vector_store %arg6[%c0_95, %c64], %101 {strides = array<i32>} : memref<160x108xbf16, #tpu.memory_space<vmem>>, vector<160x4xbf16>,
    %c1_i32_96 = arith.constant 1 : i32
    %103 = arith.muli %c1_i32_96, %arg1 : i32
    %c1_i32_97 = arith.constant 1 : i32
    %104 = arith.addi %103, %c1_i32_97 : i32
    %c0_98 = arith.constant 0 : index
    %105 = arith.index_cast %104 : i32 to index
    %c34_99 = arith.constant 34 : index
    %c0_100 = arith.constant 0 : index
    %106 = vector.load %arg2[%c0_98, %105, %c34_99, %c0_100] : memref<1x10x208x4xbf16, #tpu.memory_space<vmem>>, vector<1x1x160x4xbf16>
    %107 = vector.shape_cast %106 : vector<1x1x160x4xbf16> to vector<160x4xbf16>
    %c0_101 = arith.constant 0 : index
    %c68 = arith.constant 68 : index
    %108 = vector.load %arg6[%c0_101, %c68] : memref<160x108xbf16, #tpu.memory_space<vmem>>, vector<160x4xbf16>
    tpu.vector_store %arg6[%c0_101, %c68], %107 {strides = array<i32>} : memref<160x108xbf16, #tpu.memory_space<vmem>>, vector<160x4xbf16>,
    %c1_i32_102 = arith.constant 1 : i32
    %109 = arith.muli %c1_i32_102, %arg1 : i32
    %c2_i32 = arith.constant 2 : i32
    %110 = arith.addi %109, %c2_i32 : i32
    %c0_103 = arith.constant 0 : index
    %111 = arith.index_cast %110 : i32 to index
    %c0_104 = arith.constant 0 : index
    %c0_105 = arith.constant 0 : index
    %112 = vector.load %arg2[%c0_103, %111, %c0_104, %c0_105] : memref<1x10x208x4xbf16, #tpu.memory_space<vmem>>, vector<1x1x160x4xbf16>
    %113 = vector.shape_cast %112 : vector<1x1x160x4xbf16> to vector<160x4xbf16>
    %c0_106 = arith.constant 0 : index
    %c72 = arith.constant 72 : index
    %114 = vector.load %arg6[%c0_106, %c72] : memref<160x108xbf16, #tpu.memory_space<vmem>>, vector<160x4xbf16>
    tpu.vector_store %arg6[%c0_106, %c72], %113 {strides = array<i32>} : memref<160x108xbf16, #tpu.memory_space<vmem>>, vector<160x4xbf16>,
    %c1_i32_107 = arith.constant 1 : i32
    %115 = arith.muli %c1_i32_107, %arg1 : i32
    %c2_i32_108 = arith.constant 2 : i32
    %116 = arith.addi %115, %c2_i32_108 : i32
    %c0_109 = arith.constant 0 : index
    %117 = arith.index_cast %116 : i32 to index
    %c1_110 = arith.constant 1 : index
    %c0_111 = arith.constant 0 : index
    %118 = vector.load %arg2[%c0_109, %117, %c1_110, %c0_111] : memref<1x10x208x4xbf16, #tpu.memory_space<vmem>>, vector<1x1x160x4xbf16>
    %119 = vector.shape_cast %118 : vector<1x1x160x4xbf16> to vector<160x4xbf16>
    %c0_112 = arith.constant 0 : index
    %c76 = arith.constant 76 : index
    %120 = vector.load %arg6[%c0_112, %c76] : memref<160x108xbf16, #tpu.memory_space<vmem>>, vector<160x4xbf16>
    tpu.vector_store %arg6[%c0_112, %c76], %119 {strides = array<i32>} : memref<160x108xbf16, #tpu.memory_space<vmem>>, vector<160x4xbf16>,
    %c1_i32_113 = arith.constant 1 : i32
    %121 = arith.muli %c1_i32_113, %arg1 : i32
    %c2_i32_114 = arith.constant 2 : i32
    %122 = arith.addi %121, %c2_i32_114 : i32
    %c0_115 = arith.constant 0 : index
    %123 = arith.index_cast %122 : i32 to index
    %c2_116 = arith.constant 2 : index
    %c0_117 = arith.constant 0 : index
    %124 = vector.load %arg2[%c0_115, %123, %c2_116, %c0_117] : memref<1x10x208x4xbf16, #tpu.memory_space<vmem>>, vector<1x1x160x4xbf16>
    %125 = vector.shape_cast %124 : vector<1x1x160x4xbf16> to vector<160x4xbf16>
    %c0_118 = arith.constant 0 : index
    %c80 = arith.constant 80 : index
    %126 = vector.load %arg6[%c0_118, %c80] : memref<160x108xbf16, #tpu.memory_space<vmem>>, vector<160x4xbf16>
    tpu.vector_store %arg6[%c0_118, %c80], %125 {strides = array<i32>} : memref<160x108xbf16, #tpu.memory_space<vmem>>, vector<160x4xbf16>,
    %c1_i32_119 = arith.constant 1 : i32
    %127 = arith.muli %c1_i32_119, %arg1 : i32
    %c2_i32_120 = arith.constant 2 : i32
    %128 = arith.addi %127, %c2_i32_120 : i32
    %c0_121 = arith.constant 0 : index
    %129 = arith.index_cast %128 : i32 to index
    %c16_122 = arith.constant 16 : index
    %c0_123 = arith.constant 0 : index
    %130 = vector.load %arg2[%c0_121, %129, %c16_122, %c0_123] : memref<1x10x208x4xbf16, #tpu.memory_space<vmem>>, vector<1x1x160x4xbf16>
    %131 = vector.shape_cast %130 : vector<1x1x160x4xbf16> to vector<160x4xbf16>
    %c0_124 = arith.constant 0 : index
    %c84 = arith.constant 84 : index
    %132 = vector.load %arg6[%c0_124, %c84] : memref<160x108xbf16, #tpu.memory_space<vmem>>, vector<160x4xbf16>
    tpu.vector_store %arg6[%c0_124, %c84], %131 {strides = array<i32>} : memref<160x108xbf16, #tpu.memory_space<vmem>>, vector<160x4xbf16>,
    %c1_i32_125 = arith.constant 1 : i32
    %133 = arith.muli %c1_i32_125, %arg1 : i32
    %c2_i32_126 = arith.constant 2 : i32
    %134 = arith.addi %133, %c2_i32_126 : i32
    %c0_127 = arith.constant 0 : index
    %135 = arith.index_cast %134 : i32 to index
    %c17_128 = arith.constant 17 : index
    %c0_129 = arith.constant 0 : index
    %136 = vector.load %arg2[%c0_127, %135, %c17_128, %c0_129] : memref<1x10x208x4xbf16, #tpu.memory_space<vmem>>, vector<1x1x160x4xbf16>
    %137 = vector.shape_cast %136 : vector<1x1x160x4xbf16> to vector<160x4xbf16>
    %c0_130 = arith.constant 0 : index
    %c88 = arith.constant 88 : index
    %138 = vector.load %arg6[%c0_130, %c88] : memref<160x108xbf16, #tpu.memory_space<vmem>>, vector<160x4xbf16>
    tpu.vector_store %arg6[%c0_130, %c88], %137 {strides = array<i32>} : memref<160x108xbf16, #tpu.memory_space<vmem>>, vector<160x4xbf16>,
    %c1_i32_131 = arith.constant 1 : i32
    %139 = arith.muli %c1_i32_131, %arg1 : i32
    %c2_i32_132 = arith.constant 2 : i32
    %140 = arith.addi %139, %c2_i32_132 : i32
    %c0_133 = arith.constant 0 : index
    %141 = arith.index_cast %140 : i32 to index
    %c18_134 = arith.constant 18 : index
    %c0_135 = arith.constant 0 : index
    %142 = vector.load %arg2[%c0_133, %141, %c18_134, %c0_135] : memref<1x10x208x4xbf16, #tpu.memory_space<vmem>>, vector<1x1x160x4xbf16>
    %143 = vector.shape_cast %142 : vector<1x1x160x4xbf16> to vector<160x4xbf16>
    %c0_136 = arith.constant 0 : index
    %c92 = arith.constant 92 : index
    %144 = vector.load %arg6[%c0_136, %c92] : memref<160x108xbf16, #tpu.memory_space<vmem>>, vector<160x4xbf16>
    tpu.vector_store %arg6[%c0_136, %c92], %143 {strides = array<i32>} : memref<160x108xbf16, #tpu.memory_space<vmem>>, vector<160x4xbf16>,
    %c1_i32_137 = arith.constant 1 : i32
    %145 = arith.muli %c1_i32_137, %arg1 : i32
    %c2_i32_138 = arith.constant 2 : i32
    %146 = arith.addi %145, %c2_i32_138 : i32
    %c0_139 = arith.constant 0 : index
    %147 = arith.index_cast %146 : i32 to index
    %c32_140 = arith.constant 32 : index
    %c0_141 = arith.constant 0 : index
    %148 = vector.load %arg2[%c0_139, %147, %c32_140, %c0_141] : memref<1x10x208x4xbf16, #tpu.memory_space<vmem>>, vector<1x1x160x4xbf16>
    %149 = vector.shape_cast %148 : vector<1x1x160x4xbf16> to vector<160x4xbf16>
    %c0_142 = arith.constant 0 : index
    %c96 = arith.constant 96 : index
    %150 = vector.load %arg6[%c0_142, %c96] : memref<160x108xbf16, #tpu.memory_space<vmem>>, vector<160x4xbf16>
    tpu.vector_store %arg6[%c0_142, %c96], %149 {strides = array<i32>} : memref<160x108xbf16, #tpu.memory_space<vmem>>, vector<160x4xbf16>,
    %c1_i32_143 = arith.constant 1 : i32
    %151 = arith.muli %c1_i32_143, %arg1 : i32
    %c2_i32_144 = arith.constant 2 : i32
    %152 = arith.addi %151, %c2_i32_144 : i32
    %c0_145 = arith.constant 0 : index
    %153 = arith.index_cast %152 : i32 to index
    %c33_146 = arith.constant 33 : index
    %c0_147 = arith.constant 0 : index
    %154 = vector.load %arg2[%c0_145, %153, %c33_146, %c0_147] : memref<1x10x208x4xbf16, #tpu.memory_space<vmem>>, vector<1x1x160x4xbf16>
    %155 = vector.shape_cast %154 : vector<1x1x160x4xbf16> to vector<160x4xbf16>
    %c0_148 = arith.constant 0 : index
    %c100 = arith.constant 100 : index
    %156 = vector.load %arg6[%c0_148, %c100] : memref<160x108xbf16, #tpu.memory_space<vmem>>, vector<160x4xbf16>
    tpu.vector_store %arg6[%c0_148, %c100], %155 {strides = array<i32>} : memref<160x108xbf16, #tpu.memory_space<vmem>>, vector<160x4xbf16>,
    %c1_i32_149 = arith.constant 1 : i32
    %157 = arith.muli %c1_i32_149, %arg1 : i32
    %c2_i32_150 = arith.constant 2 : i32
    %158 = arith.addi %157, %c2_i32_150 : i32
    %c0_151 = arith.constant 0 : index
    %159 = arith.index_cast %158 : i32 to index
    %c34_152 = arith.constant 34 : index
    %c0_153 = arith.constant 0 : index
    %160 = vector.load %arg2[%c0_151, %159, %c34_152, %c0_153] : memref<1x10x208x4xbf16, #tpu.memory_space<vmem>>, vector<1x1x160x4xbf16>
    %161 = vector.shape_cast %160 : vector<1x1x160x4xbf16> to vector<160x4xbf16>
    %c0_154 = arith.constant 0 : index
    %c104 = arith.constant 104 : index
    %162 = vector.load %arg6[%c0_154, %c104] : memref<160x108xbf16, #tpu.memory_space<vmem>>, vector<160x4xbf16>
    tpu.vector_store %arg6[%c0_154, %c104], %161 {strides = array<i32>} : memref<160x108xbf16, #tpu.memory_space<vmem>>, vector<160x4xbf16>,
    %c0_155 = arith.constant 0 : index
    %c0_156 = arith.constant 0 : index
    %163 = vector.load %arg6[%c0_155, %c0_156] : memref<160x108xbf16, #tpu.memory_space<vmem>>, vector<160x108xbf16>
    %c0_157 = arith.constant 0 : index
    %c0_158 = arith.constant 0 : index
    %164 = vector.load %arg3[%c0_157, %c0_158] : memref<108x128xbf16, #tpu.memory_space<vmem>>, vector<108x128xbf16>
    %cst = arith.constant dense<0.000000e+00> : vector<160x128xf32>
    %165 = tpu.matmul %163, %164, %cst {dimension_numbers = #tpu.dot_dimension_numbers<[1], [0], [0], [1], [0, 0, 1, 1], [], []>} : vector<160x108xbf16>, vector<108x128xbf16>, vector<160x128xf32> -> vector<160x128xf32>
    %166 = vector.broadcast %0 : vector<1x128xf32> to vector<160x128xf32>
    %167 = arith.addf %165, %166 : vector<160x128xf32>
    %cst_159 = arith.constant 0.000000e+00 : f32
    %168 = vector.broadcast %cst_159 : f32 to vector<160x128xf32>
    %169 = arith.maximumf %167, %168 : vector<160x128xf32>
    %170 = arith.truncf %169 : vector<160x128xf32> to vector<160x128xbf16>
    %c0_160 = arith.constant 0 : index
    %c0_161 = arith.constant 0 : index
    %c0_162 = arith.constant 0 : index
    %c0_163 = arith.constant 0 : index
    %171 = vector.load %arg5[%c0_160, %c0_161, %c0_162, %c0_163] : memref<1x1x160x128xbf16, #tpu.memory_space<vmem>>, vector<1x1x160x128xbf16>
    %172 = vector.shape_cast %171 : vector<1x1x160x128xbf16> to vector<160x128xbf16>
    %173 = vector.shape_cast %170 : vector<160x128xbf16> to vector<1x1x160x128xbf16>
    tpu.vector_store %arg5[%c0_160, %c0_161, %c0_162, %c0_163], %173 {strides = array<i32>} : memref<1x1x160x128xbf16, #tpu.memory_space<vmem>>, vector<1x1x160x128xbf16>,
    return
  }
  func.func @transform_0(%arg0: i32, %arg1: i32) -> (i32, i32, i32, i32) {
    %c0_i32 = arith.constant 0 : i32
    %c0_i32_0 = arith.constant 0 : i32
    %c0_i32_1 = arith.constant 0 : i32
    %c0_i32_2 = arith.constant 0 : i32
    return %arg0, %c0_i32, %c0_i32_0, %c0_i32_1 : i32, i32, i32, i32
  }
  func.func @transform_1(%arg0: i32, %arg1: i32) -> (i32, i32) {
    %c0_i32 = arith.constant 0 : i32
    %c0_i32_0 = arith.constant 0 : i32
    %c0_i32_1 = arith.constant 0 : i32
    return %c0_i32, %c0_i32_0 : i32, i32
  }
  func.func @transform_2(%arg0: i32, %arg1: i32) -> (i32, i32) {
    %c0_i32 = arith.constant 0 : i32
    %c0_i32_0 = arith.constant 0 : i32
    %c0_i32_1 = arith.constant 0 : i32
    return %c0_i32, %c0_i32_0 : i32, i32
  }
  func.func @transform_3(%arg0: i32, %arg1: i32) -> (i32, i32, i32, i32) {
    %c0_i32 = arith.constant 0 : i32
    %c0_i32_0 = arith.constant 0 : i32
    %c0_i32_1 = arith.constant 0 : i32
    return %arg0, %arg1, %c0_i32, %c0_i32_0 : i32, i32, i32, i32
  }
}

</mosaic_0001>

<llo_original>
// kernel: tpu_custom_call.1
$region0: #{tpu_custom_call.1}
  #allocation0 [shape = 'u32[]', space=smem, size = 0x4, offset = 0x4, fixed_abs, tag = 'smem constant byte address 0x4 - core index']
  #allocation1 [shape = 'u32[144,128]{1,0:T(1,128)}', space=vmem, size = 0x12000, scoped, tag = 'internal scratch']
  #allocation2 [shape = 'bf16[160,108]{1,0:T(16,128)(2,1)}', space=vmem, size = 0xa000, scoped, tag = 'scratch operand']
  %s0 = inlined_call_operand.vmem [shape: bf16[2,10,208,4], index: 0, kind: input, shape index: {}]
  %s1 = inlined_call_operand.vmem [shape: bf16[108,128], index: 1, kind: input, shape index: {}]
  %s2 = inlined_call_operand.vmem [shape: f32[1,128], index: 2, kind: input, shape index: {}]
  %s3 = inlined_call_operand.hbm [shape: bf16[2,8,160,128], index: 3, kind: output, shape index: {}]
  %s4 = sld [smem:[#allocation0]]
  $region45: #{tpu_custom_call.1} parent=0
    _
  %s6 = ssub.s32 1, %s4
  %s7 = scalar_select 0, %s6, %s4
  $region1: #{tpu_custom_call.1} parent=0
    #allocation3 [shape = 'u8[81920]{0}', space=vmem, size = 0x14000, scoped, tag = 'output window, operand 0']
    #allocation4 [shape = 's32[2]{0}', space=sflag, size = 0x8, scoped, tag = 'scoped memory for tpu_custom_call.1']
    %8 = vsyncpa [#allocation4], 0
    %s9 = scalar_lea.sflag [#allocation4], 1
    %10 = vsyncpa %s9, 0
    loop: start=0, step=1, limit=18
    $region2: #{tpu_custom_call.1} parent=1 // loop_pre_header
      _
    $region3: #{tpu_custom_call.1} parent=1 // loop_header
      %s12 = sphi 0, %s16
      %p13 = scmp.ge.s32.totalorder %s12, 18
      %s19 = sphi 0, %s31
      %s20 = sphi 0, %s27
      %s21 = sphi 0, %s19
      %s22 = sphi 0, %s20
      %s23 = sphi 0, %s21
      %s24 = sphi 0, %s22
      %s34 = sphi 0, %s36
      %s37 = sphi 0, %s34
      %s38 = sphi 0, %s37
      %s54 = sphi 0, %s38
      %s58 = sphi 0, %s58
      %s60 = sphi 0, %s58
      %s61 = sphi 0, %s60
      %s75 = sphi 0, %s61
      %s79 = sphi 0, %s79
      %s81 = sphi 0, %s79
      %s82 = sphi 0, %s81
      %s96 = sphi 0, %s82
      %s104 = sphi 0, %s106
      %s107 = sphi 0, %s104
      %s108 = sphi 0, %s107
      %s124 = sphi 0, %s108
    $region4: #{tpu_custom_call.1} parent=1 // loop_header_branch
      %15 = sbr.rel (%p13) target = $region8
    $region5: #{tpu_custom_call.1} parent=1 // loop_body
      %s17 = ssub.s32 %s12, 1
      %s18 = ssub.s32 %s12, 2
      %s25 = sadd.s32 1, %s20
      %p26 = scmp.ge.s32.totalorder %s25, 8
      %s27 = scalar_select %p26, 0, %s25
      %s28 = sadd.s32 1, %s19
      %s29 = scalar_select %p26, %s28, %s19
      %p30 = scmp.ge.s32.totalorder %s29, 2
      %s31 = scalar_select %p30, 0, %s29
      %s32 = ssub.s32 %s19, %s31
      %p33 = scmp.eq.s32.totalorder %s32, 0
      %s35 = sadd.s32 %s34, 1
      %s36 = scalar_select %p33, %s34, %s35
      %p39 = pneg %p33
      %p40 = scmp.eq.s32.totalorder %s12, 15
      %p41 = por %p39, %p40
      %p42 = scmp.ne.s32.totalorder %s34, %s37
      %p43 = scmp.eq.s32.totalorder %s12, 0
      %p44 = por %p42, %p43
      %p45 = scmp.ne.s32.totalorder %s34, %s37
      %p46 = scmp.eq.s32.totalorder %s17, 15
      %p47 = por %p45, %p46
      %p48 = scmp.ne.s32.totalorder %s37, %s38
      %p49 = scmp.eq.s32.totalorder %s17, 0
      %p50 = por %p48, %p49
      %p51 = scmp.ne.s32.totalorder %s37, %s38
      %p52 = scmp.eq.s32.totalorder %s18, 15
      %p53 = por %p51, %p52
      %p55 = scmp.ne.s32.totalorder %s38, %s54
      %p56 = scmp.eq.s32.totalorder %s18, 0
      %p57 = por %p55, %p56
      %s59 = sadd.s32 %s58, 1
      %p62 = scmp.eq.s32.totalorder %s12, 15
      %p63 = scmp.ne.s32.totalorder %s58, %s60
      %p64 = scmp.eq.s32.totalorder %s12, 0
      %p65 = por %p63, %p64
      %p66 = scmp.ne.s32.totalorder %s58, %s60
      %p67 = scmp.eq.s32.totalorder %s17, 15
      %p68 = por %p66, %p67
      %p69 = scmp.ne.s32.totalorder %s60, %s61
      %p70 = scmp.eq.s32.totalorder %s17, 0
      %p71 = por %p69, %p70
      %p72 = scmp.ne.s32.totalorder %s60, %s61
      %p73 = scmp.eq.s32.totalorder %s18, 15
      %p74 = por %p72, %p73
      %p76 = scmp.ne.s32.totalorder %s61, %s75
      %p77 = scmp.eq.s32.totalorder %s18, 0
      %p78 = por %p76, %p77
      %s80 = sadd.s32 %s79, 1
      %p83 = scmp.eq.s32.totalorder %s12, 15
      %p84 = scmp.ne.s32.totalorder %s79, %s81
      %p85 = scmp.eq.s32.totalorder %s12, 0
      %p86 = por %p84, %p85
      %p87 = scmp.ne.s32.totalorder %s79, %s81
      %p88 = scmp.eq.s32.totalorder %s17, 15
      %p89 = por %p87, %p88
      %p90 = scmp.ne.s32.totalorder %s81, %s82
      %p91 = scmp.eq.s32.totalorder %s17, 0
      %p92 = por %p90, %p91
      %p93 = scmp.ne.s32.totalorder %s81, %s82
      %p94 = scmp.eq.s32.totalorder %s18, 15
      %p95 = por %p93, %p94
      %p97 = scmp.ne.s32.totalorder %s82, %s96
      %p98 = scmp.eq.s32.totalorder %s18, 0
      %p99 = por %p97, %p98
      %s100 = ssub.s32 %s19, %s31
      %s101 = ssub.s32 %s20, %s27
      %s102 = sor.u32 %s100, %s101
      %p103 = scmp.eq.s32.totalorder %s102, 0
      %s105 = sadd.s32 %s104, 1
      %s106 = scalar_select %p103, %s104, %s105
      %p109 = pneg %p103
      %p110 = scmp.eq.s32.totalorder %s12, 15
      %p111 = por %p109, %p110
      %p112 = scmp.ne.s32.totalorder %s104, %s107
      %p113 = scmp.eq.s32.totalorder %s12, 0
      %p114 = por %p112, %p113
      %p115 = scmp.ne.s32.totalorder %s104, %s107
      %p116 = scmp.eq.s32.totalorder %s17, 15
      %p117 = por %p115, %p116
      %p118 = scmp.ne.s32.totalorder %s107, %s108
      %p119 = scmp.eq.s32.totalorder %s17, 0
      %p120 = por %p118, %p119
      %p121 = scmp.ne.s32.totalorder %s107, %s108
      %p122 = scmp.eq.s32.totalorder %s18, 15
      %p123 = por %p121, %p122
      %p125 = scmp.ne.s32.totalorder %s108, %s124
      %p126 = scmp.eq.s32.totalorder %s18, 0
      %p127 = por %p125, %p126
      %p128 = scmp.le.s32.totalorder 1, %s12
      %p129 = scmp.lt.s32.totalorder %s12, 17
      %p130 = pnand %p128, %p129
      %p131 = pneg %p130
      // Predicated region
      $region9: #{tpu_custom_call.1} parent=5 // pred_check
        _
      $region10: #{tpu_custom_call.1} parent=5 // pred_check_branch
        %133 = sbr.rel (%p130) target = $region12
      $region11: #{tpu_custom_call.1} parent=5 // pred_region
        %s134 = ssub.s32 %s12, 1
        // Predicated region
        $region13: #{tpu_custom_call.1} parent=11 // pred_check
          %p135 = pneg %p71
        $region14: #{tpu_custom_call.1} parent=11 // pred_check_branch
          %137 = sbr.rel (%p135) target = $region16
        $region15: #{tpu_custom_call.1} parent=11 // pred_region
          _
        $region16: #{tpu_custom_call.1} parent=11 // pred_fallthru
          _
        // Predicated region
        $region17: #{tpu_custom_call.1} parent=11 // pred_check
          %p138 = pneg %p92
        $region18: #{tpu_custom_call.1} parent=11 // pred_check_branch
          %140 = sbr.rel (%p138) target = $region20
        $region19: #{tpu_custom_call.1} parent=11 // pred_region
          _
        $region20: #{tpu_custom_call.1} parent=11 // pred_fallthru
          _
      $region12: #{tpu_custom_call.1} parent=5 // pred_fallthru
        _
      %p141 = scmp.lt.s32.totalorder %s12, 16
      // Predicated region
      $region21: #{tpu_custom_call.1} parent=5 // pred_check
        %p142 = pneg %p141
      $region22: #{tpu_custom_call.1} parent=5 // pred_check_branch
        %144 = sbr.rel (%p142) target = $region24
      $region23: #{tpu_custom_call.1} parent=5 // pred_region
        // Predicated region
        $region25: #{tpu_custom_call.1} parent=23 // pred_check
          %p145 = pneg %p44
        $region26: #{tpu_custom_call.1} parent=23 // pred_check_branch
          %147 = sbr.rel (%p145) target = $region28
        $region27: #{tpu_custom_call.1} parent=23 // pred_region
          %p148 = scmp.lt.s32.totalorder %s19, 1
          %s149 = scalar_select %p148, %s19, 1
          %s150 = smul.addr %s149, 260
          %s151 = smul.addr %s150, 4
          %s152 = scalar_lea.vmem %s0, %s151
        $region28: #{tpu_custom_call.1} parent=23 // pred_fallthru
          _
      $region24: #{tpu_custom_call.1} parent=5 // pred_fallthru
        _
      %p153 = scmp.le.s32.totalorder 1, %s12
      %p154 = scmp.lt.s32.totalorder %s12, 17
      %p155 = pnand %p153, %p154
      %p156 = pneg %p155
      // Predicated region
      $region29: #{tpu_custom_call.1} parent=5 // pred_check
        _
      $region30: #{tpu_custom_call.1} parent=5 // pred_check_branch
        %158 = sbr.rel (%p155) target = $region32
      $region31: #{tpu_custom_call.1} parent=5 // pred_region
        %s159 = ssub.s32 %s12, 1
        %p160 = scmp.lt.s32.totalorder %s21, 1
        %s161 = scalar_select %p160, %s21, 1
        %s162 = smul.addr %s161, 260
        %s163 = smul.addr %s162, 4
        %s164 = scalar_lea.vmem %s0, %s163
        %p165 = pneg %p50
        %p166 = pneg %p47
        %p167 = pneg %p71
        %p168 = pneg %p68
        %p169 = pneg %p92
        %p170 = pneg %p89
        %p171 = pneg %p120
        %p172 = pneg %p117
        %s173 = sand.u32 %s107, 1
        %s174 = scalar_lea.sflag [#allocation4], %s173
        %s175 = sand.u32 %s107, 1
        %s176 = smul.addr %s175, 80
        %s177 = scalar_lea.vmem [#allocation3], %s176
        %p178 = scmp.lt.s32.totalorder %s21, 1
        %s179 = scalar_select %p178, %s21, 1
        %s180 = smul.addr %s179, 260
        %s181 = smul.addr %s180, 4
        %s182 = scalar_lea.vmem %s0, %s181
        %v184 = vld [vmem:[%s2] sm:$0x1]
        %s185 = smul.u32 %s22, 26
        %s186 = smul.addr %s185, 4
        %s187 = scalar_lea.vmem %s182, %s186
        %v188 = vld [vmem:[%s187] sm:$0xf]
        %v189 = vld [vmem:[%s187 + $0x4] sm:$0xf]
        %v190 = vld [vmem:[%s187 + $0x8] sm:$0xf]
        %v191 = vld [vmem:[%s187 + $0xc] sm:$0xf]
        %v192 = vld [vmem:[%s187 + $0x10] sm:$0xf]
        %v193 = vld [vmem:[%s187 + $0x14] sm:$0xf]
        %v194 = vld [vmem:[%s187 + $0x18] sm:$0xf]
        %v195 = vld [vmem:[%s187 + $0x1c] sm:$0xf]
        %v196 = vld [vmem:[%s187 + $0x20] sm:$0xf]
        %v197 = vld [vmem:[%s187 + $0x24] sm:$0xf]
        %v198 = vld [vmem:[%s187 + $0x28] sm:$0xf]
        %v199 = vld [vmem:[%s187 + $0x2c] sm:$0xf]
        %v200 = vld [vmem:[%s187 + $0x30] sm:$0xf]
        %v201 = vld [vmem:[%s187 + $0x34] sm:$0xf]
        %v202 = vld [vmem:[%s187 + $0x38] sm:$0xf]
        %v203 = vld [vmem:[%s187 + $0x3c] sm:$0xf]
        %v204 = vld [vmem:[%s187 + $0x40] sm:$0xf]
        %v205 = vld [vmem:[%s187 + $0x44] sm:$0xf]
        %v206 = vld [vmem:[%s187 + $0x48] sm:$0xf]
        %v207 = vld [vmem:[%s187 + $0x4c] sm:$0xf]
        %v228 = vunpack.c.l.b16 %v188
        %v229 = vunpack.c.l.b16 %v189
        %v230 = vunpack.c.l.b16 %v190
        %v231 = vunpack.c.l.b16 %v191
        %v232 = vunpack.c.l.b16 %v192
        %v233 = vunpack.c.l.b16 %v193
        %v234 = vunpack.c.l.b16 %v194
        %v235 = vunpack.c.l.b16 %v195
        %v236 = vunpack.c.l.b16 %v196
        %v237 = vunpack.c.l.b16 %v197
        %v238 = vunpack.c.l.b16 %v198
        %v239 = vunpack.c.l.b16 %v199
        %v240 = vunpack.c.l.b16 %v200
        %v241 = vunpack.c.l.b16 %v201
        %v242 = vunpack.c.l.b16 %v202
        %v243 = vunpack.c.l.b16 %v203
        %v244 = vunpack.c.l.b16 %v204
        %v245 = vunpack.c.l.b16 %v205
        %v246 = vunpack.c.l.b16 %v206
        %v247 = vunpack.c.l.b16 %v207
        %v248 = vpack.c.b16 %v229, %v228
        %v249 = vpack.c.b16 %v231, %v230
        %v250 = vpack.c.b16 %v233, %v232
        %v251 = vpack.c.b16 %v235, %v234
        %v252 = vpack.c.b16 %v237, %v236
        %v253 = vpack.c.b16 %v239, %v238
        %v254 = vpack.c.b16 %v241, %v240
        %v255 = vpack.c.b16 %v243, %v242
        %v256 = vpack.c.b16 %v245, %v244
        %v257 = vpack.c.b16 %v247, %v246
        %vm268 = vcmask 31744
        %269 = vst.msk [vmem:[#allocation2] sm:$0xff] %vm268, %v248
        %270 = vst.msk [vmem:[#allocation2 + $0x8] sm:$0xff] %vm268, %v249
        %271 = vst.msk [vmem:[#allocation2 + $0x10] sm:$0xff] %vm268, %v250
        %272 = vst.msk [vmem:[#allocation2 + $0x18] sm:$0xff] %vm268, %v251
        %273 = vst.msk [vmem:[#allocation2 + $0x20] sm:$0xff] %vm268, %v252
        %274 = vst.msk [vmem:[#allocation2 + $0x28] sm:$0xff] %vm268, %v253
        %275 = vst.msk [vmem:[#allocation2 + $0x30] sm:$0xff] %vm268, %v254
        %276 = vst.msk [vmem:[#allocation2 + $0x38] sm:$0xff] %vm268, %v255
        %277 = vst.msk [vmem:[#allocation2 + $0x40] sm:$0xff] %vm268, %v256
        %278 = vst.msk [vmem:[#allocation2 + $0x48] sm:$0xff] %vm268, %v257
        %v279 = vld [vmem:[%s187] sm:$0xf]
        %v280 = vld [vmem:[%s187 + $0x4] sm:$0xf]
        %v281 = vld [vmem:[%s187 + $0x8] sm:$0xf]
        %v282 = vld [vmem:[%s187 + $0xc] sm:$0xf]
        %v283 = vld [vmem:[%s187 + $0x10] sm:$0xf]
        %v284 = vld [vmem:[%s187 + $0x14] sm:$0xf]
        %v285 = vld [vmem:[%s187 + $0x18] sm:$0xf]
        %v286 = vld [vmem:[%s187 + $0x1c] sm:$0xf]
        %v287 = vld [vmem:[%s187 + $0x20] sm:$0xf]
        %v288 = vld [vmem:[%s187 + $0x24] sm:$0xf]
        %v289 = vld [vmem:[%s187 + $0x28] sm:$0xf]
        %v290 = vld [vmem:[%s187 + $0x2c] sm:$0xf]
        %v291 = vld [vmem:[%s187 + $0x30] sm:$0xf]
        %v292 = vld [vmem:[%s187 + $0x34] sm:$0xf]
        %v293 = vld [vmem:[%s187 + $0x38] sm:$0xf]
        %v294 = vld [vmem:[%s187 + $0x3c] sm:$0xf]
        %v295 = vld [vmem:[%s187 + $0x40] sm:$0xf]
        %v296 = vld [vmem:[%s187 + $0x44] sm:$0xf]
        %v297 = vld [vmem:[%s187 + $0x48] sm:$0xf]
        %v298 = vld [vmem:[%s187 + $0x4c] sm:$0xf]
        %v299 = vld [vmem:[%s187 + $0x50] sm:$0x1]
        %v321 = vunpack.c.l.b16 %v279
        %v322 = vunpack.c.l.b16 %v280
        %v323 = vunpack.c.l.b16 %v281
        %v324 = vunpack.c.l.b16 %v282
        %v325 = vunpack.c.l.b16 %v283
        %v326 = vunpack.c.l.b16 %v284
        %v327 = vunpack.c.l.b16 %v285
        %v328 = vunpack.c.l.b16 %v286
        %v329 = vunpack.c.l.b16 %v287
        %v330 = vunpack.c.l.b16 %v288
        %v331 = vunpack.c.l.b16 %v289
        %v332 = vunpack.c.l.b16 %v290
        %v333 = vunpack.c.l.b16 %v291
        %v334 = vunpack.c.l.b16 %v292
        %v335 = vunpack.c.l.b16 %v293
        %v336 = vunpack.c.l.b16 %v294
        %v337 = vunpack.c.l.b16 %v295
        %v338 = vunpack.c.l.b16 %v296
        %v339 = vunpack.c.l.b16 %v297
        %v340 = vunpack.c.l.b16 %v298
        %v341 = vunpack.c.l.b16 %v299
        %v342 = vpack.c.b16 %v322, %v321
        %v343 = vpack.c.b16 %v324, %v323
        %v344 = vpack.c.b16 %v326, %v325
        %v345 = vpack.c.b16 %v328, %v327
        %v346 = vpack.c.b16 %v330, %v329
        %v347 = vpack.c.b16 %v332, %v331
        %v348 = vpack.c.b16 %v334, %v333
        %v349 = vpack.c.b16 %v336, %v335
        %v350 = vpack.c.b16 %v338, %v337
        %v351 = vpack.c.b16 %v340, %v339
        %v352 = vpack.c.b16 %v341, %v341
        %vm353 = vsmask.f32 7424
        %v355 = vshrl.u32 %v342, 16
        %v357 = vshll.u32 %v342, 16
        %v359 = vrot.slane %v357, 1
        %v360 = vor.u32 %v355, %v359
        %v362 = vshll.u32 %v343, 16
        %v364 = vrot.slane %v362, 1
        %v365 = vsel %vm353, %v360, %v364
        %v366 = vshrl.u32 %v343, 16
        %v368 = vor.u32 %v366, %v364
        %v370 = vshll.u32 %v344, 16
        %v372 = vrot.slane %v370, 1
        %v373 = vsel %vm353, %v368, %v372
        %v374 = vshrl.u32 %v344, 16
        %v376 = vor.u32 %v374, %v372
        %v378 = vshll.u32 %v345, 16
        %v380 = vrot.slane %v378, 1
        %v381 = vsel %vm353, %v376, %v380
        %v382 = vshrl.u32 %v345, 16
        %v384 = vor.u32 %v382, %v380
        %v386 = vshll.u32 %v346, 16
        %v388 = vrot.slane %v386, 1
        %v389 = vsel %vm353, %v384, %v388
        %v390 = vshrl.u32 %v346, 16
        %v392 = vor.u32 %v390, %v388
        %v394 = vshll.u32 %v347, 16
        %v396 = vrot.slane %v394, 1
        %v397 = vsel %vm353, %v392, %v396
        %v398 = vshrl.u32 %v347, 16
        %v400 = vor.u32 %v398, %v396
        %v402 = vshll.u32 %v348, 16
        %v404 = vrot.slane %v402, 1
        %v405 = vsel %vm353, %v400, %v404
        %v406 = vshrl.u32 %v348, 16
        %v408 = vor.u32 %v406, %v404
        %v410 = vshll.u32 %v349, 16
        %v412 = vrot.slane %v410, 1
        %v413 = vsel %vm353, %v408, %v412
        %v414 = vshrl.u32 %v349, 16
        %v416 = vor.u32 %v414, %v412
        %v418 = vshll.u32 %v350, 16
        %v420 = vrot.slane %v418, 1
        %v421 = vsel %vm353, %v416, %v420
        %v422 = vshrl.u32 %v350, 16
        %v424 = vor.u32 %v422, %v420
        %v426 = vshll.u32 %v351, 16
        %v428 = vrot.slane %v426, 1
        %v429 = vsel %vm353, %v424, %v428
        %v430 = vshrl.u32 %v351, 16
        %v432 = vor.u32 %v430, %v428
        %v434 = vshll.u32 %v352, 16
        %v436 = vrot.slane %v434, 1
        %v437 = vsel %vm353, %v432, %v436
        %438 = vrot.lane.b32.xlu0 %v365, 4
        %v439 = vpop.permute.xlu0 %438
        %440 = vrot.lane.b32.xlu0 %v373, 4
        %v441 = vpop.permute.xlu0 %440
        %442 = vrot.lane.b32.xlu0 %v381, 4
        %v443 = vpop.permute.xlu0 %442
        %444 = vrot.lane.b32.xlu0 %v389, 4
        %v445 = vpop.permute.xlu0 %444
        %446 = vrot.lane.b32.xlu0 %v397, 4
        %v447 = vpop.permute.xlu0 %446
        %448 = vrot.lane.b32.xlu0 %v405, 4
        %v449 = vpop.permute.xlu0 %448
        %450 = vrot.lane.b32.xlu0 %v413, 4
        %v451 = vpop.permute.xlu0 %450
        %452 = vrot.lane.b32.xlu0 %v421, 4
        %v453 = vpop.permute.xlu0 %452
        %454 = vrot.lane.b32.xlu0 %v429, 4
        %v455 = vpop.permute.xlu0 %454
        %456 = vrot.lane.b32.xlu0 %v437, 4
        %v457 = vpop.permute.xlu0 %456
        %vm468 = vcmask 64544
        %469 = vst.msk [vmem:[#allocation2] sm:$0xff] %vm468, %v439
        %470 = vst.msk [vmem:[#allocation2 + $0x8] sm:$0xff] %vm468, %v441
        %471 = vst.msk [vmem:[#allocation2 + $0x10] sm:$0xff] %vm468, %v443
        %472 = vst.msk [vmem:[#allocation2 + $0x18] sm:$0xff] %vm468, %v445
        %473 = vst.msk [vmem:[#allocation2 + $0x20] sm:$0xff] %vm468, %v447
        %474 = vst.msk [vmem:[#allocation2 + $0x28] sm:$0xff] %vm468, %v449
        %475 = vst.msk [vmem:[#allocation2 + $0x30] sm:$0xff] %vm468, %v451
        %476 = vst.msk [vmem:[#allocation2 + $0x38] sm:$0xff] %vm468, %v453
        %477 = vst.msk [vmem:[#allocation2 + $0x40] sm:$0xff] %vm468, %v455
        %478 = vst.msk [vmem:[#allocation2 + $0x48] sm:$0xff] %vm468, %v457
        %v479 = vld [vmem:[%s187] sm:$0xe]
        %v480 = vld [vmem:[%s187 + $0x4] sm:$0xf]
        %v481 = vld [vmem:[%s187 + $0x8] sm:$0xf]
        %v482 = vld [vmem:[%s187 + $0xc] sm:$0xf]
        %v483 = vld [vmem:[%s187 + $0x10] sm:$0xf]
        %v484 = vld [vmem:[%s187 + $0x14] sm:$0xf]
        %v485 = vld [vmem:[%s187 + $0x18] sm:$0xf]
        %v486 = vld [vmem:[%s187 + $0x1c] sm:$0xf]
        %v487 = vld [vmem:[%s187 + $0x20] sm:$0xf]
        %v488 = vld [vmem:[%s187 + $0x24] sm:$0xf]
        %v489 = vld [vmem:[%s187 + $0x28] sm:$0xf]
        %v490 = vld [vmem:[%s187 + $0x2c] sm:$0xf]
        %v491 = vld [vmem:[%s187 + $0x30] sm:$0xf]
        %v492 = vld [vmem:[%s187 + $0x34] sm:$0xf]
        %v493 = vld [vmem:[%s187 + $0x38] sm:$0xf]
        %v494 = vld [vmem:[%s187 + $0x3c] sm:$0xf]
        %v495 = vld [vmem:[%s187 + $0x40] sm:$0xf]
        %v496 = vld [vmem:[%s187 + $0x44] sm:$0xf]
        %v497 = vld [vmem:[%s187 + $0x48] sm:$0xf]
        %v498 = vld [vmem:[%s187 + $0x4c] sm:$0xf]
        %v499 = vld [vmem:[%s187 + $0x50] sm:$0x1]
        %v521 = vunpack.c.l.b16 %v479
        %v522 = vunpack.c.l.b16 %v480
        %v523 = vunpack.c.l.b16 %v481
        %v524 = vunpack.c.l.b16 %v482
        %v525 = vunpack.c.l.b16 %v483
        %v526 = vunpack.c.l.b16 %v484
        %v527 = vunpack.c.l.b16 %v485
        %v528 = vunpack.c.l.b16 %v486
        %v529 = vunpack.c.l.b16 %v487
        %v530 = vunpack.c.l.b16 %v488
        %v531 = vunpack.c.l.b16 %v489
        %v532 = vunpack.c.l.b16 %v490
        %v533 = vunpack.c.l.b16 %v491
        %v534 = vunpack.c.l.b16 %v492
        %v535 = vunpack.c.l.b16 %v493
        %v536 = vunpack.c.l.b16 %v494
        %v537 = vunpack.c.l.b16 %v495
        %v538 = vunpack.c.l.b16 %v496
        %v539 = vunpack.c.l.b16 %v497
        %v540 = vunpack.c.l.b16 %v498
        %v541 = vunpack.c.l.b16 %v499
        %v542 = vpack.c.b16 %v522, %v521
        %v543 = vpack.c.b16 %v524, %v523
        %v544 = vpack.c.b16 %v526, %v525
        %v545 = vpack.c.b16 %v528, %v527
        %v546 = vpack.c.b16 %v530, %v529
        %v547 = vpack.c.b16 %v532, %v531
        %v548 = vpack.c.b16 %v534, %v533
        %v549 = vpack.c.b16 %v536, %v535
        %v550 = vpack.c.b16 %v538, %v537
        %v551 = vpack.c.b16 %v540, %v539
        %v552 = vpack.c.b16 %v541, %v541
        %vm553 = vcmask 1046528
        %v554 = vrot.slane %v542, 1
        %v555 = vrot.slane %v543, 1
        %v556 = vsel %vm553, %v554, %v555
        %v557 = vrot.slane %v544, 1
        %v558 = vsel %vm553, %v555, %v557
        %v559 = vrot.slane %v545, 1
        %v560 = vsel %vm553, %v557, %v559
        %v561 = vrot.slane %v546, 1
        %v562 = vsel %vm553, %v559, %v561
        %v563 = vrot.slane %v547, 1
        %v564 = vsel %vm553, %v561, %v563
        %v565 = vrot.slane %v548, 1
        %v566 = vsel %vm553, %v563, %v565
        %v567 = vrot.slane %v549, 1
        %v568 = vsel %vm553, %v565, %v567
        %v569 = vrot.slane %v550, 1
        %v570 = vsel %vm553, %v567, %v569
        %v571 = vrot.slane %v551, 1
        %v572 = vsel %vm553, %v569, %v571
        %v573 = vrot.slane %v552, 1
        %v574 = vsel %vm553, %v571, %v573
        %575 = vrot.lane.b32.xlu0 %v556, 8
        %v576 = vpop.permute.xlu0 %575
        %577 = vrot.lane.b32.xlu0 %v558, 8
        %v578 = vpop.permute.xlu0 %577
        %579 = vrot.lane.b32.xlu0 %v560, 8
        %v580 = vpop.permute.xlu0 %579
        %581 = vrot.lane.b32.xlu0 %v562, 8
        %v582 = vpop.permute.xlu0 %581
        %583 = vrot.lane.b32.xlu0 %v564, 8
        %v584 = vpop.permute.xlu0 %583
        %585 = vrot.lane.b32.xlu0 %v566, 8
        %v586 = vpop.permute.xlu0 %585
        %587 = vrot.lane.b32.xlu0 %v568, 8
        %v588 = vpop.permute.xlu0 %587
        %589 = vrot.lane.b32.xlu0 %v570, 8
        %v590 = vpop.permute.xlu0 %589
        %591 = vrot.lane.b32.xlu0 %v572, 8
        %v592 = vpop.permute.xlu0 %591
        %593 = vrot.lane.b32.xlu0 %v574, 8
        %v594 = vpop.permute.xlu0 %593
        %vm605 = vcmask 97344
        %606 = vst.msk [vmem:[#allocation2] sm:$0xff] %vm605, %v576
        %607 = vst.msk [vmem:[#allocation2 + $0x8] sm:$0xff] %vm605, %v578
        %608 = vst.msk [vmem:[#allocation2 + $0x10] sm:$0xff] %vm605, %v580
        %609 = vst.msk [vmem:[#allocation2 + $0x18] sm:$0xff] %vm605, %v582
        %610 = vst.msk [vmem:[#allocation2 + $0x20] sm:$0xff] %vm605, %v584
        %611 = vst.msk [vmem:[#allocation2 + $0x28] sm:$0xff] %vm605, %v586
        %612 = vst.msk [vmem:[#allocation2 + $0x30] sm:$0xff] %vm605, %v588
        %613 = vst.msk [vmem:[#allocation2 + $0x38] sm:$0xff] %vm605, %v590
        %614 = vst.msk [vmem:[#allocation2 + $0x40] sm:$0xff] %vm605, %v592
        %615 = vst.msk [vmem:[#allocation2 + $0x48] sm:$0xff] %vm605, %v594
        %v616 = vld [vmem:[%s187 + $0x8] sm:$0xf]
        %v617 = vld [vmem:[%s187 + $0xc] sm:$0xf]
        %v618 = vld [vmem:[%s187 + $0x10] sm:$0xf]
        %v619 = vld [vmem:[%s187 + $0x14] sm:$0xf]
        %v620 = vld [vmem:[%s187 + $0x18] sm:$0xf]
        %v621 = vld [vmem:[%s187 + $0x1c] sm:$0xf]
        %v622 = vld [vmem:[%s187 + $0x20] sm:$0xf]
        %v623 = vld [vmem:[%s187 + $0x24] sm:$0xf]
        %v624 = vld [vmem:[%s187 + $0x28] sm:$0xf]
        %v625 = vld [vmem:[%s187 + $0x2c] sm:$0xf]
        %v626 = vld [vmem:[%s187 + $0x30] sm:$0xf]
        %v627 = vld [vmem:[%s187 + $0x34] sm:$0xf]
        %v628 = vld [vmem:[%s187 + $0x38] sm:$0xf]
        %v629 = vld [vmem:[%s187 + $0x3c] sm:$0xf]
        %v630 = vld [vmem:[%s187 + $0x40] sm:$0xf]
        %v631 = vld [vmem:[%s187 + $0x44] sm:$0xf]
        %v632 = vld [vmem:[%s187 + $0x48] sm:$0xf]
        %v633 = vld [vmem:[%s187 + $0x4c] sm:$0xf]
        %v634 = vld [vmem:[%s187 + $0x50] sm:$0xf]
        %v635 = vld [vmem:[%s187 + $0x54] sm:$0xf]
        %v656 = vunpack.c.l.b16 %v616
        %v657 = vunpack.c.l.b16 %v617
        %v658 = vunpack.c.l.b16 %v618
        %v659 = vunpack.c.l.b16 %v619
        %v660 = vunpack.c.l.b16 %v620
        %v661 = vunpack.c.l.b16 %v621
        %v662 = vunpack.c.l.b16 %v622
        %v663 = vunpack.c.l.b16 %v623
        %v664 = vunpack.c.l.b16 %v624
        %v665 = vunpack.c.l.b16 %v625
        %v666 = vunpack.c.l.b16 %v626
        %v667 = vunpack.c.l.b16 %v627
        %v668 = vunpack.c.l.b16 %v628
        %v669 = vunpack.c.l.b16 %v629
        %v670 = vunpack.c.l.b16 %v630
        %v671 = vunpack.c.l.b16 %v631
        %v672 = vunpack.c.l.b16 %v632
        %v673 = vunpack.c.l.b16 %v633
        %v674 = vunpack.c.l.b16 %v634
        %v675 = vunpack.c.l.b16 %v635
        %v676 = vpack.c.b16 %v657, %v656
        %v677 = vpack.c.b16 %v659, %v658
        %v678 = vpack.c.b16 %v661, %v660
        %v679 = vpack.c.b16 %v663, %v662
        %v680 = vpack.c.b16 %v665, %v664
        %v681 = vpack.c.b16 %v667, %v666
        %v682 = vpack.c.b16 %v669, %v668
        %v683 = vpack.c.b16 %v671, %v670
        %v684 = vpack.c.b16 %v673, %v672
        %v685 = vpack.c.b16 %v675, %v674
        %686 = vrot.lane.b32.xlu0 %v676, 12
        %v687 = vpop.permute.xlu0 %686
        %688 = vrot.lane.b32.xlu0 %v677, 12
        %v689 = vpop.permute.xlu0 %688
        %690 = vrot.lane.b32.xlu0 %v678, 12
        %v691 = vpop.permute.xlu0 %690
        %692 = vrot.lane.b32.xlu0 %v679, 12
        %v693 = vpop.permute.xlu0 %692
        %694 = vrot.lane.b32.xlu0 %v680, 12
        %v695 = vpop.permute.xlu0 %694
        %696 = vrot.lane.b32.xlu0 %v681, 12
        %v697 = vpop.permute.xlu0 %696
        %698 = vrot.lane.b32.xlu0 %v682, 12
        %v699 = vpop.permute.xlu0 %698
        %700 = vrot.lane.b32.xlu0 %v683, 12
        %v701 = vpop.permute.xlu0 %700
        %702 = vrot.lane.b32.xlu0 %v684, 12
        %v703 = vpop.permute.xlu0 %702
        %704 = vrot.lane.b32.xlu0 %v685, 12
        %v705 = vpop.permute.xlu0 %704
        %vm716 = vcmask 130144
        %717 = vst.msk [vmem:[#allocation2] sm:$0xff] %vm716, %v687
        %718 = vst.msk [vmem:[#allocation2 + $0x8] sm:$0xff] %vm716, %v689
        %719 = vst.msk [vmem:[#allocation2 + $0x10] sm:$0xff] %vm716, %v691
        %720 = vst.msk [vmem:[#allocation2 + $0x18] sm:$0xff] %vm716, %v693
        %721 = vst.msk [vmem:[#allocation2 + $0x20] sm:$0xff] %vm716, %v695
        %722 = vst.msk [vmem:[#allocation2 + $0x28] sm:$0xff] %vm716, %v697
        %723 = vst.msk [vmem:[#allocation2 + $0x30] sm:$0xff] %vm716, %v699
        %724 = vst.msk [vmem:[#allocation2 + $0x38] sm:$0xff] %vm716, %v701
        %725 = vst.msk [vmem:[#allocation2 + $0x40] sm:$0xff] %vm716, %v703
        %726 = vst.msk [vmem:[#allocation2 + $0x48] sm:$0xff] %vm716, %v705
        %v727 = vld [vmem:[%s187 + $0x8] sm:$0xf]
        %v728 = vld [vmem:[%s187 + $0xc] sm:$0xf]
        %v729 = vld [vmem:[%s187 + $0x10] sm:$0xf]
        %v730 = vld [vmem:[%s187 + $0x14] sm:$0xf]
        %v731 = vld [vmem:[%s187 + $0x18] sm:$0xf]
        %v732 = vld [vmem:[%s187 + $0x1c] sm:$0xf]
        %v733 = vld [vmem:[%s187 + $0x20] sm:$0xf]
        %v734 = vld [vmem:[%s187 + $0x24] sm:$0xf]
        %v735 = vld [vmem:[%s187 + $0x28] sm:$0xf]
        %v736 = vld [vmem:[%s187 + $0x2c] sm:$0xf]
        %v737 = vld [vmem:[%s187 + $0x30] sm:$0xf]
        %v738 = vld [vmem:[%s187 + $0x34] sm:$0xf]
        %v739 = vld [vmem:[%s187 + $0x38] sm:$0xf]
        %v740 = vld [vmem:[%s187 + $0x3c] sm:$0xf]
        %v741 = vld [vmem:[%s187 + $0x40] sm:$0xf]
        %v742 = vld [vmem:[%s187 + $0x44] sm:$0xf]
        %v743 = vld [vmem:[%s187 + $0x48] sm:$0xf]
        %v744 = vld [vmem:[%s187 + $0x4c] sm:$0xf]
        %v745 = vld [vmem:[%s187 + $0x50] sm:$0xf]
        %v746 = vld [vmem:[%s187 + $0x54] sm:$0xf]
        %v747 = vld [vmem:[%s187 + $0x58] sm:$0x1]
        %v769 = vunpack.c.l.b16 %v727
        %v770 = vunpack.c.l.b16 %v728
        %v771 = vunpack.c.l.b16 %v729
        %v772 = vunpack.c.l.b16 %v730
        %v773 = vunpack.c.l.b16 %v731
        %v774 = vunpack.c.l.b16 %v732
        %v775 = vunpack.c.l.b16 %v733
        %v776 = vunpack.c.l.b16 %v734
        %v777 = vunpack.c.l.b16 %v735
        %v778 = vunpack.c.l.b16 %v736
        %v779 = vunpack.c.l.b16 %v737
        %v780 = vunpack.c.l.b16 %v738
        %v781 = vunpack.c.l.b16 %v739
        %v782 = vunpack.c.l.b16 %v740
        %v783 = vunpack.c.l.b16 %v741
        %v784 = vunpack.c.l.b16 %v742
        %v785 = vunpack.c.l.b16 %v743
        %v786 = vunpack.c.l.b16 %v744
        %v787 = vunpack.c.l.b16 %v745
        %v788 = vunpack.c.l.b16 %v746
        %v789 = vunpack.c.l.b16 %v747
        %v790 = vpack.c.b16 %v770, %v769
        %v791 = vpack.c.b16 %v772, %v771
        %v792 = vpack.c.b16 %v774, %v773
        %v793 = vpack.c.b16 %v776, %v775
        %v794 = vpack.c.b16 %v778, %v777
        %v795 = vpack.c.b16 %v780, %v779
        %v796 = vpack.c.b16 %v782, %v781
        %v797 = vpack.c.b16 %v784, %v783
        %v798 = vpack.c.b16 %v786, %v785
        %v799 = vpack.c.b16 %v788, %v787
        %v800 = vpack.c.b16 %v789, %v789
        %v802 = vshrl.u32 %v790, 16
        %v804 = vshll.u32 %v790, 16
        %v806 = vrot.slane %v804, 1
        %v807 = vor.u32 %v802, %v806
        %v809 = vshll.u32 %v791, 16
        %v811 = vrot.slane %v809, 1
        %v812 = vsel %vm353, %v807, %v811
        %v813 = vshrl.u32 %v791, 16
        %v815 = vor.u32 %v813, %v811
        %v817 = vshll.u32 %v792, 16
        %v819 = vrot.slane %v817, 1
        %v820 = vsel %vm353, %v815, %v819
        %v821 = vshrl.u32 %v792, 16
        %v823 = vor.u32 %v821, %v819
        %v825 = vshll.u32 %v793, 16
        %v827 = vrot.slane %v825, 1
        %v828 = vsel %vm353, %v823, %v827
        %v829 = vshrl.u32 %v793, 16
        %v831 = vor.u32 %v829, %v827
        %v833 = vshll.u32 %v794, 16
        %v835 = vrot.slane %v833, 1
        %v836 = vsel %vm353, %v831, %v835
        %v837 = vshrl.u32 %v794, 16
        %v839 = vor.u32 %v837, %v835
        %v841 = vshll.u32 %v795, 16
        %v843 = vrot.slane %v841, 1
        %v844 = vsel %vm353, %v839, %v843
        %v845 = vshrl.u32 %v795, 16
        %v847 = vor.u32 %v845, %v843
        %v849 = vshll.u32 %v796, 16
        %v851 = vrot.slane %v849, 1
        %v852 = vsel %vm353, %v847, %v851
        %v853 = vshrl.u32 %v796, 16
        %v855 = vor.u32 %v853, %v851
        %v857 = vshll.u32 %v797, 16
        %v859 = vrot.slane %v857, 1
        %v860 = vsel %vm353, %v855, %v859
        %v861 = vshrl.u32 %v797, 16
        %v863 = vor.u32 %v861, %v859
        %v865 = vshll.u32 %v798, 16
        %v867 = vrot.slane %v865, 1
        %v868 = vsel %vm353, %v863, %v867
        %v869 = vshrl.u32 %v798, 16
        %v871 = vor.u32 %v869, %v867
        %v873 = vshll.u32 %v799, 16
        %v875 = vrot.slane %v873, 1
        %v876 = vsel %vm353, %v871, %v875
        %v877 = vshrl.u32 %v799, 16
        %v879 = vor.u32 %v877, %v875
        %v881 = vshll.u32 %v800, 16
        %v883 = vrot.slane %v881, 1
        %v884 = vsel %vm353, %v879, %v883
        %885 = vrot.lane.b32.xlu0 %v812, 16
        %v886 = vpop.permute.xlu0 %885
        %887 = vrot.lane.b32.xlu0 %v820, 16
        %v888 = vpop.permute.xlu0 %887
        %889 = vrot.lane.b32.xlu0 %v828, 16
        %v890 = vpop.permute.xlu0 %889
        %891 = vrot.lane.b32.xlu0 %v836, 16
        %v892 = vpop.permute.xlu0 %891
        %893 = vrot.lane.b32.xlu0 %v844, 16
        %v894 = vpop.permute.xlu0 %893
        %895 = vrot.lane.b32.xlu0 %v852, 16
        %v896 = vpop.permute.xlu0 %895
        %897 = vrot.lane.b32.xlu0 %v860, 16
        %v898 = vpop.permute.xlu0 %897
        %899 = vrot.lane.b32.xlu0 %v868, 16
        %v900 = vpop.permute.xlu0 %899
        %901 = vrot.lane.b32.xlu0 %v876, 16
        %v902 = vpop.permute.xlu0 %901
        %903 = vrot.lane.b32.xlu0 %v884, 16
        %v904 = vpop.permute.xlu0 %903
        %vm915 = vcmask 162944
        %916 = vst.msk [vmem:[#allocation2] sm:$0xff] %vm915, %v886
        %917 = vst.msk [vmem:[#allocation2 + $0x8] sm:$0xff] %vm915, %v888
        %918 = vst.msk [vmem:[#allocation2 + $0x10] sm:$0xff] %vm915, %v890
        %919 = vst.msk [vmem:[#allocation2 + $0x18] sm:$0xff] %vm915, %v892
        %920 = vst.msk [vmem:[#allocation2 + $0x20] sm:$0xff] %vm915, %v894
        %921 = vst.msk [vmem:[#allocation2 + $0x28] sm:$0xff] %vm915, %v896
        %922 = vst.msk [vmem:[#allocation2 + $0x30] sm:$0xff] %vm915, %v898
        %923 = vst.msk [vmem:[#allocation2 + $0x38] sm:$0xff] %vm915, %v900
        %924 = vst.msk [vmem:[#allocation2 + $0x40] sm:$0xff] %vm915, %v902
        %925 = vst.msk [vmem:[#allocation2 + $0x48] sm:$0xff] %vm915, %v904
        %v926 = vld [vmem:[%s187 + $0x8] sm:$0xe]
        %v927 = vld [vmem:[%s187 + $0xc] sm:$0xf]
        %v928 = vld [vmem:[%s187 + $0x10] sm:$0xf]
        %v929 = vld [vmem:[%s187 + $0x14] sm:$0xf]
        %v930 = vld [vmem:[%s187 + $0x18] sm:$0xf]
        %v931 = vld [vmem:[%s187 + $0x1c] sm:$0xf]
        %v932 = vld [vmem:[%s187 + $0x20] sm:$0xf]
        %v933 = vld [vmem:[%s187 + $0x24] sm:$0xf]
        %v934 = vld [vmem:[%s187 + $0x28] sm:$0xf]
        %v935 = vld [vmem:[%s187 + $0x2c] sm:$0xf]
        %v936 = vld [vmem:[%s187 + $0x30] sm:$0xf]
        %v937 = vld [vmem:[%s187 + $0x34] sm:$0xf]
        %v938 = vld [vmem:[%s187 + $0x38] sm:$0xf]
        %v939 = vld [vmem:[%s187 + $0x3c] sm:$0xf]
        %v940 = vld [vmem:[%s187 + $0x40] sm:$0xf]
        %v941 = vld [vmem:[%s187 + $0x44] sm:$0xf]
        %v942 = vld [vmem:[%s187 + $0x48] sm:$0xf]
        %v943 = vld [vmem:[%s187 + $0x4c] sm:$0xf]
        %v944 = vld [vmem:[%s187 + $0x50] sm:$0xf]
        %v945 = vld [vmem:[%s187 + $0x54] sm:$0xf]
        %v946 = vld [vmem:[%s187 + $0x58] sm:$0x1]
        %v968 = vunpack.c.l.b16 %v926
        %v969 = vunpack.c.l.b16 %v927
        %v970 = vunpack.c.l.b16 %v928
        %v971 = vunpack.c.l.b16 %v929
        %v972 = vunpack.c.l.b16 %v930
        %v973 = vunpack.c.l.b16 %v931
        %v974 = vunpack.c.l.b16 %v932
        %v975 = vunpack.c.l.b16 %v933
        %v976 = vunpack.c.l.b16 %v934
        %v977 = vunpack.c.l.b16 %v935
        %v978 = vunpack.c.l.b16 %v936
        %v979 = vunpack.c.l.b16 %v937
        %v980 = vunpack.c.l.b16 %v938
        %v981 = vunpack.c.l.b16 %v939
        %v982 = vunpack.c.l.b16 %v940
        %v983 = vunpack.c.l.b16 %v941
        %v984 = vunpack.c.l.b16 %v942
        %v985 = vunpack.c.l.b16 %v943
        %v986 = vunpack.c.l.b16 %v944
        %v987 = vunpack.c.l.b16 %v945
        %v988 = vunpack.c.l.b16 %v946
        %v989 = vpack.c.b16 %v969, %v968
        %v990 = vpack.c.b16 %v971, %v970
        %v991 = vpack.c.b16 %v973, %v972
        %v992 = vpack.c.b16 %v975, %v974
        %v993 = vpack.c.b16 %v977, %v976
        %v994 = vpack.c.b16 %v979, %v978
        %v995 = vpack.c.b16 %v981, %v980
        %v996 = vpack.c.b16 %v983, %v982
        %v997 = vpack.c.b16 %v985, %v984
        %v998 = vpack.c.b16 %v987, %v986
        %v999 = vpack.c.b16 %v988, %v988
        %v1000 = vrot.slane %v989, 1
        %v1001 = vrot.slane %v990, 1
        %v1002 = vsel %vm553, %v1000, %v1001
        %v1003 = vrot.slane %v991, 1
        %v1004 = vsel %vm553, %v1001, %v1003
        %v1005 = vrot.slane %v992, 1
        %v1006 = vsel %vm553, %v1003, %v1005
        %v1007 = vrot.slane %v993, 1
        %v1008 = vsel %vm553, %v1005, %v1007
        %v1009 = vrot.slane %v994, 1
        %v1010 = vsel %vm553, %v1007, %v1009
        %v1011 = vrot.slane %v995, 1
        %v1012 = vsel %vm553, %v1009, %v1011
        %v1013 = vrot.slane %v996, 1
        %v1014 = vsel %vm553, %v1011, %v1013
        %v1015 = vrot.slane %v997, 1
        %v1016 = vsel %vm553, %v1013, %v1015
        %v1017 = vrot.slane %v998, 1
        %v1018 = vsel %vm553, %v1015, %v1017
        %v1019 = vrot.slane %v999, 1
        %v1020 = vsel %vm553, %v1017, %v1019
        %1021 = vrot.lane.b32.xlu0 %v1002, 20
        %v1022 = vpop.permute.xlu0 %1021
        %1023 = vrot.lane.b32.xlu0 %v1004, 20
        %v1024 = vpop.permute.xlu0 %1023
        %1025 = vrot.lane.b32.xlu0 %v1006, 20
        %v1026 = vpop.permute.xlu0 %1025
        %1027 = vrot.lane.b32.xlu0 %v1008, 20
        %v1028 = vpop.permute.xlu0 %1027
        %1029 = vrot.lane.b32.xlu0 %v1010, 20
        %v1030 = vpop.permute.xlu0 %1029
        %1031 = vrot.lane.b32.xlu0 %v1012, 20
        %v1032 = vpop.permute.xlu0 %1031
        %1033 = vrot.lane.b32.xlu0 %v1014, 20
        %v1034 = vpop.permute.xlu0 %1033
        %1035 = vrot.lane.b32.xlu0 %v1016, 20
        %v1036 = vpop.permute.xlu0 %1035
        %1037 = vrot.lane.b32.xlu0 %v1018, 20
        %v1038 = vpop.permute.xlu0 %1037
        %1039 = vrot.lane.b32.xlu0 %v1020, 20
        %v1040 = vpop.permute.xlu0 %1039
        %vm1051 = vcmask 195744
        %1052 = vst.msk [vmem:[#allocation2] sm:$0xff] %vm1051, %v1022
        %1053 = vst.msk [vmem:[#allocation2 + $0x8] sm:$0xff] %vm1051, %v1024
        %1054 = vst.msk [vmem:[#allocation2 + $0x10] sm:$0xff] %vm1051, %v1026
        %1055 = vst.msk [vmem:[#allocation2 + $0x18] sm:$0xff] %vm1051, %v1028
        %1056 = vst.msk [vmem:[#allocation2 + $0x20] sm:$0xff] %vm1051, %v1030
        %1057 = vst.msk [vmem:[#allocation2 + $0x28] sm:$0xff] %vm1051, %v1032
        %1058 = vst.msk [vmem:[#allocation2 + $0x30] sm:$0xff] %vm1051, %v1034
        %1059 = vst.msk [vmem:[#allocation2 + $0x38] sm:$0xff] %vm1051, %v1036
        %1060 = vst.msk [vmem:[#allocation2 + $0x40] sm:$0xff] %vm1051, %v1038
        %1061 = vst.msk [vmem:[#allocation2 + $0x48] sm:$0xff] %vm1051, %v1040
        %v1062 = vld [vmem:[%s187 + $0x10] sm:$0xf]
        %v1063 = vld [vmem:[%s187 + $0x14] sm:$0xf]
        %v1064 = vld [vmem:[%s187 + $0x18] sm:$0xf]
        %v1065 = vld [vmem:[%s187 + $0x1c] sm:$0xf]
        %v1066 = vld [vmem:[%s187 + $0x20] sm:$0xf]
        %v1067 = vld [vmem:[%s187 + $0x24] sm:$0xf]
        %v1068 = vld [vmem:[%s187 + $0x28] sm:$0xf]
        %v1069 = vld [vmem:[%s187 + $0x2c] sm:$0xf]
        %v1070 = vld [vmem:[%s187 + $0x30] sm:$0xf]
        %v1071 = vld [vmem:[%s187 + $0x34] sm:$0xf]
        %v1072 = vld [vmem:[%s187 + $0x38] sm:$0xf]
        %v1073 = vld [vmem:[%s187 + $0x3c] sm:$0xf]
        %v1074 = vld [vmem:[%s187 + $0x40] sm:$0xf]
        %v1075 = vld [vmem:[%s187 + $0x44] sm:$0xf]
        %v1076 = vld [vmem:[%s187 + $0x48] sm:$0xf]
        %v1077 = vld [vmem:[%s187 + $0x4c] sm:$0xf]
        %v1078 = vld [vmem:[%s187 + $0x50] sm:$0xf]
        %v1079 = vld [vmem:[%s187 + $0x54] sm:$0xf]
        %v1080 = vld [vmem:[%s187 + $0x58] sm:$0xf]
        %v1081 = vld [vmem:[%s187 + $0x5c] sm:$0xf]
        %v1102 = vunpack.c.l.b16 %v1062
        %v1103 = vunpack.c.l.b16 %v1063
        %v1104 = vunpack.c.l.b16 %v1064
        %v1105 = vunpack.c.l.b16 %v1065
        %v1106 = vunpack.c.l.b16 %v1066
        %v1107 = vunpack.c.l.b16 %v1067
        %v1108 = vunpack.c.l.b16 %v1068
        %v1109 = vunpack.c.l.b16 %v1069
        %v1110 = vunpack.c.l.b16 %v1070
        %v1111 = vunpack.c.l.b16 %v1071
        %v1112 = vunpack.c.l.b16 %v1072
        %v1113 = vunpack.c.l.b16 %v1073
        %v1114 = vunpack.c.l.b16 %v1074
        %v1115 = vunpack.c.l.b16 %v1075
        %v1116 = vunpack.c.l.b16 %v1076
        %v1117 = vunpack.c.l.b16 %v1077
        %v1118 = vunpack.c.l.b16 %v1078
        %v1119 = vunpack.c.l.b16 %v1079
        %v1120 = vunpack.c.l.b16 %v1080
        %v1121 = vunpack.c.l.b16 %v1081
        %v1122 = vpack.c.b16 %v1103, %v1102
        %v1123 = vpack.c.b16 %v1105, %v1104
        %v1124 = vpack.c.b16 %v1107, %v1106
        %v1125 = vpack.c.b16 %v1109, %v1108
        %v1126 = vpack.c.b16 %v1111, %v1110
        %v1127 = vpack.c.b16 %v1113, %v1112
        %v1128 = vpack.c.b16 %v1115, %v1114
        %v1129 = vpack.c.b16 %v1117, %v1116
        %v1130 = vpack.c.b16 %v1119, %v1118
        %v1131 = vpack.c.b16 %v1121, %v1120
        %1132 = vrot.lane.b32.xlu0 %v1122, 24
        %v1133 = vpop.permute.xlu0 %1132
        %1134 = vrot.lane.b32.xlu0 %v1123, 24
        %v1135 = vpop.permute.xlu0 %1134
        %1136 = vrot.lane.b32.xlu0 %v1124, 24
        %v1137 = vpop.permute.xlu0 %1136
        %1138 = vrot.lane.b32.xlu0 %v1125, 24
        %v1139 = vpop.permute.xlu0 %1138
        %1140 = vrot.lane.b32.xlu0 %v1126, 24
        %v1141 = vpop.permute.xlu0 %1140
        %1142 = vrot.lane.b32.xlu0 %v1127, 24
        %v1143 = vpop.permute.xlu0 %1142
        %1144 = vrot.lane.b32.xlu0 %v1128, 24
        %v1145 = vpop.permute.xlu0 %1144
        %1146 = vrot.lane.b32.xlu0 %v1129, 24
        %v1147 = vpop.permute.xlu0 %1146
        %1148 = vrot.lane.b32.xlu0 %v1130, 24
        %v1149 = vpop.permute.xlu0 %1148
        %1150 = vrot.lane.b32.xlu0 %v1131, 24
        %v1151 = vpop.permute.xlu0 %1150
        %vm1162 = vcmask 228544
        %1163 = vst.msk [vmem:[#allocation2] sm:$0xff] %vm1162, %v1133
        %1164 = vst.msk [vmem:[#allocation2 + $0x8] sm:$0xff] %vm1162, %v1135
        %1165 = vst.msk [vmem:[#allocation2 + $0x10] sm:$0xff] %vm1162, %v1137
        %1166 = vst.msk [vmem:[#allocation2 + $0x18] sm:$0xff] %vm1162, %v1139
        %1167 = vst.msk [vmem:[#allocation2 + $0x20] sm:$0xff] %vm1162, %v1141
        %1168 = vst.msk [vmem:[#allocation2 + $0x28] sm:$0xff] %vm1162, %v1143
        %1169 = vst.msk [vmem:[#allocation2 + $0x30] sm:$0xff] %vm1162, %v1145
        %1170 = vst.msk [vmem:[#allocation2 + $0x38] sm:$0xff] %vm1162, %v1147
        %1171 = vst.msk [vmem:[#allocation2 + $0x40] sm:$0xff] %vm1162, %v1149
        %1172 = vst.msk [vmem:[#allocation2 + $0x48] sm:$0xff] %vm1162, %v1151
        %v1173 = vld [vmem:[%s187 + $0x10] sm:$0xf]
        %v1174 = vld [vmem:[%s187 + $0x14] sm:$0xf]
        %v1175 = vld [vmem:[%s187 + $0x18] sm:$0xf]
        %v1176 = vld [vmem:[%s187 + $0x1c] sm:$0xf]
        %v1177 = vld [vmem:[%s187 + $0x20] sm:$0xf]
        %v1178 = vld [vmem:[%s187 + $0x24] sm:$0xf]
        %v1179 = vld [vmem:[%s187 + $0x28] sm:$0xf]
        %v1180 = vld [vmem:[%s187 + $0x2c] sm:$0xf]
        %v1181 = vld [vmem:[%s187 + $0x30] sm:$0xf]
        %v1182 = vld [vmem:[%s187 + $0x34] sm:$0xf]
        %v1183 = vld [vmem:[%s187 + $0x38] sm:$0xf]
        %v1184 = vld [vmem:[%s187 + $0x3c] sm:$0xf]
        %v1185 = vld [vmem:[%s187 + $0x40] sm:$0xf]
        %v1186 = vld [vmem:[%s187 + $0x44] sm:$0xf]
        %v1187 = vld [vmem:[%s187 + $0x48] sm:$0xf]
        %v1188 = vld [vmem:[%s187 + $0x4c] sm:$0xf]
        %v1189 = vld [vmem:[%s187 + $0x50] sm:$0xf]
        %v1190 = vld [vmem:[%s187 + $0x54] sm:$0xf]
        %v1191 = vld [vmem:[%s187 + $0x58] sm:$0xf]
        %v1192 = vld [vmem:[%s187 + $0x5c] sm:$0xf]
        %v1193 = vld [vmem:[%s187 + $0x60] sm:$0x1]
        %v1215 = vunpack.c.l.b16 %v1173
        %v1216 = vunpack.c.l.b16 %v1174
        %v1217 = vunpack.c.l.b16 %v1175
        %v1218 = vunpack.c.l.b16 %v1176
        %v1219 = vunpack.c.l.b16 %v1177
        %v1220 = vunpack.c.l.b16 %v1178
        %v1221 = vunpack.c.l.b16 %v1179
        %v1222 = vunpack.c.l.b16 %v1180
        %v1223 = vunpack.c.l.b16 %v1181
        %v1224 = vunpack.c.l.b16 %v1182
        %v1225 = vunpack.c.l.b16 %v1183
        %v1226 = vunpack.c.l.b16 %v1184
        %v1227 = vunpack.c.l.b16 %v1185
        %v1228 = vunpack.c.l.b16 %v1186
        %v1229 = vunpack.c.l.b16 %v1187
        %v1230 = vunpack.c.l.b16 %v1188
        %v1231 = vunpack.c.l.b16 %v1189
        %v1232 = vunpack.c.l.b16 %v1190
        %v1233 = vunpack.c.l.b16 %v1191
        %v1234 = vunpack.c.l.b16 %v1192
        %v1235 = vunpack.c.l.b16 %v1193
        %v1236 = vpack.c.b16 %v1216, %v1215
        %v1237 = vpack.c.b16 %v1218, %v1217
        %v1238 = vpack.c.b16 %v1220, %v1219
        %v1239 = vpack.c.b16 %v1222, %v1221
        %v1240 = vpack.c.b16 %v1224, %v1223
        %v1241 = vpack.c.b16 %v1226, %v1225
        %v1242 = vpack.c.b16 %v1228, %v1227
        %v1243 = vpack.c.b16 %v1230, %v1229
        %v1244 = vpack.c.b16 %v1232, %v1231
        %v1245 = vpack.c.b16 %v1234, %v1233
        %v1246 = vpack.c.b16 %v1235, %v1235
        %v1248 = vshrl.u32 %v1236, 16
        %v1250 = vshll.u32 %v1236, 16
        %v1252 = vrot.slane %v1250, 1
        %v1253 = vor.u32 %v1248, %v1252
        %v1255 = vshll.u32 %v1237, 16
        %v1257 = vrot.slane %v1255, 1
        %v1258 = vsel %vm353, %v1253, %v1257
        %v1259 = vshrl.u32 %v1237, 16
        %v1261 = vor.u32 %v1259, %v1257
        %v1263 = vshll.u32 %v1238, 16
        %v1265 = vrot.slane %v1263, 1
        %v1266 = vsel %vm353, %v1261, %v1265
        %v1267 = vshrl.u32 %v1238, 16
        %v1269 = vor.u32 %v1267, %v1265
        %v1271 = vshll.u32 %v1239, 16
        %v1273 = vrot.slane %v1271, 1
        %v1274 = vsel %vm353, %v1269, %v1273
        %v1275 = vshrl.u32 %v1239, 16
        %v1277 = vor.u32 %v1275, %v1273
        %v1279 = vshll.u32 %v1240, 16
        %v1281 = vrot.slane %v1279, 1
        %v1282 = vsel %vm353, %v1277, %v1281
        %v1283 = vshrl.u32 %v1240, 16
        %v1285 = vor.u32 %v1283, %v1281
        %v1287 = vshll.u32 %v1241, 16
        %v1289 = vrot.slane %v1287, 1
        %v1290 = vsel %vm353, %v1285, %v1289
        %v1291 = vshrl.u32 %v1241, 16
        %v1293 = vor.u32 %v1291, %v1289
        %v1295 = vshll.u32 %v1242, 16
        %v1297 = vrot.slane %v1295, 1
        %v1298 = vsel %vm353, %v1293, %v1297
        %v1299 = vshrl.u32 %v1242, 16
        %v1301 = vor.u32 %v1299, %v1297
        %v1303 = vshll.u32 %v1243, 16
        %v1305 = vrot.slane %v1303, 1
        %v1306 = vsel %vm353, %v1301, %v1305
        %v1307 = vshrl.u32 %v1243, 16
        %v1309 = vor.u32 %v1307, %v1305
        %v1311 = vshll.u32 %v1244, 16
        %v1313 = vrot.slane %v1311, 1
        %v1314 = vsel %vm353, %v1309, %v1313
        %v1315 = vshrl.u32 %v1244, 16
        %v1317 = vor.u32 %v1315, %v1313
        %v1319 = vshll.u32 %v1245, 16
        %v1321 = vrot.slane %v1319, 1
        %v1322 = vsel %vm353, %v1317, %v1321
        %v1323 = vshrl.u32 %v1245, 16
        %v1325 = vor.u32 %v1323, %v1321
        %v1327 = vshll.u32 %v1246, 16
        %v1329 = vrot.slane %v1327, 1
        %v1330 = vsel %vm353, %v1325, %v1329
        %1331 = vrot.lane.b32.xlu0 %v1258, 28
        %v1332 = vpop.permute.xlu0 %1331
        %1333 = vrot.lane.b32.xlu0 %v1266, 28
        %v1334 = vpop.permute.xlu0 %1333
        %1335 = vrot.lane.b32.xlu0 %v1274, 28
        %v1336 = vpop.permute.xlu0 %1335
        %1337 = vrot.lane.b32.xlu0 %v1282, 28
        %v1338 = vpop.permute.xlu0 %1337
        %1339 = vrot.lane.b32.xlu0 %v1290, 28
        %v1340 = vpop.permute.xlu0 %1339
        %1341 = vrot.lane.b32.xlu0 %v1298, 28
        %v1342 = vpop.permute.xlu0 %1341
        %1343 = vrot.lane.b32.xlu0 %v1306, 28
        %v1344 = vpop.permute.xlu0 %1343
        %1345 = vrot.lane.b32.xlu0 %v1314, 28
        %v1346 = vpop.permute.xlu0 %1345
        %1347 = vrot.lane.b32.xlu0 %v1322, 28
        %v1348 = vpop.permute.xlu0 %1347
        %1349 = vrot.lane.b32.xlu0 %v1330, 28
        %v1350 = vpop.permute.xlu0 %1349
        %vm1361 = vcmask 261344
        %1362 = vst.msk [vmem:[#allocation2] sm:$0xff] %vm1361, %v1332
        %1363 = vst.msk [vmem:[#allocation2 + $0x8] sm:$0xff] %vm1361, %v1334
        %1364 = vst.msk [vmem:[#allocation2 + $0x10] sm:$0xff] %vm1361, %v1336
        %1365 = vst.msk [vmem:[#allocation2 + $0x18] sm:$0xff] %vm1361, %v1338
        %1366 = vst.msk [vmem:[#allocation2 + $0x20] sm:$0xff] %vm1361, %v1340
        %1367 = vst.msk [vmem:[#allocation2 + $0x28] sm:$0xff] %vm1361, %v1342
        %1368 = vst.msk [vmem:[#allocation2 + $0x30] sm:$0xff] %vm1361, %v1344
        %1369 = vst.msk [vmem:[#allocation2 + $0x38] sm:$0xff] %vm1361, %v1346
        %1370 = vst.msk [vmem:[#allocation2 + $0x40] sm:$0xff] %vm1361, %v1348
        %1371 = vst.msk [vmem:[#allocation2 + $0x48] sm:$0xff] %vm1361, %v1350
        %v1372 = vld [vmem:[%s187 + $0x10] sm:$0xe]
        %v1373 = vld [vmem:[%s187 + $0x14] sm:$0xf]
        %v1374 = vld [vmem:[%s187 + $0x18] sm:$0xf]
        %v1375 = vld [vmem:[%s187 + $0x1c] sm:$0xf]
        %v1376 = vld [vmem:[%s187 + $0x20] sm:$0xf]
        %v1377 = vld [vmem:[%s187 + $0x24] sm:$0xf]
        %v1378 = vld [vmem:[%s187 + $0x28] sm:$0xf]
        %v1379 = vld [vmem:[%s187 + $0x2c] sm:$0xf]
        %v1380 = vld [vmem:[%s187 + $0x30] sm:$0xf]
        %v1381 = vld [vmem:[%s187 + $0x34] sm:$0xf]
        %v1382 = vld [vmem:[%s187 + $0x38] sm:$0xf]
        %v1383 = vld [vmem:[%s187 + $0x3c] sm:$0xf]
        %v1384 = vld [vmem:[%s187 + $0x40] sm:$0xf]
        %v1385 = vld [vmem:[%s187 + $0x44] sm:$0xf]
        %v1386 = vld [vmem:[%s187 + $0x48] sm:$0xf]
        %v1387 = vld [vmem:[%s187 + $0x4c] sm:$0xf]
        %v1388 = vld [vmem:[%s187 + $0x50] sm:$0xf]
        %v1389 = vld [vmem:[%s187 + $0x54] sm:$0xf]
        %v1390 = vld [vmem:[%s187 + $0x58] sm:$0xf]
        %v1391 = vld [vmem:[%s187 + $0x5c] sm:$0xf]
        %v1392 = vld [vmem:[%s187 + $0x60] sm:$0x1]
        %v1414 = vunpack.c.l.b16 %v1372
        %v1415 = vunpack.c.l.b16 %v1373
        %v1416 = vunpack.c.l.b16 %v1374
        %v1417 = vunpack.c.l.b16 %v1375
        %v1418 = vunpack.c.l.b16 %v1376
        %v1419 = vunpack.c.l.b16 %v1377
        %v1420 = vunpack.c.l.b16 %v1378
        %v1421 = vunpack.c.l.b16 %v1379
        %v1422 = vunpack.c.l.b16 %v1380
        %v1423 = vunpack.c.l.b16 %v1381
        %v1424 = vunpack.c.l.b16 %v1382
        %v1425 = vunpack.c.l.b16 %v1383
        %v1426 = vunpack.c.l.b16 %v1384
        %v1427 = vunpack.c.l.b16 %v1385
        %v1428 = vunpack.c.l.b16 %v1386
        %v1429 = vunpack.c.l.b16 %v1387
        %v1430 = vunpack.c.l.b16 %v1388
        %v1431 = vunpack.c.l.b16 %v1389
        %v1432 = vunpack.c.l.b16 %v1390
        %v1433 = vunpack.c.l.b16 %v1391
        %v1434 = vunpack.c.l.b16 %v1392
        %v1435 = vpack.c.b16 %v1415, %v1414
        %v1436 = vpack.c.b16 %v1417, %v1416
        %v1437 = vpack.c.b16 %v1419, %v1418
        %v1438 = vpack.c.b16 %v1421, %v1420
        %v1439 = vpack.c.b16 %v1423, %v1422
        %v1440 = vpack.c.b16 %v1425, %v1424
        %v1441 = vpack.c.b16 %v1427, %v1426
        %v1442 = vpack.c.b16 %v1429, %v1428
        %v1443 = vpack.c.b16 %v1431, %v1430
        %v1444 = vpack.c.b16 %v1433, %v1432
        %v1445 = vpack.c.b16 %v1434, %v1434
        %v1446 = vrot.slane %v1435, 1
        %v1447 = vrot.slane %v1436, 1
        %v1448 = vsel %vm553, %v1446, %v1447
        %v1449 = vrot.slane %v1437, 1
        %v1450 = vsel %vm553, %v1447, %v1449
        %v1451 = vrot.slane %v1438, 1
        %v1452 = vsel %vm553, %v1449, %v1451
        %v1453 = vrot.slane %v1439, 1
        %v1454 = vsel %vm553, %v1451, %v1453
        %v1455 = vrot.slane %v1440, 1
        %v1456 = vsel %vm553, %v1453, %v1455
        %v1457 = vrot.slane %v1441, 1
        %v1458 = vsel %vm553, %v1455, %v1457
        %v1459 = vrot.slane %v1442, 1
        %v1460 = vsel %vm553, %v1457, %v1459
        %v1461 = vrot.slane %v1443, 1
        %v1462 = vsel %vm553, %v1459, %v1461
        %v1463 = vrot.slane %v1444, 1
        %v1464 = vsel %vm553, %v1461, %v1463
        %v1465 = vrot.slane %v1445, 1
        %v1466 = vsel %vm553, %v1463, %v1465
        %1467 = vrot.lane.b32.xlu0 %v1448, 32
        %v1468 = vpop.permute.xlu0 %1467
        %1469 = vrot.lane.b32.xlu0 %v1450, 32
        %v1470 = vpop.permute.xlu0 %1469
        %1471 = vrot.lane.b32.xlu0 %v1452, 32
        %v1472 = vpop.permute.xlu0 %1471
        %1473 = vrot.lane.b32.xlu0 %v1454, 32
        %v1474 = vpop.permute.xlu0 %1473
        %1475 = vrot.lane.b32.xlu0 %v1456, 32
        %v1476 = vpop.permute.xlu0 %1475
        %1477 = vrot.lane.b32.xlu0 %v1458, 32
        %v1478 = vpop.permute.xlu0 %1477
        %1479 = vrot.lane.b32.xlu0 %v1460, 32
        %v1480 = vpop.permute.xlu0 %1479
        %1481 = vrot.lane.b32.xlu0 %v1462, 32
        %v1482 = vpop.permute.xlu0 %1481
        %1483 = vrot.lane.b32.xlu0 %v1464, 32
        %v1484 = vpop.permute.xlu0 %1483
        %1485 = vrot.lane.b32.xlu0 %v1466, 32
        %v1486 = vpop.permute.xlu0 %1485
        %vm1497 = vcmask 294144
        %1498 = vst.msk [vmem:[#allocation2] sm:$0xff] %vm1497, %v1468
        %1499 = vst.msk [vmem:[#allocation2 + $0x8] sm:$0xff] %vm1497, %v1470
        %1500 = vst.msk [vmem:[#allocation2 + $0x10] sm:$0xff] %vm1497, %v1472
        %1501 = vst.msk [vmem:[#allocation2 + $0x18] sm:$0xff] %vm1497, %v1474
        %1502 = vst.msk [vmem:[#allocation2 + $0x20] sm:$0xff] %vm1497, %v1476
        %1503 = vst.msk [vmem:[#allocation2 + $0x28] sm:$0xff] %vm1497, %v1478
        %1504 = vst.msk [vmem:[#allocation2 + $0x30] sm:$0xff] %vm1497, %v1480
        %1505 = vst.msk [vmem:[#allocation2 + $0x38] sm:$0xff] %vm1497, %v1482
        %1506 = vst.msk [vmem:[#allocation2 + $0x40] sm:$0xff] %vm1497, %v1484
        %1507 = vst.msk [vmem:[#allocation2 + $0x48] sm:$0xff] %vm1497, %v1486
        %s1508 = sadd.s32 %s22, 1
        %s1509 = smul.u32 %s1508, 26
        %s1510 = smul.addr %s1509, 4
        %s1511 = scalar_lea.vmem %s182, %s1510
        %v1512 = vld [vmem:[%s1511] sm:$0xf]
        %v1513 = vld [vmem:[%s1511 + $0x4] sm:$0xf]
        %v1514 = vld [vmem:[%s1511 + $0x8] sm:$0xf]
        %v1515 = vld [vmem:[%s1511 + $0xc] sm:$0xf]
        %v1516 = vld [vmem:[%s1511 + $0x10] sm:$0xf]
        %v1517 = vld [vmem:[%s1511 + $0x14] sm:$0xf]
        %v1518 = vld [vmem:[%s1511 + $0x18] sm:$0xf]
        %v1519 = vld [vmem:[%s1511 + $0x1c] sm:$0xf]
        %v1520 = vld [vmem:[%s1511 + $0x20] sm:$0xf]
        %v1521 = vld [vmem:[%s1511 + $0x24] sm:$0xf]
        %v1522 = vld [vmem:[%s1511 + $0x28] sm:$0xf]
        %v1523 = vld [vmem:[%s1511 + $0x2c] sm:$0xf]
        %v1524 = vld [vmem:[%s1511 + $0x30] sm:$0xf]
        %v1525 = vld [vmem:[%s1511 + $0x34] sm:$0xf]
        %v1526 = vld [vmem:[%s1511 + $0x38] sm:$0xf]
        %v1527 = vld [vmem:[%s1511 + $0x3c] sm:$0xf]
        %v1528 = vld [vmem:[%s1511 + $0x40] sm:$0xf]
        %v1529 = vld [vmem:[%s1511 + $0x44] sm:$0xf]
        %v1530 = vld [vmem:[%s1511 + $0x48] sm:$0xf]
        %v1531 = vld [vmem:[%s1511 + $0x4c] sm:$0xf]
        %v1552 = vunpack.c.l.b16 %v1512
        %v1553 = vunpack.c.l.b16 %v1513
        %v1554 = vunpack.c.l.b16 %v1514
        %v1555 = vunpack.c.l.b16 %v1515
        %v1556 = vunpack.c.l.b16 %v1516
        %v1557 = vunpack.c.l.b16 %v1517
        %v1558 = vunpack.c.l.b16 %v1518
        %v1559 = vunpack.c.l.b16 %v1519
        %v1560 = vunpack.c.l.b16 %v1520
        %v1561 = vunpack.c.l.b16 %v1521
        %v1562 = vunpack.c.l.b16 %v1522
        %v1563 = vunpack.c.l.b16 %v1523
        %v1564 = vunpack.c.l.b16 %v1524
        %v1565 = vunpack.c.l.b16 %v1525
        %v1566 = vunpack.c.l.b16 %v1526
        %v1567 = vunpack.c.l.b16 %v1527
        %v1568 = vunpack.c.l.b16 %v1528
        %v1569 = vunpack.c.l.b16 %v1529
        %v1570 = vunpack.c.l.b16 %v1530
        %v1571 = vunpack.c.l.b16 %v1531
        %v1572 = vpack.c.b16 %v1553, %v1552
        %v1573 = vpack.c.b16 %v1555, %v1554
        %v1574 = vpack.c.b16 %v1557, %v1556
        %v1575 = vpack.c.b16 %v1559, %v1558
        %v1576 = vpack.c.b16 %v1561, %v1560
        %v1577 = vpack.c.b16 %v1563, %v1562
        %v1578 = vpack.c.b16 %v1565, %v1564
        %v1579 = vpack.c.b16 %v1567, %v1566
        %v1580 = vpack.c.b16 %v1569, %v1568
        %v1581 = vpack.c.b16 %v1571, %v1570
        %1582 = vrot.lane.b32.xlu0 %v1572, 36
        %v1583 = vpop.permute.xlu0 %1582
        %1584 = vrot.lane.b32.xlu0 %v1573, 36
        %v1585 = vpop.permute.xlu0 %1584
        %1586 = vrot.lane.b32.xlu0 %v1574, 36
        %v1587 = vpop.permute.xlu0 %1586
        %1588 = vrot.lane.b32.xlu0 %v1575, 36
        %v1589 = vpop.permute.xlu0 %1588
        %1590 = vrot.lane.b32.xlu0 %v1576, 36
        %v1591 = vpop.permute.xlu0 %1590
        %1592 = vrot.lane.b32.xlu0 %v1577, 36
        %v1593 = vpop.permute.xlu0 %1592
        %1594 = vrot.lane.b32.xlu0 %v1578, 36
        %v1595 = vpop.permute.xlu0 %1594
        %1596 = vrot.lane.b32.xlu0 %v1579, 36
        %v1597 = vpop.permute.xlu0 %1596
        %1598 = vrot.lane.b32.xlu0 %v1580, 36
        %v1599 = vpop.permute.xlu0 %1598
        %1600 = vrot.lane.b32.xlu0 %v1581, 36
        %v1601 = vpop.permute.xlu0 %1600
        %vm1612 = vcmask 326944
        %1613 = vst.msk [vmem:[#allocation2] sm:$0xff] %vm1612, %v1583
        %1614 = vst.msk [vmem:[#allocation2 + $0x8] sm:$0xff] %vm1612, %v1585
        %1615 = vst.msk [vmem:[#allocation2 + $0x10] sm:$0xff] %vm1612, %v1587
        %1616 = vst.msk [vmem:[#allocation2 + $0x18] sm:$0xff] %vm1612, %v1589
        %1617 = vst.msk [vmem:[#allocation2 + $0x20] sm:$0xff] %vm1612, %v1591
        %1618 = vst.msk [vmem:[#allocation2 + $0x28] sm:$0xff] %vm1612, %v1593
        %1619 = vst.msk [vmem:[#allocation2 + $0x30] sm:$0xff] %vm1612, %v1595
        %1620 = vst.msk [vmem:[#allocation2 + $0x38] sm:$0xff] %vm1612, %v1597
        %1621 = vst.msk [vmem:[#allocation2 + $0x40] sm:$0xff] %vm1612, %v1599
        %1622 = vst.msk [vmem:[#allocation2 + $0x48] sm:$0xff] %vm1612, %v1601
        %v1623 = vld [vmem:[%s1511] sm:$0xf]
        %v1624 = vld [vmem:[%s1511 + $0x4] sm:$0xf]
        %v1625 = vld [vmem:[%s1511 + $0x8] sm:$0xf]
        %v1626 = vld [vmem:[%s1511 + $0xc] sm:$0xf]
        %v1627 = vld [vmem:[%s1511 + $0x10] sm:$0xf]
        %v1628 = vld [vmem:[%s1511 + $0x14] sm:$0xf]
        %v1629 = vld [vmem:[%s1511 + $0x18] sm:$0xf]
        %v1630 = vld [vmem:[%s1511 + $0x1c] sm:$0xf]
        %v1631 = vld [vmem:[%s1511 + $0x20] sm:$0xf]
        %v1632 = vld [vmem:[%s1511 + $0x24] sm:$0xf]
        %v1633 = vld [vmem:[%s1511 + $0x28] sm:$0xf]
        %v1634 = vld [vmem:[%s1511 + $0x2c] sm:$0xf]
        %v1635 = vld [vmem:[%s1511 + $0x30] sm:$0xf]
        %v1636 = vld [vmem:[%s1511 + $0x34] sm:$0xf]
        %v1637 = vld [vmem:[%s1511 + $0x38] sm:$0xf]
        %v1638 = vld [vmem:[%s1511 + $0x3c] sm:$0xf]
        %v1639 = vld [vmem:[%s1511 + $0x40] sm:$0xf]
        %v1640 = vld [vmem:[%s1511 + $0x44] sm:$0xf]
        %v1641 = vld [vmem:[%s1511 + $0x48] sm:$0xf]
        %v1642 = vld [vmem:[%s1511 + $0x4c] sm:$0xf]
        %v1643 = vld [vmem:[%s1511 + $0x50] sm:$0x1]
        %v1665 = vunpack.c.l.b16 %v1623
        %v1666 = vunpack.c.l.b16 %v1624
        %v1667 = vunpack.c.l.b16 %v1625
        %v1668 = vunpack.c.l.b16 %v1626
        %v1669 = vunpack.c.l.b16 %v1627
        %v1670 = vunpack.c.l.b16 %v1628
        %v1671 = vunpack.c.l.b16 %v1629
        %v1672 = vunpack.c.l.b16 %v1630
        %v1673 = vunpack.c.l.b16 %v1631
        %v1674 = vunpack.c.l.b16 %v1632
        %v1675 = vunpack.c.l.b16 %v1633
        %v1676 = vunpack.c.l.b16 %v1634
        %v1677 = vunpack.c.l.b16 %v1635
        %v1678 = vunpack.c.l.b16 %v1636
        %v1679 = vunpack.c.l.b16 %v1637
        %v1680 = vunpack.c.l.b16 %v1638
        %v1681 = vunpack.c.l.b16 %v1639
        %v1682 = vunpack.c.l.b16 %v1640
        %v1683 = vunpack.c.l.b16 %v1641
        %v1684 = vunpack.c.l.b16 %v1642
        %v1685 = vunpack.c.l.b16 %v1643
        %v1686 = vpack.c.b16 %v1666, %v1665
        %v1687 = vpack.c.b16 %v1668, %v1667
        %v1688 = vpack.c.b16 %v1670, %v1669
        %v1689 = vpack.c.b16 %v1672, %v1671
        %v1690 = vpack.c.b16 %v1674, %v1673
        %v1691 = vpack.c.b16 %v1676, %v1675
        %v1692 = vpack.c.b16 %v1678, %v1677
        %v1693 = vpack.c.b16 %v1680, %v1679
        %v1694 = vpack.c.b16 %v1682, %v1681
        %v1695 = vpack.c.b16 %v1684, %v1683
        %v1696 = vpack.c.b16 %v1685, %v1685
        %v1698 = vshrl.u32 %v1686, 16
        %v1700 = vshll.u32 %v1686, 16
        %v1702 = vrot.slane %v1700, 1
        %v1703 = vor.u32 %v1698, %v1702
        %v1705 = vshll.u32 %v1687, 16
        %v1707 = vrot.slane %v1705, 1
        %v1708 = vsel %vm353, %v1703, %v1707
        %v1709 = vshrl.u32 %v1687, 16
        %v1711 = vor.u32 %v1709, %v1707
        %v1713 = vshll.u32 %v1688, 16
        %v1715 = vrot.slane %v1713, 1
        %v1716 = vsel %vm353, %v1711, %v1715
        %v1717 = vshrl.u32 %v1688, 16
        %v1719 = vor.u32 %v1717, %v1715
        %v1721 = vshll.u32 %v1689, 16
        %v1723 = vrot.slane %v1721, 1
        %v1724 = vsel %vm353, %v1719, %v1723
        %v1725 = vshrl.u32 %v1689, 16
        %v1727 = vor.u32 %v1725, %v1723
        %v1729 = vshll.u32 %v1690, 16
        %v1731 = vrot.slane %v1729, 1
        %v1732 = vsel %vm353, %v1727, %v1731
        %v1733 = vshrl.u32 %v1690, 16
        %v1735 = vor.u32 %v1733, %v1731
        %v1737 = vshll.u32 %v1691, 16
        %v1739 = vrot.slane %v1737, 1
        %v1740 = vsel %vm353, %v1735, %v1739
        %v1741 = vshrl.u32 %v1691, 16
        %v1743 = vor.u32 %v1741, %v1739
        %v1745 = vshll.u32 %v1692, 16
        %v1747 = vrot.slane %v1745, 1
        %v1748 = vsel %vm353, %v1743, %v1747
        %v1749 = vshrl.u32 %v1692, 16
        %v1751 = vor.u32 %v1749, %v1747
        %v1753 = vshll.u32 %v1693, 16
        %v1755 = vrot.slane %v1753, 1
        %v1756 = vsel %vm353, %v1751, %v1755
        %v1757 = vshrl.u32 %v1693, 16
        %v1759 = vor.u32 %v1757, %v1755
        %v1761 = vshll.u32 %v1694, 16
        %v1763 = vrot.slane %v1761, 1
        %v1764 = vsel %vm353, %v1759, %v1763
        %v1765 = vshrl.u32 %v1694, 16
        %v1767 = vor.u32 %v1765, %v1763
        %v1769 = vshll.u32 %v1695, 16
        %v1771 = vrot.slane %v1769, 1
        %v1772 = vsel %vm353, %v1767, %v1771
        %v1773 = vshrl.u32 %v1695, 16
        %v1775 = vor.u32 %v1773, %v1771
        %v1777 = vshll.u32 %v1696, 16
        %v1779 = vrot.slane %v1777, 1
        %v1780 = vsel %vm353, %v1775, %v1779
        %1781 = vrot.lane.b32.xlu0 %v1708, 40
        %v1782 = vpop.permute.xlu0 %1781
        %1783 = vrot.lane.b32.xlu0 %v1716, 40
        %v1784 = vpop.permute.xlu0 %1783
        %1785 = vrot.lane.b32.xlu0 %v1724, 40
        %v1786 = vpop.permute.xlu0 %1785
        %1787 = vrot.lane.b32.xlu0 %v1732, 40
        %v1788 = vpop.permute.xlu0 %1787
        %1789 = vrot.lane.b32.xlu0 %v1740, 40
        %v1790 = vpop.permute.xlu0 %1789
        %1791 = vrot.lane.b32.xlu0 %v1748, 40
        %v1792 = vpop.permute.xlu0 %1791
        %1793 = vrot.lane.b32.xlu0 %v1756, 40
        %v1794 = vpop.permute.xlu0 %1793
        %1795 = vrot.lane.b32.xlu0 %v1764, 40
        %v1796 = vpop.permute.xlu0 %1795
        %1797 = vrot.lane.b32.xlu0 %v1772, 40
        %v1798 = vpop.permute.xlu0 %1797
        %1799 = vrot.lane.b32.xlu0 %v1780, 40
        %v1800 = vpop.permute.xlu0 %1799
        %vm1811 = vcmask 359744
        %1812 = vst.msk [vmem:[#allocation2] sm:$0xff] %vm1811, %v1782
        %1813 = vst.msk [vmem:[#allocation2 + $0x8] sm:$0xff] %vm1811, %v1784
        %1814 = vst.msk [vmem:[#allocation2 + $0x10] sm:$0xff] %vm1811, %v1786
        %1815 = vst.msk [vmem:[#allocation2 + $0x18] sm:$0xff] %vm1811, %v1788
        %1816 = vst.msk [vmem:[#allocation2 + $0x20] sm:$0xff] %vm1811, %v1790
        %1817 = vst.msk [vmem:[#allocation2 + $0x28] sm:$0xff] %vm1811, %v1792
        %1818 = vst.msk [vmem:[#allocation2 + $0x30] sm:$0xff] %vm1811, %v1794
        %1819 = vst.msk [vmem:[#allocation2 + $0x38] sm:$0xff] %vm1811, %v1796
        %1820 = vst.msk [vmem:[#allocation2 + $0x40] sm:$0xff] %vm1811, %v1798
        %1821 = vst.msk [vmem:[#allocation2 + $0x48] sm:$0xff] %vm1811, %v1800
        %v1822 = vld [vmem:[%s1511] sm:$0xe]
        %v1823 = vld [vmem:[%s1511 + $0x4] sm:$0xf]
        %v1824 = vld [vmem:[%s1511 + $0x8] sm:$0xf]
        %v1825 = vld [vmem:[%s1511 + $0xc] sm:$0xf]
        %v1826 = vld [vmem:[%s1511 + $0x10] sm:$0xf]
        %v1827 = vld [vmem:[%s1511 + $0x14] sm:$0xf]
        %v1828 = vld [vmem:[%s1511 + $0x18] sm:$0xf]
        %v1829 = vld [vmem:[%s1511 + $0x1c] sm:$0xf]
        %v1830 = vld [vmem:[%s1511 + $0x20] sm:$0xf]
        %v1831 = vld [vmem:[%s1511 + $0x24] sm:$0xf]
        %v1832 = vld [vmem:[%s1511 + $0x28] sm:$0xf]
        %v1833 = vld [vmem:[%s1511 + $0x2c] sm:$0xf]
        %v1834 = vld [vmem:[%s1511 + $0x30] sm:$0xf]
        %v1835 = vld [vmem:[%s1511 + $0x34] sm:$0xf]
        %v1836 = vld [vmem:[%s1511 + $0x38] sm:$0xf]
        %v1837 = vld [vmem:[%s1511 + $0x3c] sm:$0xf]
        %v1838 = vld [vmem:[%s1511 + $0x40] sm:$0xf]
        %v1839 = vld [vmem:[%s1511 + $0x44] sm:$0xf]
        %v1840 = vld [vmem:[%s1511 + $0x48] sm:$0xf]
        %v1841 = vld [vmem:[%s1511 + $0x4c] sm:$0xf]
        %v1842 = vld [vmem:[%s1511 + $0x50] sm:$0x1]
        %v1864 = vunpack.c.l.b16 %v1822
        %v1865 = vunpack.c.l.b16 %v1823
        %v1866 = vunpack.c.l.b16 %v1824
        %v1867 = vunpack.c.l.b16 %v1825
        %v1868 = vunpack.c.l.b16 %v1826
        %v1869 = vunpack.c.l.b16 %v1827
        %v1870 = vunpack.c.l.b16 %v1828
        %v1871 = vunpack.c.l.b16 %v1829
        %v1872 = vunpack.c.l.b16 %v1830
        %v1873 = vunpack.c.l.b16 %v1831
        %v1874 = vunpack.c.l.b16 %v1832
        %v1875 = vunpack.c.l.b16 %v1833
        %v1876 = vunpack.c.l.b16 %v1834
        %v1877 = vunpack.c.l.b16 %v1835
        %v1878 = vunpack.c.l.b16 %v1836
        %v1879 = vunpack.c.l.b16 %v1837
        %v1880 = vunpack.c.l.b16 %v1838
        %v1881 = vunpack.c.l.b16 %v1839
        %v1882 = vunpack.c.l.b16 %v1840
        %v1883 = vunpack.c.l.b16 %v1841
        %v1884 = vunpack.c.l.b16 %v1842
        %v1885 = vpack.c.b16 %v1865, %v1864
        %v1886 = vpack.c.b16 %v1867, %v1866
        %v1887 = vpack.c.b16 %v1869, %v1868
        %v1888 = vpack.c.b16 %v1871, %v1870
        %v1889 = vpack.c.b16 %v1873, %v1872
        %v1890 = vpack.c.b16 %v1875, %v1874
        %v1891 = vpack.c.b16 %v1877, %v1876
        %v1892 = vpack.c.b16 %v1879, %v1878
        %v1893 = vpack.c.b16 %v1881, %v1880
        %v1894 = vpack.c.b16 %v1883, %v1882
        %v1895 = vpack.c.b16 %v1884, %v1884
        %v1896 = vrot.slane %v1885, 1
        %v1897 = vrot.slane %v1886, 1
        %v1898 = vsel %vm553, %v1896, %v1897
        %v1899 = vrot.slane %v1887, 1
        %v1900 = vsel %vm553, %v1897, %v1899
        %v1901 = vrot.slane %v1888, 1
        %v1902 = vsel %vm553, %v1899, %v1901
        %v1903 = vrot.slane %v1889, 1
        %v1904 = vsel %vm553, %v1901, %v1903
        %v1905 = vrot.slane %v1890, 1
        %v1906 = vsel %vm553, %v1903, %v1905
        %v1907 = vrot.slane %v1891, 1
        %v1908 = vsel %vm553, %v1905, %v1907
        %v1909 = vrot.slane %v1892, 1
        %v1910 = vsel %vm553, %v1907, %v1909
        %v1911 = vrot.slane %v1893, 1
        %v1912 = vsel %vm553, %v1909, %v1911
        %v1913 = vrot.slane %v1894, 1
        %v1914 = vsel %vm553, %v1911, %v1913
        %v1915 = vrot.slane %v1895, 1
        %v1916 = vsel %vm553, %v1913, %v1915
        %1917 = vrot.lane.b32.xlu0 %v1898, 44
        %v1918 = vpop.permute.xlu0 %1917
        %1919 = vrot.lane.b32.xlu0 %v1900, 44
        %v1920 = vpop.permute.xlu0 %1919
        %1921 = vrot.lane.b32.xlu0 %v1902, 44
        %v1922 = vpop.permute.xlu0 %1921
        %1923 = vrot.lane.b32.xlu0 %v1904, 44
        %v1924 = vpop.permute.xlu0 %1923
        %1925 = vrot.lane.b32.xlu0 %v1906, 44
        %v1926 = vpop.permute.xlu0 %1925
        %1927 = vrot.lane.b32.xlu0 %v1908, 44
        %v1928 = vpop.permute.xlu0 %1927
        %1929 = vrot.lane.b32.xlu0 %v1910, 44
        %v1930 = vpop.permute.xlu0 %1929
        %1931 = vrot.lane.b32.xlu0 %v1912, 44
        %v1932 = vpop.permute.xlu0 %1931
        %1933 = vrot.lane.b32.xlu0 %v1914, 44
        %v1934 = vpop.permute.xlu0 %1933
        %1935 = vrot.lane.b32.xlu0 %v1916, 44
        %v1936 = vpop.permute.xlu0 %1935
        %vm1947 = vcmask 392544
        %1948 = vst.msk [vmem:[#allocation2] sm:$0xff] %vm1947, %v1918
        %1949 = vst.msk [vmem:[#allocation2 + $0x8] sm:$0xff] %vm1947, %v1920
        %1950 = vst.msk [vmem:[#allocation2 + $0x10] sm:$0xff] %vm1947, %v1922
        %1951 = vst.msk [vmem:[#allocation2 + $0x18] sm:$0xff] %vm1947, %v1924
        %1952 = vst.msk [vmem:[#allocation2 + $0x20] sm:$0xff] %vm1947, %v1926
        %1953 = vst.msk [vmem:[#allocation2 + $0x28] sm:$0xff] %vm1947, %v1928
        %1954 = vst.msk [vmem:[#allocation2 + $0x30] sm:$0xff] %vm1947, %v1930
        %1955 = vst.msk [vmem:[#allocation2 + $0x38] sm:$0xff] %vm1947, %v1932
        %1956 = vst.msk [vmem:[#allocation2 + $0x40] sm:$0xff] %vm1947, %v1934
        %1957 = vst.msk [vmem:[#allocation2 + $0x48] sm:$0xff] %vm1947, %v1936
        %v1958 = vld [vmem:[%s1511 + $0x8] sm:$0xf]
        %v1959 = vld [vmem:[%s1511 + $0xc] sm:$0xf]
        %v1960 = vld [vmem:[%s1511 + $0x10] sm:$0xf]
        %v1961 = vld [vmem:[%s1511 + $0x14] sm:$0xf]
        %v1962 = vld [vmem:[%s1511 + $0x18] sm:$0xf]
        %v1963 = vld [vmem:[%s1511 + $0x1c] sm:$0xf]
        %v1964 = vld [vmem:[%s1511 + $0x20] sm:$0xf]
        %v1965 = vld [vmem:[%s1511 + $0x24] sm:$0xf]
        %v1966 = vld [vmem:[%s1511 + $0x28] sm:$0xf]
        %v1967 = vld [vmem:[%s1511 + $0x2c] sm:$0xf]
        %v1968 = vld [vmem:[%s1511 + $0x30] sm:$0xf]
        %v1969 = vld [vmem:[%s1511 + $0x34] sm:$0xf]
        %v1970 = vld [vmem:[%s1511 + $0x38] sm:$0xf]
        %v1971 = vld [vmem:[%s1511 + $0x3c] sm:$0xf]
        %v1972 = vld [vmem:[%s1511 + $0x40] sm:$0xf]
        %v1973 = vld [vmem:[%s1511 + $0x44] sm:$0xf]
        %v1974 = vld [vmem:[%s1511 + $0x48] sm:$0xf]
        %v1975 = vld [vmem:[%s1511 + $0x4c] sm:$0xf]
        %v1976 = vld [vmem:[%s1511 + $0x50] sm:$0xf]
        %v1977 = vld [vmem:[%s1511 + $0x54] sm:$0xf]
        %v1998 = vunpack.c.l.b16 %v1958
        %v1999 = vunpack.c.l.b16 %v1959
        %v2000 = vunpack.c.l.b16 %v1960
        %v2001 = vunpack.c.l.b16 %v1961
        %v2002 = vunpack.c.l.b16 %v1962
        %v2003 = vunpack.c.l.b16 %v1963
        %v2004 = vunpack.c.l.b16 %v1964
        %v2005 = vunpack.c.l.b16 %v1965
        %v2006 = vunpack.c.l.b16 %v1966
        %v2007 = vunpack.c.l.b16 %v1967
        %v2008 = vunpack.c.l.b16 %v1968
        %v2009 = vunpack.c.l.b16 %v1969
        %v2010 = vunpack.c.l.b16 %v1970
        %v2011 = vunpack.c.l.b16 %v1971
        %v2012 = vunpack.c.l.b16 %v1972
        %v2013 = vunpack.c.l.b16 %v1973
        %v2014 = vunpack.c.l.b16 %v1974
        %v2015 = vunpack.c.l.b16 %v1975
        %v2016 = vunpack.c.l.b16 %v1976
        %v2017 = vunpack.c.l.b16 %v1977
        %v2018 = vpack.c.b16 %v1999, %v1998
        %v2019 = vpack.c.b16 %v2001, %v2000
        %v2020 = vpack.c.b16 %v2003, %v2002
        %v2021 = vpack.c.b16 %v2005, %v2004
        %v2022 = vpack.c.b16 %v2007, %v2006
        %v2023 = vpack.c.b16 %v2009, %v2008
        %v2024 = vpack.c.b16 %v2011, %v2010
        %v2025 = vpack.c.b16 %v2013, %v2012
        %v2026 = vpack.c.b16 %v2015, %v2014
        %v2027 = vpack.c.b16 %v2017, %v2016
        %2028 = vrot.lane.b32.xlu0 %v2018, 48
        %v2029 = vpop.permute.xlu0 %2028
        %2030 = vrot.lane.b32.xlu0 %v2019, 48
        %v2031 = vpop.permute.xlu0 %2030
        %2032 = vrot.lane.b32.xlu0 %v2020, 48
        %v2033 = vpop.permute.xlu0 %2032
        %2034 = vrot.lane.b32.xlu0 %v2021, 48
        %v2035 = vpop.permute.xlu0 %2034
        %2036 = vrot.lane.b32.xlu0 %v2022, 48
        %v2037 = vpop.permute.xlu0 %2036
        %2038 = vrot.lane.b32.xlu0 %v2023, 48
        %v2039 = vpop.permute.xlu0 %2038
        %2040 = vrot.lane.b32.xlu0 %v2024, 48
        %v2041 = vpop.permute.xlu0 %2040
        %2042 = vrot.lane.b32.xlu0 %v2025, 48
        %v2043 = vpop.permute.xlu0 %2042
        %2044 = vrot.lane.b32.xlu0 %v2026, 48
        %v2045 = vpop.permute.xlu0 %2044
        %2046 = vrot.lane.b32.xlu0 %v2027, 48
        %v2047 = vpop.permute.xlu0 %2046
        %vm2058 = vcmask 425344
        %2059 = vst.msk [vmem:[#allocation2] sm:$0xff] %vm2058, %v2029
        %2060 = vst.msk [vmem:[#allocation2 + $0x8] sm:$0xff] %vm2058, %v2031
        %2061 = vst.msk [vmem:[#allocation2 + $0x10] sm:$0xff] %vm2058, %v2033
        %2062 = vst.msk [vmem:[#allocation2 + $0x18] sm:$0xff] %vm2058, %v2035
        %2063 = vst.msk [vmem:[#allocation2 + $0x20] sm:$0xff] %vm2058, %v2037
        %2064 = vst.msk [vmem:[#allocation2 + $0x28] sm:$0xff] %vm2058, %v2039
        %2065 = vst.msk [vmem:[#allocation2 + $0x30] sm:$0xff] %vm2058, %v2041
        %2066 = vst.msk [vmem:[#allocation2 + $0x38] sm:$0xff] %vm2058, %v2043
        %2067 = vst.msk [vmem:[#allocation2 + $0x40] sm:$0xff] %vm2058, %v2045
        %2068 = vst.msk [vmem:[#allocation2 + $0x48] sm:$0xff] %vm2058, %v2047
        %v2069 = vld [vmem:[%s1511 + $0x8] sm:$0xf]
        %v2070 = vld [vmem:[%s1511 + $0xc] sm:$0xf]
        %v2071 = vld [vmem:[%s1511 + $0x10] sm:$0xf]
        %v2072 = vld [vmem:[%s1511 + $0x14] sm:$0xf]
        %v2073 = vld [vmem:[%s1511 + $0x18] sm:$0xf]
        %v2074 = vld [vmem:[%s1511 + $0x1c] sm:$0xf]
        %v2075 = vld [vmem:[%s1511 + $0x20] sm:$0xf]
        %v2076 = vld [vmem:[%s1511 + $0x24] sm:$0xf]
        %v2077 = vld [vmem:[%s1511 + $0x28] sm:$0xf]
        %v2078 = vld [vmem:[%s1511 + $0x2c] sm:$0xf]
        %v2079 = vld [vmem:[%s1511 + $0x30] sm:$0xf]
        %v2080 = vld [vmem:[%s1511 + $0x34] sm:$0xf]
        %v2081 = vld [vmem:[%s1511 + $0x38] sm:$0xf]
        %v2082 = vld [vmem:[%s1511 + $0x3c] sm:$0xf]
        %v2083 = vld [vmem:[%s1511 + $0x40] sm:$0xf]
        %v2084 = vld [vmem:[%s1511 + $0x44] sm:$0xf]
        %v2085 = vld [vmem:[%s1511 + $0x48] sm:$0xf]
        %v2086 = vld [vmem:[%s1511 + $0x4c] sm:$0xf]
        %v2087 = vld [vmem:[%s1511 + $0x50] sm:$0xf]
        %v2088 = vld [vmem:[%s1511 + $0x54] sm:$0xf]
        %v2089 = vld [vmem:[%s1511 + $0x58] sm:$0x1]
        %v2111 = vunpack.c.l.b16 %v2069
        %v2112 = vunpack.c.l.b16 %v2070
        %v2113 = vunpack.c.l.b16 %v2071
        %v2114 = vunpack.c.l.b16 %v2072
        %v2115 = vunpack.c.l.b16 %v2073
        %v2116 = vunpack.c.l.b16 %v2074
        %v2117 = vunpack.c.l.b16 %v2075
        %v2118 = vunpack.c.l.b16 %v2076
        %v2119 = vunpack.c.l.b16 %v2077
        %v2120 = vunpack.c.l.b16 %v2078
        %v2121 = vunpack.c.l.b16 %v2079
        %v2122 = vunpack.c.l.b16 %v2080
        %v2123 = vunpack.c.l.b16 %v2081
        %v2124 = vunpack.c.l.b16 %v2082
        %v2125 = vunpack.c.l.b16 %v2083
        %v2126 = vunpack.c.l.b16 %v2084
        %v2127 = vunpack.c.l.b16 %v2085
        %v2128 = vunpack.c.l.b16 %v2086
        %v2129 = vunpack.c.l.b16 %v2087
        %v2130 = vunpack.c.l.b16 %v2088
        %v2131 = vunpack.c.l.b16 %v2089
        %v2132 = vpack.c.b16 %v2112, %v2111
        %v2133 = vpack.c.b16 %v2114, %v2113
        %v2134 = vpack.c.b16 %v2116, %v2115
        %v2135 = vpack.c.b16 %v2118, %v2117
        %v2136 = vpack.c.b16 %v2120, %v2119
        %v2137 = vpack.c.b16 %v2122, %v2121
        %v2138 = vpack.c.b16 %v2124, %v2123
        %v2139 = vpack.c.b16 %v2126, %v2125
        %v2140 = vpack.c.b16 %v2128, %v2127
        %v2141 = vpack.c.b16 %v2130, %v2129
        %v2142 = vpack.c.b16 %v2131, %v2131
        %v2144 = vshrl.u32 %v2132, 16
        %v2146 = vshll.u32 %v2132, 16
        %v2148 = vrot.slane %v2146, 1
        %v2149 = vor.u32 %v2144, %v2148
        %v2151 = vshll.u32 %v2133, 16
        %v2153 = vrot.slane %v2151, 1
        %v2154 = vsel %vm353, %v2149, %v2153
        %v2155 = vshrl.u32 %v2133, 16
        %v2157 = vor.u32 %v2155, %v2153
        %v2159 = vshll.u32 %v2134, 16
        %v2161 = vrot.slane %v2159, 1
        %v2162 = vsel %vm353, %v2157, %v2161
        %v2163 = vshrl.u32 %v2134, 16
        %v2165 = vor.u32 %v2163, %v2161
        %v2167 = vshll.u32 %v2135, 16
        %v2169 = vrot.slane %v2167, 1
        %v2170 = vsel %vm353, %v2165, %v2169
        %v2171 = vshrl.u32 %v2135, 16
        %v2173 = vor.u32 %v2171, %v2169
        %v2175 = vshll.u32 %v2136, 16
        %v2177 = vrot.slane %v2175, 1
        %v2178 = vsel %vm353, %v2173, %v2177
        %v2179 = vshrl.u32 %v2136, 16
        %v2181 = vor.u32 %v2179, %v2177
        %v2183 = vshll.u32 %v2137, 16
        %v2185 = vrot.slane %v2183, 1
        %v2186 = vsel %vm353, %v2181, %v2185
        %v2187 = vshrl.u32 %v2137, 16
        %v2189 = vor.u32 %v2187, %v2185
        %v2191 = vshll.u32 %v2138, 16
        %v2193 = vrot.slane %v2191, 1
        %v2194 = vsel %vm353, %v2189, %v2193
        %v2195 = vshrl.u32 %v2138, 16
        %v2197 = vor.u32 %v2195, %v2193
        %v2199 = vshll.u32 %v2139, 16
        %v2201 = vrot.slane %v2199, 1
        %v2202 = vsel %vm353, %v2197, %v2201
        %v2203 = vshrl.u32 %v2139, 16
        %v2205 = vor.u32 %v2203, %v2201
        %v2207 = vshll.u32 %v2140, 16
        %v2209 = vrot.slane %v2207, 1
        %v2210 = vsel %vm353, %v2205, %v2209
        %v2211 = vshrl.u32 %v2140, 16
        %v2213 = vor.u32 %v2211, %v2209
        %v2215 = vshll.u32 %v2141, 16
        %v2217 = vrot.slane %v2215, 1
        %v2218 = vsel %vm353, %v2213, %v2217
        %v2219 = vshrl.u32 %v2141, 16
        %v2221 = vor.u32 %v2219, %v2217
        %v2223 = vshll.u32 %v2142, 16
        %v2225 = vrot.slane %v2223, 1
        %v2226 = vsel %vm353, %v2221, %v2225
        %2227 = vrot.lane.b32.xlu0 %v2154, 52
        %v2228 = vpop.permute.xlu0 %2227
        %2229 = vrot.lane.b32.xlu0 %v2162, 52
        %v2230 = vpop.permute.xlu0 %2229
        %2231 = vrot.lane.b32.xlu0 %v2170, 52
        %v2232 = vpop.permute.xlu0 %2231
        %2233 = vrot.lane.b32.xlu0 %v2178, 52
        %v2234 = vpop.permute.xlu0 %2233
        %2235 = vrot.lane.b32.xlu0 %v2186, 52
        %v2236 = vpop.permute.xlu0 %2235
        %2237 = vrot.lane.b32.xlu0 %v2194, 52
        %v2238 = vpop.permute.xlu0 %2237
        %2239 = vrot.lane.b32.xlu0 %v2202, 52
        %v2240 = vpop.permute.xlu0 %2239
        %2241 = vrot.lane.b32.xlu0 %v2210, 52
        %v2242 = vpop.permute.xlu0 %2241
        %2243 = vrot.lane.b32.xlu0 %v2218, 52
        %v2244 = vpop.permute.xlu0 %2243
        %2245 = vrot.lane.b32.xlu0 %v2226, 52
        %v2246 = vpop.permute.xlu0 %2245
        %vm2257 = vcmask 458144
        %2258 = vst.msk [vmem:[#allocation2] sm:$0xff] %vm2257, %v2228
        %2259 = vst.msk [vmem:[#allocation2 + $0x8] sm:$0xff] %vm2257, %v2230
        %2260 = vst.msk [vmem:[#allocation2 + $0x10] sm:$0xff] %vm2257, %v2232
        %2261 = vst.msk [vmem:[#allocation2 + $0x18] sm:$0xff] %vm2257, %v2234
        %2262 = vst.msk [vmem:[#allocation2 + $0x20] sm:$0xff] %vm2257, %v2236
        %2263 = vst.msk [vmem:[#allocation2 + $0x28] sm:$0xff] %vm2257, %v2238
        %2264 = vst.msk [vmem:[#allocation2 + $0x30] sm:$0xff] %vm2257, %v2240
        %2265 = vst.msk [vmem:[#allocation2 + $0x38] sm:$0xff] %vm2257, %v2242
        %2266 = vst.msk [vmem:[#allocation2 + $0x40] sm:$0xff] %vm2257, %v2244
        %2267 = vst.msk [vmem:[#allocation2 + $0x48] sm:$0xff] %vm2257, %v2246
        %v2268 = vld [vmem:[%s1511 + $0x8] sm:$0xe]
        %v2269 = vld [vmem:[%s1511 + $0xc] sm:$0xf]
        %v2270 = vld [vmem:[%s1511 + $0x10] sm:$0xf]
        %v2271 = vld [vmem:[%s1511 + $0x14] sm:$0xf]
        %v2272 = vld [vmem:[%s1511 + $0x18] sm:$0xf]
        %v2273 = vld [vmem:[%s1511 + $0x1c] sm:$0xf]
        %v2274 = vld [vmem:[%s1511 + $0x20] sm:$0xf]
        %v2275 = vld [vmem:[%s1511 + $0x24] sm:$0xf]
        %v2276 = vld [vmem:[%s1511 + $0x28] sm:$0xf]
        %v2277 = vld [vmem:[%s1511 + $0x2c] sm:$0xf]
        %v2278 = vld [vmem:[%s1511 + $0x30] sm:$0xf]
        %v2279 = vld [vmem:[%s1511 + $0x34] sm:$0xf]
        %v2280 = vld [vmem:[%s1511 + $0x38] sm:$0xf]
        %v2281 = vld [vmem:[%s1511 + $0x3c] sm:$0xf]
        %v2282 = vld [vmem:[%s1511 + $0x40] sm:$0xf]
        %v2283 = vld [vmem:[%s1511 + $0x44] sm:$0xf]
        %v2284 = vld [vmem:[%s1511 + $0x48] sm:$0xf]
        %v2285 = vld [vmem:[%s1511 + $0x4c] sm:$0xf]
        %v2286 = vld [vmem:[%s1511 + $0x50] sm:$0xf]
        %v2287 = vld [vmem:[%s1511 + $0x54] sm:$0xf]
        %v2288 = vld [vmem:[%s1511 + $0x58] sm:$0x1]
        %v2310 = vunpack.c.l.b16 %v2268
        %v2311 = vunpack.c.l.b16 %v2269
        %v2312 = vunpack.c.l.b16 %v2270
        %v2313 = vunpack.c.l.b16 %v2271
        %v2314 = vunpack.c.l.b16 %v2272
        %v2315 = vunpack.c.l.b16 %v2273
        %v2316 = vunpack.c.l.b16 %v2274
        %v2317 = vunpack.c.l.b16 %v2275
        %v2318 = vunpack.c.l.b16 %v2276
        %v2319 = vunpack.c.l.b16 %v2277
        %v2320 = vunpack.c.l.b16 %v2278
        %v2321 = vunpack.c.l.b16 %v2279
        %v2322 = vunpack.c.l.b16 %v2280
        %v2323 = vunpack.c.l.b16 %v2281
        %v2324 = vunpack.c.l.b16 %v2282
        %v2325 = vunpack.c.l.b16 %v2283
        %v2326 = vunpack.c.l.b16 %v2284
        %v2327 = vunpack.c.l.b16 %v2285
        %v2328 = vunpack.c.l.b16 %v2286
        %v2329 = vunpack.c.l.b16 %v2287
        %v2330 = vunpack.c.l.b16 %v2288
        %v2331 = vpack.c.b16 %v2311, %v2310
        %v2332 = vpack.c.b16 %v2313, %v2312
        %v2333 = vpack.c.b16 %v2315, %v2314
        %v2334 = vpack.c.b16 %v2317, %v2316
        %v2335 = vpack.c.b16 %v2319, %v2318
        %v2336 = vpack.c.b16 %v2321, %v2320
        %v2337 = vpack.c.b16 %v2323, %v2322
        %v2338 = vpack.c.b16 %v2325, %v2324
        %v2339 = vpack.c.b16 %v2327, %v2326
        %v2340 = vpack.c.b16 %v2329, %v2328
        %v2341 = vpack.c.b16 %v2330, %v2330
        %v2342 = vrot.slane %v2331, 1
        %v2343 = vrot.slane %v2332, 1
        %v2344 = vsel %vm553, %v2342, %v2343
        %v2345 = vrot.slane %v2333, 1
        %v2346 = vsel %vm553, %v2343, %v2345
        %v2347 = vrot.slane %v2334, 1
        %v2348 = vsel %vm553, %v2345, %v2347
        %v2349 = vrot.slane %v2335, 1
        %v2350 = vsel %vm553, %v2347, %v2349
        %v2351 = vrot.slane %v2336, 1
        %v2352 = vsel %vm553, %v2349, %v2351
        %v2353 = vrot.slane %v2337, 1
        %v2354 = vsel %vm553, %v2351, %v2353
        %v2355 = vrot.slane %v2338, 1
        %v2356 = vsel %vm553, %v2353, %v2355
        %v2357 = vrot.slane %v2339, 1
        %v2358 = vsel %vm553, %v2355, %v2357
        %v2359 = vrot.slane %v2340, 1
        %v2360 = vsel %vm553, %v2357, %v2359
        %v2361 = vrot.slane %v2341, 1
        %v2362 = vsel %vm553, %v2359, %v2361
        %2363 = vrot.lane.b32.xlu0 %v2344, 56
        %v2364 = vpop.permute.xlu0 %2363
        %2365 = vrot.lane.b32.xlu0 %v2346, 56
        %v2366 = vpop.permute.xlu0 %2365
        %2367 = vrot.lane.b32.xlu0 %v2348, 56
        %v2368 = vpop.permute.xlu0 %2367
        %2369 = vrot.lane.b32.xlu0 %v2350, 56
        %v2370 = vpop.permute.xlu0 %2369
        %2371 = vrot.lane.b32.xlu0 %v2352, 56
        %v2372 = vpop.permute.xlu0 %2371
        %2373 = vrot.lane.b32.xlu0 %v2354, 56
        %v2374 = vpop.permute.xlu0 %2373
        %2375 = vrot.lane.b32.xlu0 %v2356, 56
        %v2376 = vpop.permute.xlu0 %2375
        %2377 = vrot.lane.b32.xlu0 %v2358, 56
        %v2378 = vpop.permute.xlu0 %2377
        %2379 = vrot.lane.b32.xlu0 %v2360, 56
        %v2380 = vpop.permute.xlu0 %2379
        %2381 = vrot.lane.b32.xlu0 %v2362, 56
        %v2382 = vpop.permute.xlu0 %2381
        %vm2393 = vcmask 490944
        %2394 = vst.msk [vmem:[#allocation2] sm:$0xff] %vm2393, %v2364
        %2395 = vst.msk [vmem:[#allocation2 + $0x8] sm:$0xff] %vm2393, %v2366
        %2396 = vst.msk [vmem:[#allocation2 + $0x10] sm:$0xff] %vm2393, %v2368
        %2397 = vst.msk [vmem:[#allocation2 + $0x18] sm:$0xff] %vm2393, %v2370
        %2398 = vst.msk [vmem:[#allocation2 + $0x20] sm:$0xff] %vm2393, %v2372
        %2399 = vst.msk [vmem:[#allocation2 + $0x28] sm:$0xff] %vm2393, %v2374
        %2400 = vst.msk [vmem:[#allocation2 + $0x30] sm:$0xff] %vm2393, %v2376
        %2401 = vst.msk [vmem:[#allocation2 + $0x38] sm:$0xff] %vm2393, %v2378
        %2402 = vst.msk [vmem:[#allocation2 + $0x40] sm:$0xff] %vm2393, %v2380
        %2403 = vst.msk [vmem:[#allocation2 + $0x48] sm:$0xff] %vm2393, %v2382
        %v2404 = vld [vmem:[%s1511 + $0x10] sm:$0xf]
        %v2405 = vld [vmem:[%s1511 + $0x14] sm:$0xf]
        %v2406 = vld [vmem:[%s1511 + $0x18] sm:$0xf]
        %v2407 = vld [vmem:[%s1511 + $0x1c] sm:$0xf]
        %v2408 = vld [vmem:[%s1511 + $0x20] sm:$0xf]
        %v2409 = vld [vmem:[%s1511 + $0x24] sm:$0xf]
        %v2410 = vld [vmem:[%s1511 + $0x28] sm:$0xf]
        %v2411 = vld [vmem:[%s1511 + $0x2c] sm:$0xf]
        %v2412 = vld [vmem:[%s1511 + $0x30] sm:$0xf]
        %v2413 = vld [vmem:[%s1511 + $0x34] sm:$0xf]
        %v2414 = vld [vmem:[%s1511 + $0x38] sm:$0xf]
        %v2415 = vld [vmem:[%s1511 + $0x3c] sm:$0xf]
        %v2416 = vld [vmem:[%s1511 + $0x40] sm:$0xf]
        %v2417 = vld [vmem:[%s1511 + $0x44] sm:$0xf]
        %v2418 = vld [vmem:[%s1511 + $0x48] sm:$0xf]
        %v2419 = vld [vmem:[%s1511 + $0x4c] sm:$0xf]
        %v2420 = vld [vmem:[%s1511 + $0x50] sm:$0xf]
        %v2421 = vld [vmem:[%s1511 + $0x54] sm:$0xf]
        %v2422 = vld [vmem:[%s1511 + $0x58] sm:$0xf]
        %v2423 = vld [vmem:[%s1511 + $0x5c] sm:$0xf]
        %v2444 = vunpack.c.l.b16 %v2404
        %v2445 = vunpack.c.l.b16 %v2405
        %v2446 = vunpack.c.l.b16 %v2406
        %v2447 = vunpack.c.l.b16 %v2407
        %v2448 = vunpack.c.l.b16 %v2408
        %v2449 = vunpack.c.l.b16 %v2409
        %v2450 = vunpack.c.l.b16 %v2410
        %v2451 = vunpack.c.l.b16 %v2411
        %v2452 = vunpack.c.l.b16 %v2412
        %v2453 = vunpack.c.l.b16 %v2413
        %v2454 = vunpack.c.l.b16 %v2414
        %v2455 = vunpack.c.l.b16 %v2415
        %v2456 = vunpack.c.l.b16 %v2416
        %v2457 = vunpack.c.l.b16 %v2417
        %v2458 = vunpack.c.l.b16 %v2418
        %v2459 = vunpack.c.l.b16 %v2419
        %v2460 = vunpack.c.l.b16 %v2420
        %v2461 = vunpack.c.l.b16 %v2421
        %v2462 = vunpack.c.l.b16 %v2422
        %v2463 = vunpack.c.l.b16 %v2423
        %v2464 = vpack.c.b16 %v2445, %v2444
        %v2465 = vpack.c.b16 %v2447, %v2446
        %v2466 = vpack.c.b16 %v2449, %v2448
        %v2467 = vpack.c.b16 %v2451, %v2450
        %v2468 = vpack.c.b16 %v2453, %v2452
        %v2469 = vpack.c.b16 %v2455, %v2454
        %v2470 = vpack.c.b16 %v2457, %v2456
        %v2471 = vpack.c.b16 %v2459, %v2458
        %v2472 = vpack.c.b16 %v2461, %v2460
        %v2473 = vpack.c.b16 %v2463, %v2462
        %2474 = vrot.lane.b32.xlu0 %v2464, 60
        %v2475 = vpop.permute.xlu0 %2474
        %2476 = vrot.lane.b32.xlu0 %v2465, 60
        %v2477 = vpop.permute.xlu0 %2476
        %2478 = vrot.lane.b32.xlu0 %v2466, 60
        %v2479 = vpop.permute.xlu0 %2478
        %2480 = vrot.lane.b32.xlu0 %v2467, 60
        %v2481 = vpop.permute.xlu0 %2480
        %2482 = vrot.lane.b32.xlu0 %v2468, 60
        %v2483 = vpop.permute.xlu0 %2482
        %2484 = vrot.lane.b32.xlu0 %v2469, 60
        %v2485 = vpop.permute.xlu0 %2484
        %2486 = vrot.lane.b32.xlu0 %v2470, 60
        %v2487 = vpop.permute.xlu0 %2486
        %2488 = vrot.lane.b32.xlu0 %v2471, 60
        %v2489 = vpop.permute.xlu0 %2488
        %2490 = vrot.lane.b32.xlu0 %v2472, 60
        %v2491 = vpop.permute.xlu0 %2490
        %2492 = vrot.lane.b32.xlu0 %v2473, 60
        %v2493 = vpop.permute.xlu0 %2492
        %vm2504 = vcmask 523744
        %2505 = vst.msk [vmem:[#allocation2] sm:$0xff] %vm2504, %v2475
        %2506 = vst.msk [vmem:[#allocation2 + $0x8] sm:$0xff] %vm2504, %v2477
        %2507 = vst.msk [vmem:[#allocation2 + $0x10] sm:$0xff] %vm2504, %v2479
        %2508 = vst.msk [vmem:[#allocation2 + $0x18] sm:$0xff] %vm2504, %v2481
        %2509 = vst.msk [vmem:[#allocation2 + $0x20] sm:$0xff] %vm2504, %v2483
        %2510 = vst.msk [vmem:[#allocation2 + $0x28] sm:$0xff] %vm2504, %v2485
        %2511 = vst.msk [vmem:[#allocation2 + $0x30] sm:$0xff] %vm2504, %v2487
        %2512 = vst.msk [vmem:[#allocation2 + $0x38] sm:$0xff] %vm2504, %v2489
        %2513 = vst.msk [vmem:[#allocation2 + $0x40] sm:$0xff] %vm2504, %v2491
        %2514 = vst.msk [vmem:[#allocation2 + $0x48] sm:$0xff] %vm2504, %v2493
        %v2515 = vld [vmem:[%s1511 + $0x10] sm:$0xf]
        %v2516 = vld [vmem:[%s1511 + $0x14] sm:$0xf]
        %v2517 = vld [vmem:[%s1511 + $0x18] sm:$0xf]
        %v2518 = vld [vmem:[%s1511 + $0x1c] sm:$0xf]
        %v2519 = vld [vmem:[%s1511 + $0x20] sm:$0xf]
        %v2520 = vld [vmem:[%s1511 + $0x24] sm:$0xf]
        %v2521 = vld [vmem:[%s1511 + $0x28] sm:$0xf]
        %v2522 = vld [vmem:[%s1511 + $0x2c] sm:$0xf]
        %v2523 = vld [vmem:[%s1511 + $0x30] sm:$0xf]
        %v2524 = vld [vmem:[%s1511 + $0x34] sm:$0xf]
        %v2525 = vld [vmem:[%s1511 + $0x38] sm:$0xf]
        %v2526 = vld [vmem:[%s1511 + $0x3c] sm:$0xf]
        %v2527 = vld [vmem:[%s1511 + $0x40] sm:$0xf]
        %v2528 = vld [vmem:[%s1511 + $0x44] sm:$0xf]
        %v2529 = vld [vmem:[%s1511 + $0x48] sm:$0xf]
        %v2530 = vld [vmem:[%s1511 + $0x4c] sm:$0xf]
        %v2531 = vld [vmem:[%s1511 + $0x50] sm:$0xf]
        %v2532 = vld [vmem:[%s1511 + $0x54] sm:$0xf]
        %v2533 = vld [vmem:[%s1511 + $0x58] sm:$0xf]
        %v2534 = vld [vmem:[%s1511 + $0x5c] sm:$0xf]
        %v2535 = vld [vmem:[%s1511 + $0x60] sm:$0x1]
        %v2557 = vunpack.c.l.b16 %v2515
        %v2558 = vunpack.c.l.b16 %v2516
        %v2559 = vunpack.c.l.b16 %v2517
        %v2560 = vunpack.c.l.b16 %v2518
        %v2561 = vunpack.c.l.b16 %v2519
        %v2562 = vunpack.c.l.b16 %v2520
        %v2563 = vunpack.c.l.b16 %v2521
        %v2564 = vunpack.c.l.b16 %v2522
        %v2565 = vunpack.c.l.b16 %v2523
        %v2566 = vunpack.c.l.b16 %v2524
        %v2567 = vunpack.c.l.b16 %v2525
        %v2568 = vunpack.c.l.b16 %v2526
        %v2569 = vunpack.c.l.b16 %v2527
        %v2570 = vunpack.c.l.b16 %v2528
        %v2571 = vunpack.c.l.b16 %v2529
        %v2572 = vunpack.c.l.b16 %v2530
        %v2573 = vunpack.c.l.b16 %v2531
        %v2574 = vunpack.c.l.b16 %v2532
        %v2575 = vunpack.c.l.b16 %v2533
        %v2576 = vunpack.c.l.b16 %v2534
        %v2577 = vunpack.c.l.b16 %v2535
        %v2578 = vpack.c.b16 %v2558, %v2557
        %v2579 = vpack.c.b16 %v2560, %v2559
        %v2580 = vpack.c.b16 %v2562, %v2561
        %v2581 = vpack.c.b16 %v2564, %v2563
        %v2582 = vpack.c.b16 %v2566, %v2565
        %v2583 = vpack.c.b16 %v2568, %v2567
        %v2584 = vpack.c.b16 %v2570, %v2569
        %v2585 = vpack.c.b16 %v2572, %v2571
        %v2586 = vpack.c.b16 %v2574, %v2573
        %v2587 = vpack.c.b16 %v2576, %v2575
        %v2588 = vpack.c.b16 %v2577, %v2577
        %v2590 = vshrl.u32 %v2578, 16
        %v2592 = vshll.u32 %v2578, 16
        %v2594 = vrot.slane %v2592, 1
        %v2595 = vor.u32 %v2590, %v2594
        %v2597 = vshll.u32 %v2579, 16
        %v2599 = vrot.slane %v2597, 1
        %v2600 = vsel %vm353, %v2595, %v2599
        %v2601 = vshrl.u32 %v2579, 16
        %v2603 = vor.u32 %v2601, %v2599
        %v2605 = vshll.u32 %v2580, 16
        %v2607 = vrot.slane %v2605, 1
        %v2608 = vsel %vm353, %v2603, %v2607
        %v2609 = vshrl.u32 %v2580, 16
        %v2611 = vor.u32 %v2609, %v2607
        %v2613 = vshll.u32 %v2581, 16
        %v2615 = vrot.slane %v2613, 1
        %v2616 = vsel %vm353, %v2611, %v2615
        %v2617 = vshrl.u32 %v2581, 16
        %v2619 = vor.u32 %v2617, %v2615
        %v2621 = vshll.u32 %v2582, 16
        %v2623 = vrot.slane %v2621, 1
        %v2624 = vsel %vm353, %v2619, %v2623
        %v2625 = vshrl.u32 %v2582, 16
        %v2627 = vor.u32 %v2625, %v2623
        %v2629 = vshll.u32 %v2583, 16
        %v2631 = vrot.slane %v2629, 1
        %v2632 = vsel %vm353, %v2627, %v2631
        %v2633 = vshrl.u32 %v2583, 16
        %v2635 = vor.u32 %v2633, %v2631
        %v2637 = vshll.u32 %v2584, 16
        %v2639 = vrot.slane %v2637, 1
        %v2640 = vsel %vm353, %v2635, %v2639
        %v2641 = vshrl.u32 %v2584, 16
        %v2643 = vor.u32 %v2641, %v2639
        %v2645 = vshll.u32 %v2585, 16
        %v2647 = vrot.slane %v2645, 1
        %v2648 = vsel %vm353, %v2643, %v2647
        %v2649 = vshrl.u32 %v2585, 16
        %v2651 = vor.u32 %v2649, %v2647
        %v2653 = vshll.u32 %v2586, 16
        %v2655 = vrot.slane %v2653, 1
        %v2656 = vsel %vm353, %v2651, %v2655
        %v2657 = vshrl.u32 %v2586, 16
        %v2659 = vor.u32 %v2657, %v2655
        %v2661 = vshll.u32 %v2587, 16
        %v2663 = vrot.slane %v2661, 1
        %v2664 = vsel %vm353, %v2659, %v2663
        %v2665 = vshrl.u32 %v2587, 16
        %v2667 = vor.u32 %v2665, %v2663
        %v2669 = vshll.u32 %v2588, 16
        %v2671 = vrot.slane %v2669, 1
        %v2672 = vsel %vm353, %v2667, %v2671
        %2673 = vrot.lane.b32.xlu0 %v2600, 64
        %v2674 = vpop.permute.xlu0 %2673
        %2675 = vrot.lane.b32.xlu0 %v2608, 64
        %v2676 = vpop.permute.xlu0 %2675
        %2677 = vrot.lane.b32.xlu0 %v2616, 64
        %v2678 = vpop.permute.xlu0 %2677
        %2679 = vrot.lane.b32.xlu0 %v2624, 64
        %v2680 = vpop.permute.xlu0 %2679
        %2681 = vrot.lane.b32.xlu0 %v2632, 64
        %v2682 = vpop.permute.xlu0 %2681
        %2683 = vrot.lane.b32.xlu0 %v2640, 64
        %v2684 = vpop.permute.xlu0 %2683
        %2685 = vrot.lane.b32.xlu0 %v2648, 64
        %v2686 = vpop.permute.xlu0 %2685
        %2687 = vrot.lane.b32.xlu0 %v2656, 64
        %v2688 = vpop.permute.xlu0 %2687
        %2689 = vrot.lane.b32.xlu0 %v2664, 64
        %v2690 = vpop.permute.xlu0 %2689
        %2691 = vrot.lane.b32.xlu0 %v2672, 64
        %v2692 = vpop.permute.xlu0 %2691
        %vm2703 = vcmask 556544
        %2704 = vst.msk [vmem:[#allocation2] sm:$0xff] %vm2703, %v2674
        %2705 = vst.msk [vmem:[#allocation2 + $0x8] sm:$0xff] %vm2703, %v2676
        %2706 = vst.msk [vmem:[#allocation2 + $0x10] sm:$0xff] %vm2703, %v2678
        %2707 = vst.msk [vmem:[#allocation2 + $0x18] sm:$0xff] %vm2703, %v2680
        %2708 = vst.msk [vmem:[#allocation2 + $0x20] sm:$0xff] %vm2703, %v2682
        %2709 = vst.msk [vmem:[#allocation2 + $0x28] sm:$0xff] %vm2703, %v2684
        %2710 = vst.msk [vmem:[#allocation2 + $0x30] sm:$0xff] %vm2703, %v2686
        %2711 = vst.msk [vmem:[#allocation2 + $0x38] sm:$0xff] %vm2703, %v2688
        %2712 = vst.msk [vmem:[#allocation2 + $0x40] sm:$0xff] %vm2703, %v2690
        %2713 = vst.msk [vmem:[#allocation2 + $0x48] sm:$0xff] %vm2703, %v2692
        %v2714 = vld [vmem:[%s1511 + $0x10] sm:$0xe]
        %v2715 = vld [vmem:[%s1511 + $0x14] sm:$0xf]
        %v2716 = vld [vmem:[%s1511 + $0x18] sm:$0xf]
        %v2717 = vld [vmem:[%s1511 + $0x1c] sm:$0xf]
        %v2718 = vld [vmem:[%s1511 + $0x20] sm:$0xf]
        %v2719 = vld [vmem:[%s1511 + $0x24] sm:$0xf]
        %v2720 = vld [vmem:[%s1511 + $0x28] sm:$0xf]
        %v2721 = vld [vmem:[%s1511 + $0x2c] sm:$0xf]
        %v2722 = vld [vmem:[%s1511 + $0x30] sm:$0xf]
        %v2723 = vld [vmem:[%s1511 + $0x34] sm:$0xf]
        %v2724 = vld [vmem:[%s1511 + $0x38] sm:$0xf]
        %v2725 = vld [vmem:[%s1511 + $0x3c] sm:$0xf]
        %v2726 = vld [vmem:[%s1511 + $0x40] sm:$0xf]
        %v2727 = vld [vmem:[%s1511 + $0x44] sm:$0xf]
        %v2728 = vld [vmem:[%s1511 + $0x48] sm:$0xf]
        %v2729 = vld [vmem:[%s1511 + $0x4c] sm:$0xf]
        %v2730 = vld [vmem:[%s1511 + $0x50] sm:$0xf]
        %v2731 = vld [vmem:[%s1511 + $0x54] sm:$0xf]
        %v2732 = vld [vmem:[%s1511 + $0x58] sm:$0xf]
        %v2733 = vld [vmem:[%s1511 + $0x5c] sm:$0xf]
        %v2734 = vld [vmem:[%s1511 + $0x60] sm:$0x1]
        %v2756 = vunpack.c.l.b16 %v2714
        %v2757 = vunpack.c.l.b16 %v2715
        %v2758 = vunpack.c.l.b16 %v2716
        %v2759 = vunpack.c.l.b16 %v2717
        %v2760 = vunpack.c.l.b16 %v2718
        %v2761 = vunpack.c.l.b16 %v2719
        %v2762 = vunpack.c.l.b16 %v2720
        %v2763 = vunpack.c.l.b16 %v2721
        %v2764 = vunpack.c.l.b16 %v2722
        %v2765 = vunpack.c.l.b16 %v2723
        %v2766 = vunpack.c.l.b16 %v2724
        %v2767 = vunpack.c.l.b16 %v2725
        %v2768 = vunpack.c.l.b16 %v2726
        %v2769 = vunpack.c.l.b16 %v2727
        %v2770 = vunpack.c.l.b16 %v2728
        %v2771 = vunpack.c.l.b16 %v2729
        %v2772 = vunpack.c.l.b16 %v2730
        %v2773 = vunpack.c.l.b16 %v2731
        %v2774 = vunpack.c.l.b16 %v2732
        %v2775 = vunpack.c.l.b16 %v2733
        %v2776 = vunpack.c.l.b16 %v2734
        %v2777 = vpack.c.b16 %v2757, %v2756
        %v2778 = vpack.c.b16 %v2759, %v2758
        %v2779 = vpack.c.b16 %v2761, %v2760
        %v2780 = vpack.c.b16 %v2763, %v2762
        %v2781 = vpack.c.b16 %v2765, %v2764
        %v2782 = vpack.c.b16 %v2767, %v2766
        %v2783 = vpack.c.b16 %v2769, %v2768
        %v2784 = vpack.c.b16 %v2771, %v2770
        %v2785 = vpack.c.b16 %v2773, %v2772
        %v2786 = vpack.c.b16 %v2775, %v2774
        %v2787 = vpack.c.b16 %v2776, %v2776
        %v2788 = vrot.slane %v2777, 1
        %v2789 = vrot.slane %v2778, 1
        %v2790 = vsel %vm553, %v2788, %v2789
        %v2791 = vrot.slane %v2779, 1
        %v2792 = vsel %vm553, %v2789, %v2791
        %v2793 = vrot.slane %v2780, 1
        %v2794 = vsel %vm553, %v2791, %v2793
        %v2795 = vrot.slane %v2781, 1
        %v2796 = vsel %vm553, %v2793, %v2795
        %v2797 = vrot.slane %v2782, 1
        %v2798 = vsel %vm553, %v2795, %v2797
        %v2799 = vrot.slane %v2783, 1
        %v2800 = vsel %vm553, %v2797, %v2799
        %v2801 = vrot.slane %v2784, 1
        %v2802 = vsel %vm553, %v2799, %v2801
        %v2803 = vrot.slane %v2785, 1
        %v2804 = vsel %vm553, %v2801, %v2803
        %v2805 = vrot.slane %v2786, 1
        %v2806 = vsel %vm553, %v2803, %v2805
        %v2807 = vrot.slane %v2787, 1
        %v2808 = vsel %vm553, %v2805, %v2807
        %2809 = vrot.lane.b32.xlu0 %v2790, 68
        %v2810 = vpop.permute.xlu0 %2809
        %2811 = vrot.lane.b32.xlu0 %v2792, 68
        %v2812 = vpop.permute.xlu0 %2811
        %2813 = vrot.lane.b32.xlu0 %v2794, 68
        %v2814 = vpop.permute.xlu0 %2813
        %2815 = vrot.lane.b32.xlu0 %v2796, 68
        %v2816 = vpop.permute.xlu0 %2815
        %2817 = vrot.lane.b32.xlu0 %v2798, 68
        %v2818 = vpop.permute.xlu0 %2817
        %2819 = vrot.lane.b32.xlu0 %v2800, 68
        %v2820 = vpop.permute.xlu0 %2819
        %2821 = vrot.lane.b32.xlu0 %v2802, 68
        %v2822 = vpop.permute.xlu0 %2821
        %2823 = vrot.lane.b32.xlu0 %v2804, 68
        %v2824 = vpop.permute.xlu0 %2823
        %2825 = vrot.lane.b32.xlu0 %v2806, 68
        %v2826 = vpop.permute.xlu0 %2825
        %2827 = vrot.lane.b32.xlu0 %v2808, 68
        %v2828 = vpop.permute.xlu0 %2827
        %vm2839 = vcmask 589344
        %2840 = vst.msk [vmem:[#allocation2] sm:$0xff] %vm2839, %v2810
        %2841 = vst.msk [vmem:[#allocation2 + $0x8] sm:$0xff] %vm2839, %v2812
        %2842 = vst.msk [vmem:[#allocation2 + $0x10] sm:$0xff] %vm2839, %v2814
        %2843 = vst.msk [vmem:[#allocation2 + $0x18] sm:$0xff] %vm2839, %v2816
        %2844 = vst.msk [vmem:[#allocation2 + $0x20] sm:$0xff] %vm2839, %v2818
        %2845 = vst.msk [vmem:[#allocation2 + $0x28] sm:$0xff] %vm2839, %v2820
        %2846 = vst.msk [vmem:[#allocation2 + $0x30] sm:$0xff] %vm2839, %v2822
        %2847 = vst.msk [vmem:[#allocation2 + $0x38] sm:$0xff] %vm2839, %v2824
        %2848 = vst.msk [vmem:[#allocation2 + $0x40] sm:$0xff] %vm2839, %v2826
        %2849 = vst.msk [vmem:[#allocation2 + $0x48] sm:$0xff] %vm2839, %v2828
        %s2850 = sadd.s32 %s22, 2
        %s2851 = smul.u32 %s2850, 26
        %s2852 = smul.addr %s2851, 4
        %s2853 = scalar_lea.vmem %s182, %s2852
        %v2854 = vld [vmem:[%s2853] sm:$0xf]
        %v2855 = vld [vmem:[%s2853 + $0x4] sm:$0xf]
        %v2856 = vld [vmem:[%s2853 + $0x8] sm:$0xf]
        %v2857 = vld [vmem:[%s2853 + $0xc] sm:$0xf]
        %v2858 = vld [vmem:[%s2853 + $0x10] sm:$0xf]
        %v2859 = vld [vmem:[%s2853 + $0x14] sm:$0xf]
        %v2860 = vld [vmem:[%s2853 + $0x18] sm:$0xf]
        %v2861 = vld [vmem:[%s2853 + $0x1c] sm:$0xf]
        %v2862 = vld [vmem:[%s2853 + $0x20] sm:$0xf]
        %v2863 = vld [vmem:[%s2853 + $0x24] sm:$0xf]
        %v2864 = vld [vmem:[%s2853 + $0x28] sm:$0xf]
        %v2865 = vld [vmem:[%s2853 + $0x2c] sm:$0xf]
        %v2866 = vld [vmem:[%s2853 + $0x30] sm:$0xf]
        %v2867 = vld [vmem:[%s2853 + $0x34] sm:$0xf]
        %v2868 = vld [vmem:[%s2853 + $0x38] sm:$0xf]
        %v2869 = vld [vmem:[%s2853 + $0x3c] sm:$0xf]
        %v2870 = vld [vmem:[%s2853 + $0x40] sm:$0xf]
        %v2871 = vld [vmem:[%s2853 + $0x44] sm:$0xf]
        %v2872 = vld [vmem:[%s2853 + $0x48] sm:$0xf]
        %v2873 = vld [vmem:[%s2853 + $0x4c] sm:$0xf]
        %v2894 = vunpack.c.l.b16 %v2854
        %v2895 = vunpack.c.l.b16 %v2855
        %v2896 = vunpack.c.l.b16 %v2856
        %v2897 = vunpack.c.l.b16 %v2857
        %v2898 = vunpack.c.l.b16 %v2858
        %v2899 = vunpack.c.l.b16 %v2859
        %v2900 = vunpack.c.l.b16 %v2860
        %v2901 = vunpack.c.l.b16 %v2861
        %v2902 = vunpack.c.l.b16 %v2862
        %v2903 = vunpack.c.l.b16 %v2863
        %v2904 = vunpack.c.l.b16 %v2864
        %v2905 = vunpack.c.l.b16 %v2865
        %v2906 = vunpack.c.l.b16 %v2866
        %v2907 = vunpack.c.l.b16 %v2867
        %v2908 = vunpack.c.l.b16 %v2868
        %v2909 = vunpack.c.l.b16 %v2869
        %v2910 = vunpack.c.l.b16 %v2870
        %v2911 = vunpack.c.l.b16 %v2871
        %v2912 = vunpack.c.l.b16 %v2872
        %v2913 = vunpack.c.l.b16 %v2873
        %v2914 = vpack.c.b16 %v2895, %v2894
        %v2915 = vpack.c.b16 %v2897, %v2896
        %v2916 = vpack.c.b16 %v2899, %v2898
        %v2917 = vpack.c.b16 %v2901, %v2900
        %v2918 = vpack.c.b16 %v2903, %v2902
        %v2919 = vpack.c.b16 %v2905, %v2904
        %v2920 = vpack.c.b16 %v2907, %v2906
        %v2921 = vpack.c.b16 %v2909, %v2908
        %v2922 = vpack.c.b16 %v2911, %v2910
        %v2923 = vpack.c.b16 %v2913, %v2912
        %2924 = vrot.lane.b32.xlu0 %v2914, 72
        %v2925 = vpop.permute.xlu0 %2924
        %2926 = vrot.lane.b32.xlu0 %v2915, 72
        %v2927 = vpop.permute.xlu0 %2926
        %2928 = vrot.lane.b32.xlu0 %v2916, 72
        %v2929 = vpop.permute.xlu0 %2928
        %2930 = vrot.lane.b32.xlu0 %v2917, 72
        %v2931 = vpop.permute.xlu0 %2930
        %2932 = vrot.lane.b32.xlu0 %v2918, 72
        %v2933 = vpop.permute.xlu0 %2932
        %2934 = vrot.lane.b32.xlu0 %v2919, 72
        %v2935 = vpop.permute.xlu0 %2934
        %2936 = vrot.lane.b32.xlu0 %v2920, 72
        %v2937 = vpop.permute.xlu0 %2936
        %2938 = vrot.lane.b32.xlu0 %v2921, 72
        %v2939 = vpop.permute.xlu0 %2938
        %2940 = vrot.lane.b32.xlu0 %v2922, 72
        %v2941 = vpop.permute.xlu0 %2940
        %2942 = vrot.lane.b32.xlu0 %v2923, 72
        %v2943 = vpop.permute.xlu0 %2942
        %vm2954 = vcmask 622144
        %2955 = vst.msk [vmem:[#allocation2] sm:$0xff] %vm2954, %v2925
        %2956 = vst.msk [vmem:[#allocation2 + $0x8] sm:$0xff] %vm2954, %v2927
        %2957 = vst.msk [vmem:[#allocation2 + $0x10] sm:$0xff] %vm2954, %v2929
        %2958 = vst.msk [vmem:[#allocation2 + $0x18] sm:$0xff] %vm2954, %v2931
        %2959 = vst.msk [vmem:[#allocation2 + $0x20] sm:$0xff] %vm2954, %v2933
        %2960 = vst.msk [vmem:[#allocation2 + $0x28] sm:$0xff] %vm2954, %v2935
        %2961 = vst.msk [vmem:[#allocation2 + $0x30] sm:$0xff] %vm2954, %v2937
        %2962 = vst.msk [vmem:[#allocation2 + $0x38] sm:$0xff] %vm2954, %v2939
        %2963 = vst.msk [vmem:[#allocation2 + $0x40] sm:$0xff] %vm2954, %v2941
        %2964 = vst.msk [vmem:[#allocation2 + $0x48] sm:$0xff] %vm2954, %v2943
        %v2965 = vld [vmem:[%s2853] sm:$0xf]
        %v2966 = vld [vmem:[%s2853 + $0x4] sm:$0xf]
        %v2967 = vld [vmem:[%s2853 + $0x8] sm:$0xf]
        %v2968 = vld [vmem:[%s2853 + $0xc] sm:$0xf]
        %v2969 = vld [vmem:[%s2853 + $0x10] sm:$0xf]
        %v2970 = vld [vmem:[%s2853 + $0x14] sm:$0xf]
        %v2971 = vld [vmem:[%s2853 + $0x18] sm:$0xf]
        %v2972 = vld [vmem:[%s2853 + $0x1c] sm:$0xf]
        %v2973 = vld [vmem:[%s2853 + $0x20] sm:$0xf]
        %v2974 = vld [vmem:[%s2853 + $0x24] sm:$0xf]
        %v2975 = vld [vmem:[%s2853 + $0x28] sm:$0xf]
        %v2976 = vld [vmem:[%s2853 + $0x2c] sm:$0xf]
        %v2977 = vld [vmem:[%s2853 + $0x30] sm:$0xf]
        %v2978 = vld [vmem:[%s2853 + $0x34] sm:$0xf]
        %v2979 = vld [vmem:[%s2853 + $0x38] sm:$0xf]
        %v2980 = vld [vmem:[%s2853 + $0x3c] sm:$0xf]
        %v2981 = vld [vmem:[%s2853 + $0x40] sm:$0xf]
        %v2982 = vld [vmem:[%s2853 + $0x44] sm:$0xf]
        %v2983 = vld [vmem:[%s2853 + $0x48] sm:$0xf]
        %v2984 = vld [vmem:[%s2853 + $0x4c] sm:$0xf]
        %v2985 = vld [vmem:[%s2853 + $0x50] sm:$0x1]
        %v3007 = vunpack.c.l.b16 %v2965
        %v3008 = vunpack.c.l.b16 %v2966
        %v3009 = vunpack.c.l.b16 %v2967
        %v3010 = vunpack.c.l.b16 %v2968
        %v3011 = vunpack.c.l.b16 %v2969
        %v3012 = vunpack.c.l.b16 %v2970
        %v3013 = vunpack.c.l.b16 %v2971
        %v3014 = vunpack.c.l.b16 %v2972
        %v3015 = vunpack.c.l.b16 %v2973
        %v3016 = vunpack.c.l.b16 %v2974
        %v3017 = vunpack.c.l.b16 %v2975
        %v3018 = vunpack.c.l.b16 %v2976
        %v3019 = vunpack.c.l.b16 %v2977
        %v3020 = vunpack.c.l.b16 %v2978
        %v3021 = vunpack.c.l.b16 %v2979
        %v3022 = vunpack.c.l.b16 %v2980
        %v3023 = vunpack.c.l.b16 %v2981
        %v3024 = vunpack.c.l.b16 %v2982
        %v3025 = vunpack.c.l.b16 %v2983
        %v3026 = vunpack.c.l.b16 %v2984
        %v3027 = vunpack.c.l.b16 %v2985
        %v3028 = vpack.c.b16 %v3008, %v3007
        %v3029 = vpack.c.b16 %v3010, %v3009
        %v3030 = vpack.c.b16 %v3012, %v3011
        %v3031 = vpack.c.b16 %v3014, %v3013
        %v3032 = vpack.c.b16 %v3016, %v3015
        %v3033 = vpack.c.b16 %v3018, %v3017
        %v3034 = vpack.c.b16 %v3020, %v3019
        %v3035 = vpack.c.b16 %v3022, %v3021
        %v3036 = vpack.c.b16 %v3024, %v3023
        %v3037 = vpack.c.b16 %v3026, %v3025
        %v3038 = vpack.c.b16 %v3027, %v3027
        %v3040 = vshrl.u32 %v3028, 16
        %v3042 = vshll.u32 %v3028, 16
        %v3044 = vrot.slane %v3042, 1
        %v3045 = vor.u32 %v3040, %v3044
        %v3047 = vshll.u32 %v3029, 16
        %v3049 = vrot.slane %v3047, 1
        %v3050 = vsel %vm353, %v3045, %v3049
        %v3051 = vshrl.u32 %v3029, 16
        %v3053 = vor.u32 %v3051, %v3049
        %v3055 = vshll.u32 %v3030, 16
        %v3057 = vrot.slane %v3055, 1
        %v3058 = vsel %vm353, %v3053, %v3057
        %v3059 = vshrl.u32 %v3030, 16
        %v3061 = vor.u32 %v3059, %v3057
        %v3063 = vshll.u32 %v3031, 16
        %v3065 = vrot.slane %v3063, 1
        %v3066 = vsel %vm353, %v3061, %v3065
        %v3067 = vshrl.u32 %v3031, 16
        %v3069 = vor.u32 %v3067, %v3065
        %v3071 = vshll.u32 %v3032, 16
        %v3073 = vrot.slane %v3071, 1
        %v3074 = vsel %vm353, %v3069, %v3073
        %v3075 = vshrl.u32 %v3032, 16
        %v3077 = vor.u32 %v3075, %v3073
        %v3079 = vshll.u32 %v3033, 16
        %v3081 = vrot.slane %v3079, 1
        %v3082 = vsel %vm353, %v3077, %v3081
        %v3083 = vshrl.u32 %v3033, 16
        %v3085 = vor.u32 %v3083, %v3081
        %v3087 = vshll.u32 %v3034, 16
        %v3089 = vrot.slane %v3087, 1
        %v3090 = vsel %vm353, %v3085, %v3089
        %v3091 = vshrl.u32 %v3034, 16
        %v3093 = vor.u32 %v3091, %v3089
        %v3095 = vshll.u32 %v3035, 16
        %v3097 = vrot.slane %v3095, 1
        %v3098 = vsel %vm353, %v3093, %v3097
        %v3099 = vshrl.u32 %v3035, 16
        %v3101 = vor.u32 %v3099, %v3097
        %v3103 = vshll.u32 %v3036, 16
        %v3105 = vrot.slane %v3103, 1
        %v3106 = vsel %vm353, %v3101, %v3105
        %v3107 = vshrl.u32 %v3036, 16
        %v3109 = vor.u32 %v3107, %v3105
        %v3111 = vshll.u32 %v3037, 16
        %v3113 = vrot.slane %v3111, 1
        %v3114 = vsel %vm353, %v3109, %v3113
        %v3115 = vshrl.u32 %v3037, 16
        %v3117 = vor.u32 %v3115, %v3113
        %v3119 = vshll.u32 %v3038, 16
        %v3121 = vrot.slane %v3119, 1
        %v3122 = vsel %vm353, %v3117, %v3121
        %3123 = vrot.lane.b32.xlu0 %v3050, 76
        %v3124 = vpop.permute.xlu0 %3123
        %3125 = vrot.lane.b32.xlu0 %v3058, 76
        %v3126 = vpop.permute.xlu0 %3125
        %3127 = vrot.lane.b32.xlu0 %v3066, 76
        %v3128 = vpop.permute.xlu0 %3127
        %3129 = vrot.lane.b32.xlu0 %v3074, 76
        %v3130 = vpop.permute.xlu0 %3129
        %3131 = vrot.lane.b32.xlu0 %v3082, 76
        %v3132 = vpop.permute.xlu0 %3131
        %3133 = vrot.lane.b32.xlu0 %v3090, 76
        %v3134 = vpop.permute.xlu0 %3133
        %3135 = vrot.lane.b32.xlu0 %v3098, 76
        %v3136 = vpop.permute.xlu0 %3135
        %3137 = vrot.lane.b32.xlu0 %v3106, 76
        %v3138 = vpop.permute.xlu0 %3137
        %3139 = vrot.lane.b32.xlu0 %v3114, 76
        %v3140 = vpop.permute.xlu0 %3139
        %3141 = vrot.lane.b32.xlu0 %v3122, 76
        %v3142 = vpop.permute.xlu0 %3141
        %vm3153 = vcmask 654944
        %3154 = vst.msk [vmem:[#allocation2] sm:$0xff] %vm3153, %v3124
        %3155 = vst.msk [vmem:[#allocation2 + $0x8] sm:$0xff] %vm3153, %v3126
        %3156 = vst.msk [vmem:[#allocation2 + $0x10] sm:$0xff] %vm3153, %v3128
        %3157 = vst.msk [vmem:[#allocation2 + $0x18] sm:$0xff] %vm3153, %v3130
        %3158 = vst.msk [vmem:[#allocation2 + $0x20] sm:$0xff] %vm3153, %v3132
        %3159 = vst.msk [vmem:[#allocation2 + $0x28] sm:$0xff] %vm3153, %v3134
        %3160 = vst.msk [vmem:[#allocation2 + $0x30] sm:$0xff] %vm3153, %v3136
        %3161 = vst.msk [vmem:[#allocation2 + $0x38] sm:$0xff] %vm3153, %v3138
        %3162 = vst.msk [vmem:[#allocation2 + $0x40] sm:$0xff] %vm3153, %v3140
        %3163 = vst.msk [vmem:[#allocation2 + $0x48] sm:$0xff] %vm3153, %v3142
        %v3164 = vld [vmem:[%s2853] sm:$0xe]
        %v3165 = vld [vmem:[%s2853 + $0x4] sm:$0xf]
        %v3166 = vld [vmem:[%s2853 + $0x8] sm:$0xf]
        %v3167 = vld [vmem:[%s2853 + $0xc] sm:$0xf]
        %v3168 = vld [vmem:[%s2853 + $0x10] sm:$0xf]
        %v3169 = vld [vmem:[%s2853 + $0x14] sm:$0xf]
        %v3170 = vld [vmem:[%s2853 + $0x18] sm:$0xf]
        %v3171 = vld [vmem:[%s2853 + $0x1c] sm:$0xf]
        %v3172 = vld [vmem:[%s2853 + $0x20] sm:$0xf]
        %v3173 = vld [vmem:[%s2853 + $0x24] sm:$0xf]
        %v3174 = vld [vmem:[%s2853 + $0x28] sm:$0xf]
        %v3175 = vld [vmem:[%s2853 + $0x2c] sm:$0xf]
        %v3176 = vld [vmem:[%s2853 + $0x30] sm:$0xf]
        %v3177 = vld [vmem:[%s2853 + $0x34] sm:$0xf]
        %v3178 = vld [vmem:[%s2853 + $0x38] sm:$0xf]
        %v3179 = vld [vmem:[%s2853 + $0x3c] sm:$0xf]
        %v3180 = vld [vmem:[%s2853 + $0x40] sm:$0xf]
        %v3181 = vld [vmem:[%s2853 + $0x44] sm:$0xf]
        %v3182 = vld [vmem:[%s2853 + $0x48] sm:$0xf]
        %v3183 = vld [vmem:[%s2853 + $0x4c] sm:$0xf]
        %v3184 = vld [vmem:[%s2853 + $0x50] sm:$0x1]
        %v3206 = vunpack.c.l.b16 %v3164
        %v3207 = vunpack.c.l.b16 %v3165
        %v3208 = vunpack.c.l.b16 %v3166
        %v3209 = vunpack.c.l.b16 %v3167
        %v3210 = vunpack.c.l.b16 %v3168
        %v3211 = vunpack.c.l.b16 %v3169
        %v3212 = vunpack.c.l.b16 %v3170
        %v3213 = vunpack.c.l.b16 %v3171
        %v3214 = vunpack.c.l.b16 %v3172
        %v3215 = vunpack.c.l.b16 %v3173
        %v3216 = vunpack.c.l.b16 %v3174
        %v3217 = vunpack.c.l.b16 %v3175
        %v3218 = vunpack.c.l.b16 %v3176
        %v3219 = vunpack.c.l.b16 %v3177
        %v3220 = vunpack.c.l.b16 %v3178
        %v3221 = vunpack.c.l.b16 %v3179
        %v3222 = vunpack.c.l.b16 %v3180
        %v3223 = vunpack.c.l.b16 %v3181
        %v3224 = vunpack.c.l.b16 %v3182
        %v3225 = vunpack.c.l.b16 %v3183
        %v3226 = vunpack.c.l.b16 %v3184
        %v3227 = vpack.c.b16 %v3207, %v3206
        %v3228 = vpack.c.b16 %v3209, %v3208
        %v3229 = vpack.c.b16 %v3211, %v3210
        %v3230 = vpack.c.b16 %v3213, %v3212
        %v3231 = vpack.c.b16 %v3215, %v3214
        %v3232 = vpack.c.b16 %v3217, %v3216
        %v3233 = vpack.c.b16 %v3219, %v3218
        %v3234 = vpack.c.b16 %v3221, %v3220
        %v3235 = vpack.c.b16 %v3223, %v3222
        %v3236 = vpack.c.b16 %v3225, %v3224
        %v3237 = vpack.c.b16 %v3226, %v3226
        %v3238 = vrot.slane %v3227, 1
        %v3239 = vrot.slane %v3228, 1
        %v3240 = vsel %vm553, %v3238, %v3239
        %v3241 = vrot.slane %v3229, 1
        %v3242 = vsel %vm553, %v3239, %v3241
        %v3243 = vrot.slane %v3230, 1
        %v3244 = vsel %vm553, %v3241, %v3243
        %v3245 = vrot.slane %v3231, 1
        %v3246 = vsel %vm553, %v3243, %v3245
        %v3247 = vrot.slane %v3232, 1
        %v3248 = vsel %vm553, %v3245, %v3247
        %v3249 = vrot.slane %v3233, 1
        %v3250 = vsel %vm553, %v3247, %v3249
        %v3251 = vrot.slane %v3234, 1
        %v3252 = vsel %vm553, %v3249, %v3251
        %v3253 = vrot.slane %v3235, 1
        %v3254 = vsel %vm553, %v3251, %v3253
        %v3255 = vrot.slane %v3236, 1
        %v3256 = vsel %vm553, %v3253, %v3255
        %v3257 = vrot.slane %v3237, 1
        %v3258 = vsel %vm553, %v3255, %v3257
        %3259 = vrot.lane.b32.xlu0 %v3240, 80
        %v3260 = vpop.permute.xlu0 %3259
        %3261 = vrot.lane.b32.xlu0 %v3242, 80
        %v3262 = vpop.permute.xlu0 %3261
        %3263 = vrot.lane.b32.xlu0 %v3244, 80
        %v3264 = vpop.permute.xlu0 %3263
        %3265 = vrot.lane.b32.xlu0 %v3246, 80
        %v3266 = vpop.permute.xlu0 %3265
        %3267 = vrot.lane.b32.xlu0 %v3248, 80
        %v3268 = vpop.permute.xlu0 %3267
        %3269 = vrot.lane.b32.xlu0 %v3250, 80
        %v3270 = vpop.permute.xlu0 %3269
        %3271 = vrot.lane.b32.xlu0 %v3252, 80
        %v3272 = vpop.permute.xlu0 %3271
        %3273 = vrot.lane.b32.xlu0 %v3254, 80
        %v3274 = vpop.permute.xlu0 %3273
        %3275 = vrot.lane.b32.xlu0 %v3256, 80
        %v3276 = vpop.permute.xlu0 %3275
        %3277 = vrot.lane.b32.xlu0 %v3258, 80
        %v3278 = vpop.permute.xlu0 %3277
        %vm3289 = vcmask 687744
        %3290 = vst.msk [vmem:[#allocation2] sm:$0xff] %vm3289, %v3260
        %3291 = vst.msk [vmem:[#allocation2 + $0x8] sm:$0xff] %vm3289, %v3262
        %3292 = vst.msk [vmem:[#allocation2 + $0x10] sm:$0xff] %vm3289, %v3264
        %3293 = vst.msk [vmem:[#allocation2 + $0x18] sm:$0xff] %vm3289, %v3266
        %3294 = vst.msk [vmem:[#allocation2 + $0x20] sm:$0xff] %vm3289, %v3268
        %3295 = vst.msk [vmem:[#allocation2 + $0x28] sm:$0xff] %vm3289, %v3270
        %3296 = vst.msk [vmem:[#allocation2 + $0x30] sm:$0xff] %vm3289, %v3272
        %3297 = vst.msk [vmem:[#allocation2 + $0x38] sm:$0xff] %vm3289, %v3274
        %3298 = vst.msk [vmem:[#allocation2 + $0x40] sm:$0xff] %vm3289, %v3276
        %3299 = vst.msk [vmem:[#allocation2 + $0x48] sm:$0xff] %vm3289, %v3278
        %v3300 = vld [vmem:[%s2853 + $0x8] sm:$0xf]
        %v3301 = vld [vmem:[%s2853 + $0xc] sm:$0xf]
        %v3302 = vld [vmem:[%s2853 + $0x10] sm:$0xf]
        %v3303 = vld [vmem:[%s2853 + $0x14] sm:$0xf]
        %v3304 = vld [vmem:[%s2853 + $0x18] sm:$0xf]
        %v3305 = vld [vmem:[%s2853 + $0x1c] sm:$0xf]
        %v3306 = vld [vmem:[%s2853 + $0x20] sm:$0xf]
        %v3307 = vld [vmem:[%s2853 + $0x24] sm:$0xf]
        %v3308 = vld [vmem:[%s2853 + $0x28] sm:$0xf]
        %v3309 = vld [vmem:[%s2853 + $0x2c] sm:$0xf]
        %v3310 = vld [vmem:[%s2853 + $0x30] sm:$0xf]
        %v3311 = vld [vmem:[%s2853 + $0x34] sm:$0xf]
        %v3312 = vld [vmem:[%s2853 + $0x38] sm:$0xf]
        %v3313 = vld [vmem:[%s2853 + $0x3c] sm:$0xf]
        %v3314 = vld [vmem:[%s2853 + $0x40] sm:$0xf]
        %v3315 = vld [vmem:[%s2853 + $0x44] sm:$0xf]
        %v3316 = vld [vmem:[%s2853 + $0x48] sm:$0xf]
        %v3317 = vld [vmem:[%s2853 + $0x4c] sm:$0xf]
        %v3318 = vld [vmem:[%s2853 + $0x50] sm:$0xf]
        %v3319 = vld [vmem:[%s2853 + $0x54] sm:$0xf]
        %v3340 = vunpack.c.l.b16 %v3300
        %v3341 = vunpack.c.l.b16 %v3301
        %v3342 = vunpack.c.l.b16 %v3302
        %v3343 = vunpack.c.l.b16 %v3303
        %v3344 = vunpack.c.l.b16 %v3304
        %v3345 = vunpack.c.l.b16 %v3305
        %v3346 = vunpack.c.l.b16 %v3306
        %v3347 = vunpack.c.l.b16 %v3307
        %v3348 = vunpack.c.l.b16 %v3308
        %v3349 = vunpack.c.l.b16 %v3309
        %v3350 = vunpack.c.l.b16 %v3310
        %v3351 = vunpack.c.l.b16 %v3311
        %v3352 = vunpack.c.l.b16 %v3312
        %v3353 = vunpack.c.l.b16 %v3313
        %v3354 = vunpack.c.l.b16 %v3314
        %v3355 = vunpack.c.l.b16 %v3315
        %v3356 = vunpack.c.l.b16 %v3316
        %v3357 = vunpack.c.l.b16 %v3317
        %v3358 = vunpack.c.l.b16 %v3318
        %v3359 = vunpack.c.l.b16 %v3319
        %v3360 = vpack.c.b16 %v3341, %v3340
        %v3361 = vpack.c.b16 %v3343, %v3342
        %v3362 = vpack.c.b16 %v3345, %v3344
        %v3363 = vpack.c.b16 %v3347, %v3346
        %v3364 = vpack.c.b16 %v3349, %v3348
        %v3365 = vpack.c.b16 %v3351, %v3350
        %v3366 = vpack.c.b16 %v3353, %v3352
        %v3367 = vpack.c.b16 %v3355, %v3354
        %v3368 = vpack.c.b16 %v3357, %v3356
        %v3369 = vpack.c.b16 %v3359, %v3358
        %3370 = vrot.lane.b32.xlu0 %v3360, 84
        %v3371 = vpop.permute.xlu0 %3370
        %3372 = vrot.lane.b32.xlu0 %v3361, 84
        %v3373 = vpop.permute.xlu0 %3372
        %3374 = vrot.lane.b32.xlu0 %v3362, 84
        %v3375 = vpop.permute.xlu0 %3374
        %3376 = vrot.lane.b32.xlu0 %v3363, 84
        %v3377 = vpop.permute.xlu0 %3376
        %3378 = vrot.lane.b32.xlu0 %v3364, 84
        %v3379 = vpop.permute.xlu0 %3378
        %3380 = vrot.lane.b32.xlu0 %v3365, 84
        %v3381 = vpop.permute.xlu0 %3380
        %3382 = vrot.lane.b32.xlu0 %v3366, 84
        %v3383 = vpop.permute.xlu0 %3382
        %3384 = vrot.lane.b32.xlu0 %v3367, 84
        %v3385 = vpop.permute.xlu0 %3384
        %3386 = vrot.lane.b32.xlu0 %v3368, 84
        %v3387 = vpop.permute.xlu0 %3386
        %3388 = vrot.lane.b32.xlu0 %v3369, 84
        %v3389 = vpop.permute.xlu0 %3388
        %vm3400 = vcmask 720544
        %3401 = vst.msk [vmem:[#allocation2] sm:$0xff] %vm3400, %v3371
        %3402 = vst.msk [vmem:[#allocation2 + $0x8] sm:$0xff] %vm3400, %v3373
        %3403 = vst.msk [vmem:[#allocation2 + $0x10] sm:$0xff] %vm3400, %v3375
        %3404 = vst.msk [vmem:[#allocation2 + $0x18] sm:$0xff] %vm3400, %v3377
        %3405 = vst.msk [vmem:[#allocation2 + $0x20] sm:$0xff] %vm3400, %v3379
        %3406 = vst.msk [vmem:[#allocation2 + $0x28] sm:$0xff] %vm3400, %v3381
        %3407 = vst.msk [vmem:[#allocation2 + $0x30] sm:$0xff] %vm3400, %v3383
        %3408 = vst.msk [vmem:[#allocation2 + $0x38] sm:$0xff] %vm3400, %v3385
        %3409 = vst.msk [vmem:[#allocation2 + $0x40] sm:$0xff] %vm3400, %v3387
        %3410 = vst.msk [vmem:[#allocation2 + $0x48] sm:$0xff] %vm3400, %v3389
        %v3411 = vld [vmem:[%s2853 + $0x8] sm:$0xf]
        %v3412 = vld [vmem:[%s2853 + $0xc] sm:$0xf]
        %v3413 = vld [vmem:[%s2853 + $0x10] sm:$0xf]
        %v3414 = vld [vmem:[%s2853 + $0x14] sm:$0xf]
        %v3415 = vld [vmem:[%s2853 + $0x18] sm:$0xf]
        %v3416 = vld [vmem:[%s2853 + $0x1c] sm:$0xf]
        %v3417 = vld [vmem:[%s2853 + $0x20] sm:$0xf]
        %v3418 = vld [vmem:[%s2853 + $0x24] sm:$0xf]
        %v3419 = vld [vmem:[%s2853 + $0x28] sm:$0xf]
        %v3420 = vld [vmem:[%s2853 + $0x2c] sm:$0xf]
        %v3421 = vld [vmem:[%s2853 + $0x30] sm:$0xf]
        %v3422 = vld [vmem:[%s2853 + $0x34] sm:$0xf]
        %v3423 = vld [vmem:[%s2853 + $0x38] sm:$0xf]
        %v3424 = vld [vmem:[%s2853 + $0x3c] sm:$0xf]
        %v3425 = vld [vmem:[%s2853 + $0x40] sm:$0xf]
        %v3426 = vld [vmem:[%s2853 + $0x44] sm:$0xf]
        %v3427 = vld [vmem:[%s2853 + $0x48] sm:$0xf]
        %v3428 = vld [vmem:[%s2853 + $0x4c] sm:$0xf]
        %v3429 = vld [vmem:[%s2853 + $0x50] sm:$0xf]
        %v3430 = vld [vmem:[%s2853 + $0x54] sm:$0xf]
        %v3431 = vld [vmem:[%s2853 + $0x58] sm:$0x1]
        %v3453 = vunpack.c.l.b16 %v3411
        %v3454 = vunpack.c.l.b16 %v3412
        %v3455 = vunpack.c.l.b16 %v3413
        %v3456 = vunpack.c.l.b16 %v3414
        %v3457 = vunpack.c.l.b16 %v3415
        %v3458 = vunpack.c.l.b16 %v3416
        %v3459 = vunpack.c.l.b16 %v3417
        %v3460 = vunpack.c.l.b16 %v3418
        %v3461 = vunpack.c.l.b16 %v3419
        %v3462 = vunpack.c.l.b16 %v3420
        %v3463 = vunpack.c.l.b16 %v3421
        %v3464 = vunpack.c.l.b16 %v3422
        %v3465 = vunpack.c.l.b16 %v3423
        %v3466 = vunpack.c.l.b16 %v3424
        %v3467 = vunpack.c.l.b16 %v3425
        %v3468 = vunpack.c.l.b16 %v3426
        %v3469 = vunpack.c.l.b16 %v3427
        %v3470 = vunpack.c.l.b16 %v3428
        %v3471 = vunpack.c.l.b16 %v3429
        %v3472 = vunpack.c.l.b16 %v3430
        %v3473 = vunpack.c.l.b16 %v3431
        %v3474 = vpack.c.b16 %v3454, %v3453
        %v3475 = vpack.c.b16 %v3456, %v3455
        %v3476 = vpack.c.b16 %v3458, %v3457
        %v3477 = vpack.c.b16 %v3460, %v3459
        %v3478 = vpack.c.b16 %v3462, %v3461
        %v3479 = vpack.c.b16 %v3464, %v3463
        %v3480 = vpack.c.b16 %v3466, %v3465
        %v3481 = vpack.c.b16 %v3468, %v3467
        %v3482 = vpack.c.b16 %v3470, %v3469
        %v3483 = vpack.c.b16 %v3472, %v3471
        %v3484 = vpack.c.b16 %v3473, %v3473
        %v3486 = vshrl.u32 %v3474, 16
        %v3488 = vshll.u32 %v3474, 16
        %v3490 = vrot.slane %v3488, 1
        %v3491 = vor.u32 %v3486, %v3490
        %v3493 = vshll.u32 %v3475, 16
        %v3495 = vrot.slane %v3493, 1
        %v3496 = vsel %vm353, %v3491, %v3495
        %v3497 = vshrl.u32 %v3475, 16
        %v3499 = vor.u32 %v3497, %v3495
        %v3501 = vshll.u32 %v3476, 16
        %v3503 = vrot.slane %v3501, 1
        %v3504 = vsel %vm353, %v3499, %v3503
        %v3505 = vshrl.u32 %v3476, 16
        %v3507 = vor.u32 %v3505, %v3503
        %v3509 = vshll.u32 %v3477, 16
        %v3511 = vrot.slane %v3509, 1
        %v3512 = vsel %vm353, %v3507, %v3511
        %v3513 = vshrl.u32 %v3477, 16
        %v3515 = vor.u32 %v3513, %v3511
        %v3517 = vshll.u32 %v3478, 16
        %v3519 = vrot.slane %v3517, 1
        %v3520 = vsel %vm353, %v3515, %v3519
        %v3521 = vshrl.u32 %v3478, 16
        %v3523 = vor.u32 %v3521, %v3519
        %v3525 = vshll.u32 %v3479, 16
        %v3527 = vrot.slane %v3525, 1
        %v3528 = vsel %vm353, %v3523, %v3527
        %v3529 = vshrl.u32 %v3479, 16
        %v3531 = vor.u32 %v3529, %v3527
        %v3533 = vshll.u32 %v3480, 16
        %v3535 = vrot.slane %v3533, 1
        %v3536 = vsel %vm353, %v3531, %v3535
        %v3537 = vshrl.u32 %v3480, 16
        %v3539 = vor.u32 %v3537, %v3535
        %v3541 = vshll.u32 %v3481, 16
        %v3543 = vrot.slane %v3541, 1
        %v3544 = vsel %vm353, %v3539, %v3543
        %v3545 = vshrl.u32 %v3481, 16
        %v3547 = vor.u32 %v3545, %v3543
        %v3549 = vshll.u32 %v3482, 16
        %v3551 = vrot.slane %v3549, 1
        %v3552 = vsel %vm353, %v3547, %v3551
        %v3553 = vshrl.u32 %v3482, 16
        %v3555 = vor.u32 %v3553, %v3551
        %v3557 = vshll.u32 %v3483, 16
        %v3559 = vrot.slane %v3557, 1
        %v3560 = vsel %vm353, %v3555, %v3559
        %v3561 = vshrl.u32 %v3483, 16
        %v3563 = vor.u32 %v3561, %v3559
        %v3565 = vshll.u32 %v3484, 16
        %v3567 = vrot.slane %v3565, 1
        %v3568 = vsel %vm353, %v3563, %v3567
        %3569 = vrot.lane.b32.xlu0 %v3496, 88
        %v3570 = vpop.permute.xlu0 %3569
        %3571 = vrot.lane.b32.xlu0 %v3504, 88
        %v3572 = vpop.permute.xlu0 %3571
        %3573 = vrot.lane.b32.xlu0 %v3512, 88
        %v3574 = vpop.permute.xlu0 %3573
        %3575 = vrot.lane.b32.xlu0 %v3520, 88
        %v3576 = vpop.permute.xlu0 %3575
        %3577 = vrot.lane.b32.xlu0 %v3528, 88
        %v3578 = vpop.permute.xlu0 %3577
        %3579 = vrot.lane.b32.xlu0 %v3536, 88
        %v3580 = vpop.permute.xlu0 %3579
        %3581 = vrot.lane.b32.xlu0 %v3544, 88
        %v3582 = vpop.permute.xlu0 %3581
        %3583 = vrot.lane.b32.xlu0 %v3552, 88
        %v3584 = vpop.permute.xlu0 %3583
        %3585 = vrot.lane.b32.xlu0 %v3560, 88
        %v3586 = vpop.permute.xlu0 %3585
        %3587 = vrot.lane.b32.xlu0 %v3568, 88
        %v3588 = vpop.permute.xlu0 %3587
        %vm3599 = vcmask 753344
        %3600 = vst.msk [vmem:[#allocation2] sm:$0xff] %vm3599, %v3570
        %3601 = vst.msk [vmem:[#allocation2 + $0x8] sm:$0xff] %vm3599, %v3572
        %3602 = vst.msk [vmem:[#allocation2 + $0x10] sm:$0xff] %vm3599, %v3574
        %3603 = vst.msk [vmem:[#allocation2 + $0x18] sm:$0xff] %vm3599, %v3576
        %3604 = vst.msk [vmem:[#allocation2 + $0x20] sm:$0xff] %vm3599, %v3578
        %3605 = vst.msk [vmem:[#allocation2 + $0x28] sm:$0xff] %vm3599, %v3580
        %3606 = vst.msk [vmem:[#allocation2 + $0x30] sm:$0xff] %vm3599, %v3582
        %3607 = vst.msk [vmem:[#allocation2 + $0x38] sm:$0xff] %vm3599, %v3584
        %3608 = vst.msk [vmem:[#allocation2 + $0x40] sm:$0xff] %vm3599, %v3586
        %3609 = vst.msk [vmem:[#allocation2 + $0x48] sm:$0xff] %vm3599, %v3588
        %v3610 = vld [vmem:[%s2853 + $0x8] sm:$0xe]
        %v3611 = vld [vmem:[%s2853 + $0xc] sm:$0xf]
        %v3612 = vld [vmem:[%s2853 + $0x10] sm:$0xf]
        %v3613 = vld [vmem:[%s2853 + $0x14] sm:$0xf]
        %v3614 = vld [vmem:[%s2853 + $0x18] sm:$0xf]
        %v3615 = vld [vmem:[%s2853 + $0x1c] sm:$0xf]
        %v3616 = vld [vmem:[%s2853 + $0x20] sm:$0xf]
        %v3617 = vld [vmem:[%s2853 + $0x24] sm:$0xf]
        %v3618 = vld [vmem:[%s2853 + $0x28] sm:$0xf]
        %v3619 = vld [vmem:[%s2853 + $0x2c] sm:$0xf]
        %v3620 = vld [vmem:[%s2853 + $0x30] sm:$0xf]
        %v3621 = vld [vmem:[%s2853 + $0x34] sm:$0xf]
        %v3622 = vld [vmem:[%s2853 + $0x38] sm:$0xf]
        %v3623 = vld [vmem:[%s2853 + $0x3c] sm:$0xf]
        %v3624 = vld [vmem:[%s2853 + $0x40] sm:$0xf]
        %v3625 = vld [vmem:[%s2853 + $0x44] sm:$0xf]
        %v3626 = vld [vmem:[%s2853 + $0x48] sm:$0xf]
        %v3627 = vld [vmem:[%s2853 + $0x4c] sm:$0xf]
        %v3628 = vld [vmem:[%s2853 + $0x50] sm:$0xf]
        %v3629 = vld [vmem:[%s2853 + $0x54] sm:$0xf]
        %v3630 = vld [vmem:[%s2853 + $0x58] sm:$0x1]
        %v3652 = vunpack.c.l.b16 %v3610
        %v3653 = vunpack.c.l.b16 %v3611
        %v3654 = vunpack.c.l.b16 %v3612
        %v3655 = vunpack.c.l.b16 %v3613
        %v3656 = vunpack.c.l.b16 %v3614
        %v3657 = vunpack.c.l.b16 %v3615
        %v3658 = vunpack.c.l.b16 %v3616
        %v3659 = vunpack.c.l.b16 %v3617
        %v3660 = vunpack.c.l.b16 %v3618
        %v3661 = vunpack.c.l.b16 %v3619
        %v3662 = vunpack.c.l.b16 %v3620
        %v3663 = vunpack.c.l.b16 %v3621
        %v3664 = vunpack.c.l.b16 %v3622
        %v3665 = vunpack.c.l.b16 %v3623
        %v3666 = vunpack.c.l.b16 %v3624
        %v3667 = vunpack.c.l.b16 %v3625
        %v3668 = vunpack.c.l.b16 %v3626
        %v3669 = vunpack.c.l.b16 %v3627
        %v3670 = vunpack.c.l.b16 %v3628
        %v3671 = vunpack.c.l.b16 %v3629
        %v3672 = vunpack.c.l.b16 %v3630
        %v3673 = vpack.c.b16 %v3653, %v3652
        %v3674 = vpack.c.b16 %v3655, %v3654
        %v3675 = vpack.c.b16 %v3657, %v3656
        %v3676 = vpack.c.b16 %v3659, %v3658
        %v3677 = vpack.c.b16 %v3661, %v3660
        %v3678 = vpack.c.b16 %v3663, %v3662
        %v3679 = vpack.c.b16 %v3665, %v3664
        %v3680 = vpack.c.b16 %v3667, %v3666
        %v3681 = vpack.c.b16 %v3669, %v3668
        %v3682 = vpack.c.b16 %v3671, %v3670
        %v3683 = vpack.c.b16 %v3672, %v3672
        %v3684 = vrot.slane %v3673, 1
        %v3685 = vrot.slane %v3674, 1
        %v3686 = vsel %vm553, %v3684, %v3685
        %v3687 = vrot.slane %v3675, 1
        %v3688 = vsel %vm553, %v3685, %v3687
        %v3689 = vrot.slane %v3676, 1
        %v3690 = vsel %vm553, %v3687, %v3689
        %v3691 = vrot.slane %v3677, 1
        %v3692 = vsel %vm553, %v3689, %v3691
        %v3693 = vrot.slane %v3678, 1
        %v3694 = vsel %vm553, %v3691, %v3693
        %v3695 = vrot.slane %v3679, 1
        %v3696 = vsel %vm553, %v3693, %v3695
        %v3697 = vrot.slane %v3680, 1
        %v3698 = vsel %vm553, %v3695, %v3697
        %v3699 = vrot.slane %v3681, 1
        %v3700 = vsel %vm553, %v3697, %v3699
        %v3701 = vrot.slane %v3682, 1
        %v3702 = vsel %vm553, %v3699, %v3701
        %v3703 = vrot.slane %v3683, 1
        %v3704 = vsel %vm553, %v3701, %v3703
        %3705 = vrot.lane.b32.xlu0 %v3686, 92
        %v3706 = vpop.permute.xlu0 %3705
        %3707 = vrot.lane.b32.xlu0 %v3688, 92
        %v3708 = vpop.permute.xlu0 %3707
        %3709 = vrot.lane.b32.xlu0 %v3690, 92
        %v3710 = vpop.permute.xlu0 %3709
        %3711 = vrot.lane.b32.xlu0 %v3692, 92
        %v3712 = vpop.permute.xlu0 %3711
        %3713 = vrot.lane.b32.xlu0 %v3694, 92
        %v3714 = vpop.permute.xlu0 %3713
        %3715 = vrot.lane.b32.xlu0 %v3696, 92
        %v3716 = vpop.permute.xlu0 %3715
        %3717 = vrot.lane.b32.xlu0 %v3698, 92
        %v3718 = vpop.permute.xlu0 %3717
        %3719 = vrot.lane.b32.xlu0 %v3700, 92
        %v3720 = vpop.permute.xlu0 %3719
        %3721 = vrot.lane.b32.xlu0 %v3702, 92
        %v3722 = vpop.permute.xlu0 %3721
        %3723 = vrot.lane.b32.xlu0 %v3704, 92
        %v3724 = vpop.permute.xlu0 %3723
        %vm3735 = vcmask 786144
        %3736 = vst.msk [vmem:[#allocation2] sm:$0xff] %vm3735, %v3706
        %3737 = vst.msk [vmem:[#allocation2 + $0x8] sm:$0xff] %vm3735, %v3708
        %3738 = vst.msk [vmem:[#allocation2 + $0x10] sm:$0xff] %vm3735, %v3710
        %3739 = vst.msk [vmem:[#allocation2 + $0x18] sm:$0xff] %vm3735, %v3712
        %3740 = vst.msk [vmem:[#allocation2 + $0x20] sm:$0xff] %vm3735, %v3714
        %3741 = vst.msk [vmem:[#allocation2 + $0x28] sm:$0xff] %vm3735, %v3716
        %3742 = vst.msk [vmem:[#allocation2 + $0x30] sm:$0xff] %vm3735, %v3718
        %3743 = vst.msk [vmem:[#allocation2 + $0x38] sm:$0xff] %vm3735, %v3720
        %3744 = vst.msk [vmem:[#allocation2 + $0x40] sm:$0xff] %vm3735, %v3722
        %3745 = vst.msk [vmem:[#allocation2 + $0x48] sm:$0xff] %vm3735, %v3724
        %v3746 = vld [vmem:[%s2853 + $0x10] sm:$0xf]
        %v3747 = vld [vmem:[%s2853 + $0x14] sm:$0xf]
        %v3748 = vld [vmem:[%s2853 + $0x18] sm:$0xf]
        %v3749 = vld [vmem:[%s2853 + $0x1c] sm:$0xf]
        %v3750 = vld [vmem:[%s2853 + $0x20] sm:$0xf]
        %v3751 = vld [vmem:[%s2853 + $0x24] sm:$0xf]
        %v3752 = vld [vmem:[%s2853 + $0x28] sm:$0xf]
        %v3753 = vld [vmem:[%s2853 + $0x2c] sm:$0xf]
        %v3754 = vld [vmem:[%s2853 + $0x30] sm:$0xf]
        %v3755 = vld [vmem:[%s2853 + $0x34] sm:$0xf]
        %v3756 = vld [vmem:[%s2853 + $0x38] sm:$0xf]
        %v3757 = vld [vmem:[%s2853 + $0x3c] sm:$0xf]
        %v3758 = vld [vmem:[%s2853 + $0x40] sm:$0xf]
        %v3759 = vld [vmem:[%s2853 + $0x44] sm:$0xf]
        %v3760 = vld [vmem:[%s2853 + $0x48] sm:$0xf]
        %v3761 = vld [vmem:[%s2853 + $0x4c] sm:$0xf]
        %v3762 = vld [vmem:[%s2853 + $0x50] sm:$0xf]
        %v3763 = vld [vmem:[%s2853 + $0x54] sm:$0xf]
        %v3764 = vld [vmem:[%s2853 + $0x58] sm:$0xf]
        %v3765 = vld [vmem:[%s2853 + $0x5c] sm:$0xf]
        %v3786 = vunpack.c.l.b16 %v3746
        %v3787 = vunpack.c.l.b16 %v3747
        %v3788 = vunpack.c.l.b16 %v3748
        %v3789 = vunpack.c.l.b16 %v3749
        %v3790 = vunpack.c.l.b16 %v3750
        %v3791 = vunpack.c.l.b16 %v3751
        %v3792 = vunpack.c.l.b16 %v3752
        %v3793 = vunpack.c.l.b16 %v3753
        %v3794 = vunpack.c.l.b16 %v3754
        %v3795 = vunpack.c.l.b16 %v3755
        %v3796 = vunpack.c.l.b16 %v3756
        %v3797 = vunpack.c.l.b16 %v3757
        %v3798 = vunpack.c.l.b16 %v3758
        %v3799 = vunpack.c.l.b16 %v3759
        %v3800 = vunpack.c.l.b16 %v3760
        %v3801 = vunpack.c.l.b16 %v3761
        %v3802 = vunpack.c.l.b16 %v3762
        %v3803 = vunpack.c.l.b16 %v3763
        %v3804 = vunpack.c.l.b16 %v3764
        %v3805 = vunpack.c.l.b16 %v3765
        %v3806 = vpack.c.b16 %v3787, %v3786
        %v3807 = vpack.c.b16 %v3789, %v3788
        %v3808 = vpack.c.b16 %v3791, %v3790
        %v3809 = vpack.c.b16 %v3793, %v3792
        %v3810 = vpack.c.b16 %v3795, %v3794
        %v3811 = vpack.c.b16 %v3797, %v3796
        %v3812 = vpack.c.b16 %v3799, %v3798
        %v3813 = vpack.c.b16 %v3801, %v3800
        %v3814 = vpack.c.b16 %v3803, %v3802
        %v3815 = vpack.c.b16 %v3805, %v3804
        %3816 = vrot.lane.b32.xlu0 %v3806, 96
        %v3817 = vpop.permute.xlu0 %3816
        %3818 = vrot.lane.b32.xlu0 %v3807, 96
        %v3819 = vpop.permute.xlu0 %3818
        %3820 = vrot.lane.b32.xlu0 %v3808, 96
        %v3821 = vpop.permute.xlu0 %3820
        %3822 = vrot.lane.b32.xlu0 %v3809, 96
        %v3823 = vpop.permute.xlu0 %3822
        %3824 = vrot.lane.b32.xlu0 %v3810, 96
        %v3825 = vpop.permute.xlu0 %3824
        %3826 = vrot.lane.b32.xlu0 %v3811, 96
        %v3827 = vpop.permute.xlu0 %3826
        %3828 = vrot.lane.b32.xlu0 %v3812, 96
        %v3829 = vpop.permute.xlu0 %3828
        %3830 = vrot.lane.b32.xlu0 %v3813, 96
        %v3831 = vpop.permute.xlu0 %3830
        %3832 = vrot.lane.b32.xlu0 %v3814, 96
        %v3833 = vpop.permute.xlu0 %3832
        %3834 = vrot.lane.b32.xlu0 %v3815, 96
        %v3835 = vpop.permute.xlu0 %3834
        %vm3846 = vcmask 818944
        %3847 = vst.msk [vmem:[#allocation2] sm:$0xff] %vm3846, %v3817
        %3848 = vst.msk [vmem:[#allocation2 + $0x8] sm:$0xff] %vm3846, %v3819
        %3849 = vst.msk [vmem:[#allocation2 + $0x10] sm:$0xff] %vm3846, %v3821
        %3850 = vst.msk [vmem:[#allocation2 + $0x18] sm:$0xff] %vm3846, %v3823
        %3851 = vst.msk [vmem:[#allocation2 + $0x20] sm:$0xff] %vm3846, %v3825
        %3852 = vst.msk [vmem:[#allocation2 + $0x28] sm:$0xff] %vm3846, %v3827
        %3853 = vst.msk [vmem:[#allocation2 + $0x30] sm:$0xff] %vm3846, %v3829
        %3854 = vst.msk [vmem:[#allocation2 + $0x38] sm:$0xff] %vm3846, %v3831
        %3855 = vst.msk [vmem:[#allocation2 + $0x40] sm:$0xff] %vm3846, %v3833
        %3856 = vst.msk [vmem:[#allocation2 + $0x48] sm:$0xff] %vm3846, %v3835
        %v3857 = vld [vmem:[%s2853 + $0x10] sm:$0xf]
        %v3858 = vld [vmem:[%s2853 + $0x14] sm:$0xf]
        %v3859 = vld [vmem:[%s2853 + $0x18] sm:$0xf]
        %v3860 = vld [vmem:[%s2853 + $0x1c] sm:$0xf]
        %v3861 = vld [vmem:[%s2853 + $0x20] sm:$0xf]
        %v3862 = vld [vmem:[%s2853 + $0x24] sm:$0xf]
        %v3863 = vld [vmem:[%s2853 + $0x28] sm:$0xf]
        %v3864 = vld [vmem:[%s2853 + $0x2c] sm:$0xf]
        %v3865 = vld [vmem:[%s2853 + $0x30] sm:$0xf]
        %v3866 = vld [vmem:[%s2853 + $0x34] sm:$0xf]
        %v3867 = vld [vmem:[%s2853 + $0x38] sm:$0xf]
        %v3868 = vld [vmem:[%s2853 + $0x3c] sm:$0xf]
        %v3869 = vld [vmem:[%s2853 + $0x40] sm:$0xf]
        %v3870 = vld [vmem:[%s2853 + $0x44] sm:$0xf]
        %v3871 = vld [vmem:[%s2853 + $0x48] sm:$0xf]
        %v3872 = vld [vmem:[%s2853 + $0x4c] sm:$0xf]
        %v3873 = vld [vmem:[%s2853 + $0x50] sm:$0xf]
        %v3874 = vld [vmem:[%s2853 + $0x54] sm:$0xf]
        %v3875 = vld [vmem:[%s2853 + $0x58] sm:$0xf]
        %v3876 = vld [vmem:[%s2853 + $0x5c] sm:$0xf]
        %v3877 = vld [vmem:[%s2853 + $0x60] sm:$0x1]
        %v3899 = vunpack.c.l.b16 %v3857
        %v3900 = vunpack.c.l.b16 %v3858
        %v3901 = vunpack.c.l.b16 %v3859
        %v3902 = vunpack.c.l.b16 %v3860
        %v3903 = vunpack.c.l.b16 %v3861
        %v3904 = vunpack.c.l.b16 %v3862
        %v3905 = vunpack.c.l.b16 %v3863
        %v3906 = vunpack.c.l.b16 %v3864
        %v3907 = vunpack.c.l.b16 %v3865
        %v3908 = vunpack.c.l.b16 %v3866
        %v3909 = vunpack.c.l.b16 %v3867
        %v3910 = vunpack.c.l.b16 %v3868
        %v3911 = vunpack.c.l.b16 %v3869
        %v3912 = vunpack.c.l.b16 %v3870
        %v3913 = vunpack.c.l.b16 %v3871
        %v3914 = vunpack.c.l.b16 %v3872
        %v3915 = vunpack.c.l.b16 %v3873
        %v3916 = vunpack.c.l.b16 %v3874
        %v3917 = vunpack.c.l.b16 %v3875
        %v3918 = vunpack.c.l.b16 %v3876
        %v3919 = vunpack.c.l.b16 %v3877
        %v3920 = vpack.c.b16 %v3900, %v3899
        %v3921 = vpack.c.b16 %v3902, %v3901
        %v3922 = vpack.c.b16 %v3904, %v3903
        %v3923 = vpack.c.b16 %v3906, %v3905
        %v3924 = vpack.c.b16 %v3908, %v3907
        %v3925 = vpack.c.b16 %v3910, %v3909
        %v3926 = vpack.c.b16 %v3912, %v3911
        %v3927 = vpack.c.b16 %v3914, %v3913
        %v3928 = vpack.c.b16 %v3916, %v3915
        %v3929 = vpack.c.b16 %v3918, %v3917
        %v3930 = vpack.c.b16 %v3919, %v3919
        %v3932 = vshrl.u32 %v3920, 16
        %v3934 = vshll.u32 %v3920, 16
        %v3936 = vrot.slane %v3934, 1
        %v3937 = vor.u32 %v3932, %v3936
        %v3939 = vshll.u32 %v3921, 16
        %v3941 = vrot.slane %v3939, 1
        %v3942 = vsel %vm353, %v3937, %v3941
        %v3943 = vshrl.u32 %v3921, 16
        %v3945 = vor.u32 %v3943, %v3941
        %v3947 = vshll.u32 %v3922, 16
        %v3949 = vrot.slane %v3947, 1
        %v3950 = vsel %vm353, %v3945, %v3949
        %v3951 = vshrl.u32 %v3922, 16
        %v3953 = vor.u32 %v3951, %v3949
        %v3955 = vshll.u32 %v3923, 16
        %v3957 = vrot.slane %v3955, 1
        %v3958 = vsel %vm353, %v3953, %v3957
        %v3959 = vshrl.u32 %v3923, 16
        %v3961 = vor.u32 %v3959, %v3957
        %v3963 = vshll.u32 %v3924, 16
        %v3965 = vrot.slane %v3963, 1
        %v3966 = vsel %vm353, %v3961, %v3965
        %v3967 = vshrl.u32 %v3924, 16
        %v3969 = vor.u32 %v3967, %v3965
        %v3971 = vshll.u32 %v3925, 16
        %v3973 = vrot.slane %v3971, 1
        %v3974 = vsel %vm353, %v3969, %v3973
        %v3975 = vshrl.u32 %v3925, 16
        %v3977 = vor.u32 %v3975, %v3973
        %v3979 = vshll.u32 %v3926, 16
        %v3981 = vrot.slane %v3979, 1
        %v3982 = vsel %vm353, %v3977, %v3981
        %v3983 = vshrl.u32 %v3926, 16
        %v3985 = vor.u32 %v3983, %v3981
        %v3987 = vshll.u32 %v3927, 16
        %v3989 = vrot.slane %v3987, 1
        %v3990 = vsel %vm353, %v3985, %v3989
        %v3991 = vshrl.u32 %v3927, 16
        %v3993 = vor.u32 %v3991, %v3989
        %v3995 = vshll.u32 %v3928, 16
        %v3997 = vrot.slane %v3995, 1
        %v3998 = vsel %vm353, %v3993, %v3997
        %v3999 = vshrl.u32 %v3928, 16
        %v4001 = vor.u32 %v3999, %v3997
        %v4003 = vshll.u32 %v3929, 16
        %v4005 = vrot.slane %v4003, 1
        %v4006 = vsel %vm353, %v4001, %v4005
        %v4007 = vshrl.u32 %v3929, 16
        %v4009 = vor.u32 %v4007, %v4005
        %v4011 = vshll.u32 %v3930, 16
        %v4013 = vrot.slane %v4011, 1
        %v4014 = vsel %vm353, %v4009, %v4013
        %4015 = vrot.lane.b32.xlu0 %v3942, 100
        %v4016 = vpop.permute.xlu0 %4015
        %4017 = vrot.lane.b32.xlu0 %v3950, 100
        %v4018 = vpop.permute.xlu0 %4017
        %4019 = vrot.lane.b32.xlu0 %v3958, 100
        %v4020 = vpop.permute.xlu0 %4019
        %4021 = vrot.lane.b32.xlu0 %v3966, 100
        %v4022 = vpop.permute.xlu0 %4021
        %4023 = vrot.lane.b32.xlu0 %v3974, 100
        %v4024 = vpop.permute.xlu0 %4023
        %4025 = vrot.lane.b32.xlu0 %v3982, 100
        %v4026 = vpop.permute.xlu0 %4025
        %4027 = vrot.lane.b32.xlu0 %v3990, 100
        %v4028 = vpop.permute.xlu0 %4027
        %4029 = vrot.lane.b32.xlu0 %v3998, 100
        %v4030 = vpop.permute.xlu0 %4029
        %4031 = vrot.lane.b32.xlu0 %v4006, 100
        %v4032 = vpop.permute.xlu0 %4031
        %4033 = vrot.lane.b32.xlu0 %v4014, 100
        %v4034 = vpop.permute.xlu0 %4033
        %vm4045 = vcmask 851744
        %4046 = vst.msk [vmem:[#allocation2] sm:$0xff] %vm4045, %v4016
        %4047 = vst.msk [vmem:[#allocation2 + $0x8] sm:$0xff] %vm4045, %v4018
        %4048 = vst.msk [vmem:[#allocation2 + $0x10] sm:$0xff] %vm4045, %v4020
        %4049 = vst.msk [vmem:[#allocation2 + $0x18] sm:$0xff] %vm4045, %v4022
        %4050 = vst.msk [vmem:[#allocation2 + $0x20] sm:$0xff] %vm4045, %v4024
        %4051 = vst.msk [vmem:[#allocation2 + $0x28] sm:$0xff] %vm4045, %v4026
        %4052 = vst.msk [vmem:[#allocation2 + $0x30] sm:$0xff] %vm4045, %v4028
        %4053 = vst.msk [vmem:[#allocation2 + $0x38] sm:$0xff] %vm4045, %v4030
        %4054 = vst.msk [vmem:[#allocation2 + $0x40] sm:$0xff] %vm4045, %v4032
        %4055 = vst.msk [vmem:[#allocation2 + $0x48] sm:$0xff] %vm4045, %v4034
        %v4056 = vld [vmem:[%s2853 + $0x10] sm:$0xe]
        %v4057 = vld [vmem:[%s2853 + $0x14] sm:$0xf]
        %v4058 = vld [vmem:[%s2853 + $0x18] sm:$0xf]
        %v4059 = vld [vmem:[%s2853 + $0x1c] sm:$0xf]
        %v4060 = vld [vmem:[%s2853 + $0x20] sm:$0xf]
        %v4061 = vld [vmem:[%s2853 + $0x24] sm:$0xf]
        %v4062 = vld [vmem:[%s2853 + $0x28] sm:$0xf]
        %v4063 = vld [vmem:[%s2853 + $0x2c] sm:$0xf]
        %v4064 = vld [vmem:[%s2853 + $0x30] sm:$0xf]
        %v4065 = vld [vmem:[%s2853 + $0x34] sm:$0xf]
        %v4066 = vld [vmem:[%s2853 + $0x38] sm:$0xf]
        %v4067 = vld [vmem:[%s2853 + $0x3c] sm:$0xf]
        %v4068 = vld [vmem:[%s2853 + $0x40] sm:$0xf]
        %v4069 = vld [vmem:[%s2853 + $0x44] sm:$0xf]
        %v4070 = vld [vmem:[%s2853 + $0x48] sm:$0xf]
        %v4071 = vld [vmem:[%s2853 + $0x4c] sm:$0xf]
        %v4072 = vld [vmem:[%s2853 + $0x50] sm:$0xf]
        %v4073 = vld [vmem:[%s2853 + $0x54] sm:$0xf]
        %v4074 = vld [vmem:[%s2853 + $0x58] sm:$0xf]
        %v4075 = vld [vmem:[%s2853 + $0x5c] sm:$0xf]
        %v4076 = vld [vmem:[%s2853 + $0x60] sm:$0x1]
        %v4098 = vunpack.c.l.b16 %v4056
        %v4099 = vunpack.c.l.b16 %v4057
        %v4100 = vunpack.c.l.b16 %v4058
        %v4101 = vunpack.c.l.b16 %v4059
        %v4102 = vunpack.c.l.b16 %v4060
        %v4103 = vunpack.c.l.b16 %v4061
        %v4104 = vunpack.c.l.b16 %v4062
        %v4105 = vunpack.c.l.b16 %v4063
        %v4106 = vunpack.c.l.b16 %v4064
        %v4107 = vunpack.c.l.b16 %v4065
        %v4108 = vunpack.c.l.b16 %v4066
        %v4109 = vunpack.c.l.b16 %v4067
        %v4110 = vunpack.c.l.b16 %v4068
        %v4111 = vunpack.c.l.b16 %v4069
        %v4112 = vunpack.c.l.b16 %v4070
        %v4113 = vunpack.c.l.b16 %v4071
        %v4114 = vunpack.c.l.b16 %v4072
        %v4115 = vunpack.c.l.b16 %v4073
        %v4116 = vunpack.c.l.b16 %v4074
        %v4117 = vunpack.c.l.b16 %v4075
        %v4118 = vunpack.c.l.b16 %v4076
        %v4119 = vpack.c.b16 %v4099, %v4098
        %v4120 = vpack.c.b16 %v4101, %v4100
        %v4121 = vpack.c.b16 %v4103, %v4102
        %v4122 = vpack.c.b16 %v4105, %v4104
        %v4123 = vpack.c.b16 %v4107, %v4106
        %v4124 = vpack.c.b16 %v4109, %v4108
        %v4125 = vpack.c.b16 %v4111, %v4110
        %v4126 = vpack.c.b16 %v4113, %v4112
        %v4127 = vpack.c.b16 %v4115, %v4114
        %v4128 = vpack.c.b16 %v4117, %v4116
        %v4129 = vpack.c.b16 %v4118, %v4118
        %v4130 = vrot.slane %v4119, 1
        %v4131 = vrot.slane %v4120, 1
        %v4132 = vsel %vm553, %v4130, %v4131
        %v4133 = vrot.slane %v4121, 1
        %v4134 = vsel %vm553, %v4131, %v4133
        %v4135 = vrot.slane %v4122, 1
        %v4136 = vsel %vm553, %v4133, %v4135
        %v4137 = vrot.slane %v4123, 1
        %v4138 = vsel %vm553, %v4135, %v4137
        %v4139 = vrot.slane %v4124, 1
        %v4140 = vsel %vm553, %v4137, %v4139
        %v4141 = vrot.slane %v4125, 1
        %v4142 = vsel %vm553, %v4139, %v4141
        %v4143 = vrot.slane %v4126, 1
        %v4144 = vsel %vm553, %v4141, %v4143
        %v4145 = vrot.slane %v4127, 1
        %v4146 = vsel %vm553, %v4143, %v4145
        %v4147 = vrot.slane %v4128, 1
        %v4148 = vsel %vm553, %v4145, %v4147
        %v4149 = vrot.slane %v4129, 1
        %v4150 = vsel %vm553, %v4147, %v4149
        %4151 = vrot.lane.b32.xlu0 %v4132, 104
        %v4152 = vpop.permute.xlu0 %4151
        %4153 = vrot.lane.b32.xlu0 %v4134, 104
        %v4154 = vpop.permute.xlu0 %4153
        %4155 = vrot.lane.b32.xlu0 %v4136, 104
        %v4156 = vpop.permute.xlu0 %4155
        %4157 = vrot.lane.b32.xlu0 %v4138, 104
        %v4158 = vpop.permute.xlu0 %4157
        %4159 = vrot.lane.b32.xlu0 %v4140, 104
        %v4160 = vpop.permute.xlu0 %4159
        %4161 = vrot.lane.b32.xlu0 %v4142, 104
        %v4162 = vpop.permute.xlu0 %4161
        %4163 = vrot.lane.b32.xlu0 %v4144, 104
        %v4164 = vpop.permute.xlu0 %4163
        %4165 = vrot.lane.b32.xlu0 %v4146, 104
        %v4166 = vpop.permute.xlu0 %4165
        %4167 = vrot.lane.b32.xlu0 %v4148, 104
        %v4168 = vpop.permute.xlu0 %4167
        %4169 = vrot.lane.b32.xlu0 %v4150, 104
        %v4170 = vpop.permute.xlu0 %4169
        %vm4181 = vcmask 884544
        %4182 = vst.msk [vmem:[#allocation2] sm:$0xff] %vm4181, %v4152
        %4183 = vst.msk [vmem:[#allocation2 + $0x8] sm:$0xff] %vm4181, %v4154
        %4184 = vst.msk [vmem:[#allocation2 + $0x10] sm:$0xff] %vm4181, %v4156
        %4185 = vst.msk [vmem:[#allocation2 + $0x18] sm:$0xff] %vm4181, %v4158
        %4186 = vst.msk [vmem:[#allocation2 + $0x20] sm:$0xff] %vm4181, %v4160
        %4187 = vst.msk [vmem:[#allocation2 + $0x28] sm:$0xff] %vm4181, %v4162
        %4188 = vst.msk [vmem:[#allocation2 + $0x30] sm:$0xff] %vm4181, %v4164
        %4189 = vst.msk [vmem:[#allocation2 + $0x38] sm:$0xff] %vm4181, %v4166
        %4190 = vst.msk [vmem:[#allocation2 + $0x40] sm:$0xff] %vm4181, %v4168
        %4191 = vst.msk [vmem:[#allocation2 + $0x48] sm:$0xff] %vm4181, %v4170
        %v4192 = vld [vmem:[#allocation2] sm:$0xff]
        %v4193 = vld [vmem:[#allocation2 + $0x8] sm:$0xff]
        %v4194 = vld [vmem:[#allocation2 + $0x10] sm:$0xff]
        %v4195 = vld [vmem:[#allocation2 + $0x18] sm:$0xff]
        %v4196 = vld [vmem:[#allocation2 + $0x20] sm:$0xff]
        %v4197 = vld [vmem:[#allocation2 + $0x28] sm:$0xff]
        %v4198 = vld [vmem:[#allocation2 + $0x30] sm:$0xff]
        %v4199 = vld [vmem:[#allocation2 + $0x38] sm:$0xff]
        %v4200 = vld [vmem:[#allocation2 + $0x40] sm:$0xff]
        %v4201 = vld [vmem:[#allocation2 + $0x48] sm:$0xff]
        %v4202 = vld [vmem:[%s1] sm:$0xf]
        %v4203 = vld [vmem:[%s1 + $0x4] sm:$0xf]
        %v4204 = vld [vmem:[%s1 + $0x8] sm:$0xf]
        %v4205 = vld [vmem:[%s1 + $0xc] sm:$0xf]
        %v4206 = vld [vmem:[%s1 + $0x10] sm:$0xf]
        %v4207 = vld [vmem:[%s1 + $0x14] sm:$0xf]
        %v4208 = vld [vmem:[%s1 + $0x18] sm:$0xf]
        %v4209 = vld [vmem:[%s1 + $0x1c] sm:$0xf]
        %v4210 = vld [vmem:[%s1 + $0x20] sm:$0xf]
        %v4211 = vld [vmem:[%s1 + $0x24] sm:$0xf]
        %v4212 = vld [vmem:[%s1 + $0x28] sm:$0xf]
        %v4213 = vld [vmem:[%s1 + $0x2c] sm:$0xf]
        %v4214 = vld [vmem:[%s1 + $0x30] sm:$0xf]
        %v4215 = vld [vmem:[%s1 + $0x34] sm:$0x3]
        %v4217 = vlaneseq
        %v4218 = vshrl.u32 %v4217, 7
        %v4219 = vsub.s32 0, %v4218
        %v4220 = vrot.slane %v184, %v4219
        %v4236 = vunpack.c.l.b16 %v4202
        %v4237 = vunpack.c.l.b16 %v4203
        %v4238 = vunpack.c.l.b16 %v4204
        %v4239 = vunpack.c.l.b16 %v4205
        %v4240 = vunpack.c.l.b16 %v4206
        %v4241 = vunpack.c.l.b16 %v4207
        %v4242 = vunpack.c.l.b16 %v4208
        %v4243 = vunpack.c.l.b16 %v4209
        %v4244 = vunpack.c.l.b16 %v4210
        %v4245 = vunpack.c.l.b16 %v4211
        %v4246 = vunpack.c.l.b16 %v4212
        %v4247 = vunpack.c.l.b16 %v4213
        %v4248 = vunpack.c.l.b16 %v4214
        %v4249 = vunpack.c.l.b16 %v4215
        %v4250 = vpack.c.b16 %v4237, %v4236
        %v4251 = vpack.c.b16 %v4239, %v4238
        %v4252 = vpack.c.b16 %v4241, %v4240
        %v4253 = vpack.c.b16 %v4243, %v4242
        %v4254 = vpack.c.b16 %v4245, %v4244
        %v4255 = vpack.c.b16 %v4247, %v4246
        %v4256 = vpack.c.b16 %v4249, %v4248
        %vm4263 = vcmask 883712
        %v4265 = vsel %vm4263, %v4192, 0
        %v4268 = vsel %vm4263, %v4193, 0
        %v4271 = vsel %vm4263, %v4194, 0
        %v4274 = vsel %vm4263, %v4195, 0
        %v4277 = vsel %vm4263, %v4196, 0
        %v4280 = vsel %vm4263, %v4197, 0
        %v4283 = vsel %vm4263, %v4198, 0
        %v4286 = vsel %vm4263, %v4199, 0
        %v4289 = vsel %vm4263, %v4200, 0
        %v4292 = vsel %vm4263, %v4201, 0
        %vm4294 = vcmask 1045504
        %v4296 = vsel %vm4294, %v4256, 0
        %4298 = vmatprep.subr.bf16.mxu0 0
        %4299 = vmatpush1.bf16.msra.mxu0 %v4250
        %4300 = vmatprep.subr.bf16.mxu0 0
        %4301 = vmatpush1.bf16.msra.mxu0 %v4251
        %4302 = vmatprep.subr.bf16.mxu0 0
        %4303 = vmatpush1.bf16.msra.mxu0 %v4252
        %4304 = vmatprep.subr.bf16.mxu0 0
        %4305 = vmatpush1.bf16.msra.mxu0 %v4253
        %4306 = vmatprep.subr.bf16.mxu0 0
        %4307 = vmatpush1.bf16.msra.mxu0 %v4254
        %4308 = vmatprep.subr.bf16.mxu0 0
        %4309 = vmatpush1.bf16.msra.mxu0 %v4255
        %4310 = vmatprep.subr.bf16.mxu0 0
        %4311 = vmatpush1.bf16.msra.mxu0 %v4296
        %4312 = vmatprep.subr.bf16.mxu0 0
        %4313 = vmatpush1.bf16.msra.mxu0 0
        %4314 = vmatprep.subr.bf16.mxu0 0
        %4315 = vmatpush1.bf16.msra.mxu0 0
        %4316 = vmatprep.subr.bf16.mxu0 0
        %4317 = vmatpush1.bf16.msra.mxu0 0
        %4318 = vmatprep.subr.bf16.mxu0 0
        %4319 = vmatpush1.bf16.msra.mxu0 0
        %4320 = vmatprep.subr.bf16.mxu0 0
        %4321 = vmatpush1.bf16.msra.mxu0 0
        %4322 = vmatprep.subr.bf16.mxu0 0
        %4323 = vmatpush1.bf16.msra.mxu0 0
        %4324 = vmatprep.subr.bf16.mxu0 0
        %4325 = vmatpush1.bf16.msra.mxu0 0
        %4326 = vmatprep.subr.bf16.mxu0 0
        %4327 = vmatpush1.bf16.msra.mxu0 0
        %4328 = vmatprep.subr.bf16.mxu0 0
        %4329 = vmatpush1.bf16.msra.mxu0 0
        %4330 = vmatprep.mubr.bf16.mxu0 0
        %4331 = vmatmul.mubr.bf16.gmra.mrb[0].mxu0 %v4265
        %v4332 = vpop.f32.mrb[0].mxu0
        %v4333 = vadd.f32 %v4220, %v4332
        %v4334 = vpop.f32.mrb[0].mxu0
        %v4335 = vpop.f32.mrb[0].mxu0
        %v4336 = vadd.f32 %v4220, %v4335
        %v4337 = vpop.f32.mrb[0].mxu0
        %4338 = vmatprep.mubr.bf16.mxu0 0
        %4339 = vmatmul.mubr.bf16.gmra.mrb[0].mxu0 %v4268
        %v4340 = vpop.f32.mrb[0].mxu0
        %v4341 = vadd.f32 %v4220, %v4340
        %v4342 = vpop.f32.mrb[0].mxu0
        %v4343 = vpop.f32.mrb[0].mxu0
        %v4344 = vadd.f32 %v4220, %v4343
        %v4345 = vpop.f32.mrb[0].mxu0
        %4346 = vmatprep.mubr.bf16.mxu0 0
        %4347 = vmatmul.mubr.bf16.gmra.mrb[0].mxu0 %v4271
        %v4348 = vpop.f32.mrb[0].mxu0
        %v4349 = vadd.f32 %v4220, %v4348
        %v4350 = vpop.f32.mrb[0].mxu0
        %v4351 = vpop.f32.mrb[0].mxu0
        %v4352 = vadd.f32 %v4220, %v4351
        %v4353 = vpop.f32.mrb[0].mxu0
        %4354 = vmatprep.mubr.bf16.mxu0 0
        %4355 = vmatmul.mubr.bf16.gmra.mrb[0].mxu0 %v4274
        %v4356 = vpop.f32.mrb[0].mxu0
        %v4357 = vadd.f32 %v4220, %v4356
        %v4358 = vpop.f32.mrb[0].mxu0
        %v4359 = vpop.f32.mrb[0].mxu0
        %v4360 = vadd.f32 %v4220, %v4359
        %v4361 = vpop.f32.mrb[0].mxu0
        %4362 = vmatprep.mubr.bf16.mxu0 0
        %4363 = vmatmul.mubr.bf16.gmra.mrb[0].mxu0 %v4277
        %v4364 = vpop.f32.mrb[0].mxu0
        %v4365 = vadd.f32 %v4220, %v4364
        %v4366 = vpop.f32.mrb[0].mxu0
        %v4367 = vpop.f32.mrb[0].mxu0
        %v4368 = vadd.f32 %v4220, %v4367
        %v4369 = vpop.f32.mrb[0].mxu0
        %4370 = vmatprep.mubr.bf16.mxu0 0
        %4371 = vmatmul.mubr.bf16.gmra.mrb[0].mxu0 %v4280
        %v4372 = vpop.f32.mrb[0].mxu0
        %v4373 = vadd.f32 %v4220, %v4372
        %v4374 = vpop.f32.mrb[0].mxu0
        %v4375 = vpop.f32.mrb[0].mxu0
        %v4376 = vadd.f32 %v4220, %v4375
        %v4377 = vpop.f32.mrb[0].mxu0
        %4378 = vmatprep.mubr.bf16.mxu0 0
        %4379 = vmatmul.mubr.bf16.gmra.mrb[0].mxu0 %v4283
        %v4380 = vpop.f32.mrb[0].mxu0
        %v4381 = vadd.f32 %v4220, %v4380
        %v4382 = vpop.f32.mrb[0].mxu0
        %v4383 = vpop.f32.mrb[0].mxu0
        %v4384 = vadd.f32 %v4220, %v4383
        %v4385 = vpop.f32.mrb[0].mxu0
        %4386 = vmatprep.mubr.bf16.mxu0 0
        %4387 = vmatmul.mubr.bf16.gmra.mrb[0].mxu0 %v4286
        %v4388 = vpop.f32.mrb[0].mxu0
        %v4389 = vadd.f32 %v4220, %v4388
        %v4390 = vpop.f32.mrb[0].mxu0
        %v4391 = vpop.f32.mrb[0].mxu0
        %v4392 = vadd.f32 %v4220, %v4391
        %v4393 = vpop.f32.mrb[0].mxu0
        %4394 = vmatprep.mubr.bf16.mxu0 0
        %4395 = vmatmul.mubr.bf16.gmra.mrb[0].mxu0 %v4289
        %v4396 = vpop.f32.mrb[0].mxu0
        %v4397 = vadd.f32 %v4220, %v4396
        %v4398 = vpop.f32.mrb[0].mxu0
        %v4399 = vpop.f32.mrb[0].mxu0
        %v4400 = vadd.f32 %v4220, %v4399
        %v4401 = vpop.f32.mrb[0].mxu0
        %4402 = vmatprep.mubr.bf16.mxu0 0
        %4403 = vmatmul.mubr.bf16.gmra.mrb[0].mxu0 %v4292
        %v4404 = vpop.f32.mrb[0].mxu0
        %v4405 = vadd.f32 %v4220, %v4404
        %v4406 = vpop.f32.mrb[0].mxu0
        %v4407 = vpop.f32.mrb[0].mxu0
        %v4408 = vadd.f32 %v4220, %v4407
        %v4409 = vpop.f32.mrb[0].mxu0
        %4410 = vdwg.mxu0
        %v4411 = vmax.f32 %v4333, 0.0
        %v4412 = vmax.f32 %v4336, 0.0
        %v4413 = vmax.f32 %v4341, 0.0
        %v4414 = vmax.f32 %v4344, 0.0
        %v4415 = vmax.f32 %v4349, 0.0
        %v4416 = vmax.f32 %v4352, 0.0
        %v4417 = vmax.f32 %v4357, 0.0
        %v4418 = vmax.f32 %v4360, 0.0
        %v4419 = vmax.f32 %v4365, 0.0
        %v4420 = vmax.f32 %v4368, 0.0
        %v4421 = vmax.f32 %v4373, 0.0
        %v4422 = vmax.f32 %v4376, 0.0
        %v4423 = vmax.f32 %v4381, 0.0
        %v4424 = vmax.f32 %v4384, 0.0
        %v4425 = vmax.f32 %v4389, 0.0
        %v4426 = vmax.f32 %v4392, 0.0
        %v4427 = vmax.f32 %v4397, 0.0
        %v4428 = vmax.f32 %v4400, 0.0
        %v4429 = vmax.f32 %v4405, 0.0
        %v4430 = vmax.f32 %v4408, 0.0
        %v4431 = vpack.c.bf16 %v4412, %v4411
        %v4432 = vpack.c.bf16 %v4414, %v4413
        %v4433 = vpack.c.bf16 %v4416, %v4415
        %v4434 = vpack.c.bf16 %v4418, %v4417
        %v4435 = vpack.c.bf16 %v4420, %v4419
        %v4436 = vpack.c.bf16 %v4422, %v4421
        %v4437 = vpack.c.bf16 %v4424, %v4423
        %v4438 = vpack.c.bf16 %v4426, %v4425
        %v4439 = vpack.c.bf16 %v4428, %v4427
        %v4440 = vpack.c.bf16 %v4430, %v4429
        %v4451 = vunpack.c.l.b16 %v4431
        %v4452 = vunpack.c.h.b16 %v4431
        %v4453 = vunpack.c.l.b16 %v4432
        %v4454 = vunpack.c.h.b16 %v4432
        %v4455 = vunpack.c.l.b16 %v4433
        %v4456 = vunpack.c.h.b16 %v4433
        %v4457 = vunpack.c.l.b16 %v4434
        %v4458 = vunpack.c.h.b16 %v4434
        %v4459 = vunpack.c.l.b16 %v4435
        %v4460 = vunpack.c.h.b16 %v4435
        %v4461 = vunpack.c.l.b16 %v4436
        %v4462 = vunpack.c.h.b16 %v4436
        %v4463 = vunpack.c.l.b16 %v4437
        %v4464 = vunpack.c.h.b16 %v4437
        %v4465 = vunpack.c.l.b16 %v4438
        %v4466 = vunpack.c.h.b16 %v4438
        %v4467 = vunpack.c.l.b16 %v4439
        %v4468 = vunpack.c.h.b16 %v4439
        %v4469 = vunpack.c.l.b16 %v4440
        %v4470 = vunpack.c.h.b16 %v4440
        %v4471 = vpack.c.b16 %v4451, %v4451
        %v4472 = vpack.c.b16 %v4452, %v4452
        %v4473 = vpack.c.b16 %v4453, %v4453
        %v4474 = vpack.c.b16 %v4454, %v4454
        %v4475 = vpack.c.b16 %v4455, %v4455
        %v4476 = vpack.c.b16 %v4456, %v4456
        %v4477 = vpack.c.b16 %v4457, %v4457
        %v4478 = vpack.c.b16 %v4458, %v4458
        %v4479 = vpack.c.b16 %v4459, %v4459
        %v4480 = vpack.c.b16 %v4460, %v4460
        %v4481 = vpack.c.b16 %v4461, %v4461
        %v4482 = vpack.c.b16 %v4462, %v4462
        %v4483 = vpack.c.b16 %v4463, %v4463
        %v4484 = vpack.c.b16 %v4464, %v4464
        %v4485 = vpack.c.b16 %v4465, %v4465
        %v4486 = vpack.c.b16 %v4466, %v4466
        %v4487 = vpack.c.b16 %v4467, %v4467
        %v4488 = vpack.c.b16 %v4468, %v4468
        %v4489 = vpack.c.b16 %v4469, %v4469
        %v4490 = vpack.c.b16 %v4470, %v4470
        %4511 = vst [vmem:[%s177] sm:$0xf] %v4471
        %4512 = vst [vmem:[%s177 + $0x4] sm:$0xf] %v4472
        %4513 = vst [vmem:[%s177 + $0x8] sm:$0xf] %v4473
        %4514 = vst [vmem:[%s177 + $0xc] sm:$0xf] %v4474
        %4515 = vst [vmem:[%s177 + $0x10] sm:$0xf] %v4475
        %4516 = vst [vmem:[%s177 + $0x14] sm:$0xf] %v4476
        %4517 = vst [vmem:[%s177 + $0x18] sm:$0xf] %v4477
        %4518 = vst [vmem:[%s177 + $0x1c] sm:$0xf] %v4478
        %4519 = vst [vmem:[%s177 + $0x20] sm:$0xf] %v4479
        %4520 = vst [vmem:[%s177 + $0x24] sm:$0xf] %v4480
        %4521 = vst [vmem:[%s177 + $0x28] sm:$0xf] %v4481
        %4522 = vst [vmem:[%s177 + $0x2c] sm:$0xf] %v4482
        %4523 = vst [vmem:[%s177 + $0x30] sm:$0xf] %v4483
        %4524 = vst [vmem:[%s177 + $0x34] sm:$0xf] %v4484
        %4525 = vst [vmem:[%s177 + $0x38] sm:$0xf] %v4485
        %4526 = vst [vmem:[%s177 + $0x3c] sm:$0xf] %v4486
        %4527 = vst [vmem:[%s177 + $0x40] sm:$0xf] %v4487
        %4528 = vst [vmem:[%s177 + $0x44] sm:$0xf] %v4488
        %4529 = vst [vmem:[%s177 + $0x48] sm:$0xf] %v4489
        %4530 = vst [vmem:[%s177 + $0x4c] sm:$0xf] %v4490
        %s4531 = sand.u32 %s107, 1
        %s4532 = scalar_lea.sflag [#allocation4], %s4531
        %s4533 = sand.u32 %s107, 1
        %s4534 = smul.addr %s4533, 80
        %s4535 = scalar_lea.vmem [#allocation3], %s4534
        // Predicated region
        $region33: #{tpu_custom_call.1} parent=31 // pred_check
          %p4536 = pneg %p117
        $region34: #{tpu_custom_call.1} parent=31 // pred_check_branch
          %4538 = sbr.rel (%p4536) target = $region36
        $region35: #{tpu_custom_call.1} parent=31 // pred_region
          %s4540 = ssub.s32 1280, 1280
          %4541 = vsyncadd %s4532, %s4540
          %s4542 = smul.addr %s22, 20
          %s4543 = smul.addr %s21, 160
          %s4544 = sadd.s32 %s4542, %s4543
          %s4545 = smul.addr %s4544, 64
          %s4546 = scalar_lea.hbm %s3, %s4545
          %s4547 = sshll.u32 %s4535, 4
          %s4548 = int_to_ptr.vmem [resolvable:$true] %s4547
          %4553 = dma.vmem_to_hbm [thread:$0]  %s4548, 1280, %s4546, %s4532, 64, 64, 4
        $region36: #{tpu_custom_call.1} parent=31 // pred_fallthru
          _
      $region32: #{tpu_custom_call.1} parent=5 // pred_fallthru
        _
      %p4554 = scmp.le.s32.totalorder 2, %s12
      // Predicated region
      $region37: #{tpu_custom_call.1} parent=5 // pred_check
        %p4555 = pneg %p4554
      $region38: #{tpu_custom_call.1} parent=5 // pred_check_branch
        %4557 = sbr.rel (%p4555) target = $region40
      $region39: #{tpu_custom_call.1} parent=5 // pred_region
        %s4558 = ssub.s32 %s12, 2
        // Predicated region
        $region41: #{tpu_custom_call.1} parent=39 // pred_check
          %p4559 = pneg %p123
        $region42: #{tpu_custom_call.1} parent=39 // pred_check_branch
          %4561 = sbr.rel (%p4559) target = $region44
        $region43: #{tpu_custom_call.1} parent=39 // pred_region
          %s4562 = sand.u32 %s108, 1
          %s4563 = scalar_lea.sflag [#allocation4], %s4562
          %s4564 = sand.u32 %s108, 1
          %s4565 = smul.addr %s4564, 80
          %s4566 = scalar_lea.vmem [#allocation3], %s4565
          %4567 = dma.done %s4563, 1280
        $region44: #{tpu_custom_call.1} parent=39 // pred_fallthru
          _
      $region40: #{tpu_custom_call.1} parent=5 // pred_fallthru
        _
    $region6: #{tpu_custom_call.1} parent=1 // loop_footer
      %s16 = sadd.s32 1, %s12
    $region7: #{tpu_custom_call.1} parent=1 // loop_footer_branch
      %11 = sbr.rel target = $region3
    $region8: #{tpu_custom_call.1} parent=1 // loop_exit
      _
    %4568 = vsyncpa [#allocation4], 1
    %s4569 = scalar_lea.sflag [#allocation4], 1
    %4570 = vsyncpa %s4569, 1

</llo_original>
